<compile_context>
chip_gen: v5e
topology: v5e:2x2
jax: 0.10.0
libtpu: 0.0.40
codegen_flags: <defaults>
</compile_context>

<pallas_src>
import jax
import jax.numpy as jnp
from jax import lax
from jax.experimental import pallas as pl
from jax.experimental.pallas import tpu as pltpu


def _upsample_conv_kernel(body_ref, halo0_ref, halo1_ref, w_ref, b_ref, o_ref):
    """Fused nearest-2x upsample + 3x3 conv for one (batch, row-tile) grid step.

    body_ref : (TH, W+2, C)     padded input rows [i*TH, i*TH+TH)
    halo0_ref: (1,  W+2, C)     padded input row   i*TH+TH
    halo1_ref: (1,  W+2, C)     padded input row   i*TH+TH+1
    w_ref    : (16, C, C)       phase weights, index ((py*2+px)*2+ry)*2+rx, (Cin,Cout)
    b_ref    : (1, C)           bias
    o_ref    : (TH, 2, W, 2*C)  output; memory-identical to 2*TH NHWC output rows
    """
    TH, Wp, C = body_ref.shape
    W = Wp - 2
    M = TH * W

    # Padded input window for this row tile (TH + 2 rows, original resolution).
    xp = jnp.concatenate([body_ref[...], halo0_ref[...], halo1_ref[...]], axis=0)

    bias = b_ref[...].astype(jnp.float32)                              # (1, C)

    # The 9 shifted windows at original resolution, flattened for the MXU.
    win = [[xp[u:u + TH, v:v + W, :].reshape(M, C) for v in range(3)]
           for u in range(3)]

    for py in range(2):                                # output row parity
        cols = []
        for px in range(2):                            # output column parity
            p = py * 2 + px
            acc = jnp.zeros((M, C), jnp.float32)
            for ry in range(2):                        # 2x2 reduced taps (unrolled)
                for rx in range(2):
                    acc = acc + jnp.dot(win[py + ry][px + rx],
                                        w_ref[p * 4 + ry * 2 + rx],
                                        preferred_element_type=jnp.float32)
            cols.append(acc + bias)
        # Lane-concat the two column phases -> (M, 2C); since the output's last
        # dim is split as (..., W, 2*C) in memory, this IS the column interleave.
        row = jnp.concatenate(cols, axis=-1).reshape(TH, W, 2 * C)
        o_ref[:, py, :, :] = row.astype(o_ref.dtype)


def _phase_weights(weight_oihw, dtype):
    """(Cout, Cin, 3, 3) conv weight -> (16, Cin, Cout) phase-combined 2x2 taps."""
    C = weight_oihw.shape[0]
    w_t = jnp.transpose(weight_oihw, (2, 3, 1, 0)).astype(jnp.float32)  # (3,3,Ci,Co)
    # R[parity, r, d] = 1 iff original tap d (on the upsampled grid) lands on
    # reduced tap r for that output parity (nearest-2x index algebra).
    R = jnp.array([[[1., 0., 0.], [0., 1., 1.]],
                   [[1., 1., 0.], [0., 0., 1.]]], jnp.float32)
    w2 = jnp.einsum('prd,qse,deio->pqrsio', R, R, w_t)   # (py,px,ry,rx,Cin,Cout)
    return w2.reshape(16, C, C).astype(dtype)


def _pick_row_tile(H, W, C, itemsize, budget_bytes=36 * 1024 * 1024):
    """Largest divisor of H whose per-grid-step VMEM footprint fits the budget."""
    Wp = W + 2

    def est(th):
        dma = 2 * th * Wp * C * itemsize            # body rows (double-buffered)
        dma += 2 * 2 * Wp * C * itemsize            # halo rows
        dma += 2 * 16 * C * C * itemsize            # phase weights
        dma += 2 * th * 2 * W * 2 * C * itemsize    # output block (double-buffered)
        tmp = (th + 2) * Wp * C * itemsize          # concatenated padded tile
        tmp += 11 * th * W * C * 4                  # 9 windows + f32 accumulators
        return dma + tmp

    for th in range(H, 0, -1):
        if H % th == 0 and est(th) <= budget_bytes:
            return th
    return 1


def upsample_forward(x_nchw, weight_oihw=None, bias=None, with_conv=True,
                     row_tile=None):
    """Nearest 2x upsample, then (optionally) a 3x3 'same' conv. NCHW in/out."""
    if not with_conv:
        # TODO(synk): upsample-only path is pure data movement, left in plain JAX.
        return jnp.repeat(jnp.repeat(x_nchw, 2, axis=2), 2, axis=3)

    B, C, H, W = x_nchw.shape
    dtype = x_nchw.dtype
    Wp = W + 2

    # Layout glue: NCHW -> NHWC + zero-pad by 1 (XLA fuses into one copy).
    x_nhwc = jnp.transpose(x_nchw, (0, 2, 3, 1))
    xp = jnp.pad(x_nhwc, ((0, 0), (1, 1), (1, 1), (0, 0)))

    w16 = _phase_weights(weight_oihw, dtype)          # (16, C, C)
    b2d = bias.reshape(1, C).astype(jnp.float32)      # (1, C)

    if row_tile is not None and H % row_tile == 0:
        TH = row_tile
    else:
        TH = _pick_row_tile(H, W, C, jnp.dtype(dtype).itemsize)
    n_th = H // TH

    out5 = pl.pallas_call(
        _upsample_conv_kernel,
        out_shape=jax.ShapeDtypeStruct((B, H, 2, W, 2 * C), dtype),
        grid_spec=pltpu.PrefetchScalarGridSpec(
            num_scalar_prefetch=0,
            grid=(B, n_th),
            in_specs=[
                # body rows of the padded image for this tile
                pl.BlockSpec((None, TH, Wp, C), lambda b, i: (b, i, 0, 0)),
                # 2-row halo below the tile (1-row blocks -> element-granular index)
                pl.BlockSpec((None, 1, Wp, C), lambda b, i: (b, (i + 1) * TH, 0, 0)),
                pl.BlockSpec((None, 1, Wp, C), lambda b, i: (b, (i + 1) * TH + 1, 0, 0)),
                # phase weights / bias: same block every step
                pl.BlockSpec((16, C, C), lambda b, i: (0, 0, 0)),
                pl.BlockSpec((1, C), lambda b, i: (0, 0)),
            ],
            out_specs=pl.BlockSpec((None, TH, 2, W, 2 * C),
                                   lambda b, i: (b, i, 0, 0, 0)),
        ),
        compiler_params=pltpu.CompilerParams(
            dimension_semantics=("parallel", "parallel"),
            vmem_limit_bytes=48 * 1024 * 1024),
    )(xp, xp, xp, w16, b2d)

    # (B, H, 2, W, 2C) is memory-identical to NHWC (B, 2H, 2W, C): free reshape.
    out_nhwc = out5.reshape(B, 2 * H, 2 * W, C)
    return jnp.transpose(out_nhwc, (0, 3, 1, 2))


if __name__ == "__main__":
    key = jax.random.PRNGKey(0)
    B, C, H, W = 2, 4, 16, 16
    kx, kw, kb = jax.random.split(key, 3)

    x = jax.random.normal(kx, (B, C, H, W), jnp.float32)
    # Deterministic Conv2d-style init: U(-1/sqrt(fan_in), +1/sqrt(fan_in)), fan_in = C*9
    bound = 1.0 / (C * 9) ** 0.5
    weight = jax.random.uniform(kw, (C, C, 3, 3), jnp.float32, -bound, bound)
    bias = jax.random.uniform(kb, (C,), jnp.float32, -bound, bound)

    # Pure-JAX reference: nearest 2x upsample + conv2d (cross-correlation) + bias.
    x_up_ref = jnp.repeat(jnp.repeat(x, 2, axis=2), 2, axis=3)
    ref = lax.conv_general_dilated(
        x_up_ref, weight, window_strides=(1, 1), padding=((1, 1), (1, 1)),
        dimension_numbers=("NCHW", "OIHW", "NCHW")) + bias[None, :, None, None]

    # Default tiling (single row-tile per image at this size).
    out = jax.block_until_ready(upsample_forward(x, weight, bias, with_conv=True))
    assert out.shape == (B, C, 2 * H, 2 * W), out.shape
    assert jnp.allclose(out, ref, atol=1e-5, rtol=1e-5), float(
        jnp.max(jnp.abs(out - ref)))

    # Forced multi-tile grid: exercises the 2-row halo across row tiles.
    out_t = jax.block_until_ready(
        upsample_forward(x, weight, bias, with_conv=True, row_tile=4))
    assert jnp.allclose(out_t, ref, atol=1e-5, rtol=1e-5), float(
        jnp.max(jnp.abs(out_t - ref)))

    # Upsample-only path (with_conv=False).
    out_up = jax.block_until_ready(upsample_forward(x, with_conv=False))
    assert jnp.allclose(out_up, x_up_ref), "upsample-only mismatch"

    print("KERNEL_OK")
</pallas_src>

<mosaic_0001>
module attributes {stable_mosaic.version = 11 : i64} {
  func.func @_upsample_conv_kernel(%arg0: i32, %arg1: i32, %arg2: memref<1x16x18x4xf32, #tpu.memory_space<vmem>>, %arg3: memref<1x1x18x4xf32, #tpu.memory_space<vmem>>, %arg4: memref<1x1x18x4xf32, #tpu.memory_space<vmem>>, %arg5: memref<16x4x4xf32, #tpu.memory_space<vmem>>, %arg6: memref<1x4xf32, #tpu.memory_space<vmem>>, %arg7: memref<1x16x2x16x8xf32, #tpu.memory_space<vmem>>) attributes {dimension_semantics = [#tpu.dimension_semantics<parallel>, #tpu.dimension_semantics<parallel>], iteration_bounds = array<i64: 2, 1>, scalar_prefetch = 0 : i64, scratch_operands = 0 : i64, tpu.core_type = #tpu.core_type<tc>, window_params = [{transform_indices = @transform_0, window_bounds = array<i64: 1, 16, 18, 4>}, {transform_indices = @transform_1, window_bounds = array<i64: 1, 1, 18, 4>}, {transform_indices = @transform_2, window_bounds = array<i64: 1, 1, 18, 4>}, {pipeline_mode = #tpu.pipeline_mode<synchronous>, transform_indices = @transform_3, window_bounds = array<i64: 16, 4, 4>}, {pipeline_mode = #tpu.pipeline_mode<synchronous>, transform_indices = @transform_4, window_bounds = array<i64: 1, 4>}, {transform_indices = @transform_5, window_bounds = array<i64: 1, 16, 2, 16, 8>}]} {
    %c0 = arith.constant 0 : index
    %c0_0 = arith.constant 0 : index
    %c0_1 = arith.constant 0 : index
    %c0_2 = arith.constant 0 : index
    %0 = vector.load %arg2[%c0, %c0_0, %c0_1, %c0_2] : memref<1x16x18x4xf32, #tpu.memory_space<vmem>>, vector<1x16x18x4xf32>
    %1 = vector.shape_cast %0 : vector<1x16x18x4xf32> to vector<16x18x4xf32>
    %c0_3 = arith.constant 0 : index
    %c0_4 = arith.constant 0 : index
    %c0_5 = arith.constant 0 : index
    %c0_6 = arith.constant 0 : index
    %2 = vector.load %arg3[%c0_3, %c0_4, %c0_5, %c0_6] : memref<1x1x18x4xf32, #tpu.memory_space<vmem>>, vector<1x1x18x4xf32>
    %3 = vector.shape_cast %2 : vector<1x1x18x4xf32> to vector<1x18x4xf32>
    %c0_7 = arith.constant 0 : index
    %c0_8 = arith.constant 0 : index
    %c0_9 = arith.constant 0 : index
    %c0_10 = arith.constant 0 : index
    %4 = vector.load %arg4[%c0_7, %c0_8, %c0_9, %c0_10] : memref<1x1x18x4xf32, #tpu.memory_space<vmem>>, vector<1x1x18x4xf32>
    %5 = vector.shape_cast %4 : vector<1x1x18x4xf32> to vector<1x18x4xf32>
    %6 = tpu.concatenate %1, %3, %5 in 0 : vector<16x18x4xf32>, vector<1x18x4xf32>, vector<1x18x4xf32> -> vector<18x18x4xf32>
    %c0_11 = arith.constant 0 : index
    %c0_12 = arith.constant 0 : index
    %7 = vector.load %arg6[%c0_11, %c0_12] : memref<1x4xf32, #tpu.memory_space<vmem>>, vector<1x4xf32>
    %8 = vector.extract_strided_slice %6 {offsets = [0, 0, 0], sizes = [16, 16, 4], strides = [1, 1, 1]} : vector<18x18x4xf32> to vector<16x16x4xf32>
    %9 = vector.shape_cast %8 : vector<16x16x4xf32> to vector<256x4xf32>
    %10 = vector.extract_strided_slice %6 {offsets = [0, 1, 0], sizes = [16, 16, 4], strides = [1, 1, 1]} : vector<18x18x4xf32> to vector<16x16x4xf32>
    %11 = vector.shape_cast %10 : vector<16x16x4xf32> to vector<256x4xf32>
    %12 = vector.extract_strided_slice %6 {offsets = [0, 2, 0], sizes = [16, 16, 4], strides = [1, 1, 1]} : vector<18x18x4xf32> to vector<16x16x4xf32>
    %13 = vector.shape_cast %12 : vector<16x16x4xf32> to vector<256x4xf32>
    %14 = vector.extract_strided_slice %6 {offsets = [1, 0, 0], sizes = [16, 16, 4], strides = [1, 1, 1]} : vector<18x18x4xf32> to vector<16x16x4xf32>
    %15 = vector.shape_cast %14 : vector<16x16x4xf32> to vector<256x4xf32>
    %16 = vector.extract_strided_slice %6 {offsets = [1, 1, 0], sizes = [16, 16, 4], strides = [1, 1, 1]} : vector<18x18x4xf32> to vector<16x16x4xf32>
    %17 = vector.shape_cast %16 : vector<16x16x4xf32> to vector<256x4xf32>
    %18 = vector.extract_strided_slice %6 {offsets = [1, 2, 0], sizes = [16, 16, 4], strides = [1, 1, 1]} : vector<18x18x4xf32> to vector<16x16x4xf32>
    %19 = vector.shape_cast %18 : vector<16x16x4xf32> to vector<256x4xf32>
    %20 = vector.extract_strided_slice %6 {offsets = [2, 0, 0], sizes = [16, 16, 4], strides = [1, 1, 1]} : vector<18x18x4xf32> to vector<16x16x4xf32>
    %21 = vector.shape_cast %20 : vector<16x16x4xf32> to vector<256x4xf32>
    %22 = vector.extract_strided_slice %6 {offsets = [2, 1, 0], sizes = [16, 16, 4], strides = [1, 1, 1]} : vector<18x18x4xf32> to vector<16x16x4xf32>
    %23 = vector.shape_cast %22 : vector<16x16x4xf32> to vector<256x4xf32>
    %24 = vector.extract_strided_slice %6 {offsets = [2, 2, 0], sizes = [16, 16, 4], strides = [1, 1, 1]} : vector<18x18x4xf32> to vector<16x16x4xf32>
    %25 = vector.shape_cast %24 : vector<16x16x4xf32> to vector<256x4xf32>
    %cst = arith.constant 0.000000e+00 : f32
    %26 = vector.broadcast %cst : f32 to vector<256x4xf32>
    %c0_13 = arith.constant 0 : index
    %c0_14 = arith.constant 0 : index
    %c0_15 = arith.constant 0 : index
    %27 = vector.load %arg5[%c0_13, %c0_14, %c0_15] : memref<16x4x4xf32, #tpu.memory_space<vmem>>, vector<1x4x4xf32>
    %28 = vector.shape_cast %27 : vector<1x4x4xf32> to vector<4x4xf32>
    %cst_16 = arith.constant dense<0.000000e+00> : vector<256x4xf32>
    %29 = tpu.matmul %9, %28, %cst_16 {dimension_numbers = #tpu.dot_dimension_numbers<[1], [0], [0], [1], [0, 0, 1, 1], [], []>} : vector<256x4xf32>, vector<4x4xf32>, vector<256x4xf32> -> vector<256x4xf32>
    %30 = arith.addf %26, %29 : vector<256x4xf32>
    %c1 = arith.constant 1 : index
    %c0_17 = arith.constant 0 : index
    %c0_18 = arith.constant 0 : index
    %31 = vector.load %arg5[%c1, %c0_17, %c0_18] : memref<16x4x4xf32, #tpu.memory_space<vmem>>, vector<1x4x4xf32>
    %32 = vector.shape_cast %31 : vector<1x4x4xf32> to vector<4x4xf32>
    %cst_19 = arith.constant dense<0.000000e+00> : vector<256x4xf32>
    %33 = tpu.matmul %11, %32, %cst_19 {dimension_numbers = #tpu.dot_dimension_numbers<[1], [0], [0], [1], [0, 0, 1, 1], [], []>} : vector<256x4xf32>, vector<4x4xf32>, vector<256x4xf32> -> vector<256x4xf32>
    %34 = arith.addf %30, %33 : vector<256x4xf32>
    %c2 = arith.constant 2 : index
    %c0_20 = arith.constant 0 : index
    %c0_21 = arith.constant 0 : index
    %35 = vector.load %arg5[%c2, %c0_20, %c0_21] : memref<16x4x4xf32, #tpu.memory_space<vmem>>, vector<1x4x4xf32>
    %36 = vector.shape_cast %35 : vector<1x4x4xf32> to vector<4x4xf32>
    %cst_22 = arith.constant dense<0.000000e+00> : vector<256x4xf32>
    %37 = tpu.matmul %15, %36, %cst_22 {dimension_numbers = #tpu.dot_dimension_numbers<[1], [0], [0], [1], [0, 0, 1, 1], [], []>} : vector<256x4xf32>, vector<4x4xf32>, vector<256x4xf32> -> vector<256x4xf32>
    %38 = arith.addf %34, %37 : vector<256x4xf32>
    %c3 = arith.constant 3 : index
    %c0_23 = arith.constant 0 : index
    %c0_24 = arith.constant 0 : index
    %39 = vector.load %arg5[%c3, %c0_23, %c0_24] : memref<16x4x4xf32, #tpu.memory_space<vmem>>, vector<1x4x4xf32>
    %40 = vector.shape_cast %39 : vector<1x4x4xf32> to vector<4x4xf32>
    %cst_25 = arith.constant dense<0.000000e+00> : vector<256x4xf32>
    %41 = tpu.matmul %17, %40, %cst_25 {dimension_numbers = #tpu.dot_dimension_numbers<[1], [0], [0], [1], [0, 0, 1, 1], [], []>} : vector<256x4xf32>, vector<4x4xf32>, vector<256x4xf32> -> vector<256x4xf32>
    %42 = arith.addf %38, %41 : vector<256x4xf32>
    %43 = vector.broadcast %7 : vector<1x4xf32> to vector<256x4xf32>
    %44 = arith.addf %42, %43 : vector<256x4xf32>
    %cst_26 = arith.constant 0.000000e+00 : f32
    %45 = vector.broadcast %cst_26 : f32 to vector<256x4xf32>
    %c4 = arith.constant 4 : index
    %c0_27 = arith.constant 0 : index
    %c0_28 = arith.constant 0 : index
    %46 = vector.load %arg5[%c4, %c0_27, %c0_28] : memref<16x4x4xf32, #tpu.memory_space<vmem>>, vector<1x4x4xf32>
    %47 = vector.shape_cast %46 : vector<1x4x4xf32> to vector<4x4xf32>
    %cst_29 = arith.constant dense<0.000000e+00> : vector<256x4xf32>
    %48 = tpu.matmul %11, %47, %cst_29 {dimension_numbers = #tpu.dot_dimension_numbers<[1], [0], [0], [1], [0, 0, 1, 1], [], []>} : vector<256x4xf32>, vector<4x4xf32>, vector<256x4xf32> -> vector<256x4xf32>
    %49 = arith.addf %45, %48 : vector<256x4xf32>
    %c5 = arith.constant 5 : index
    %c0_30 = arith.constant 0 : index
    %c0_31 = arith.constant 0 : index
    %50 = vector.load %arg5[%c5, %c0_30, %c0_31] : memref<16x4x4xf32, #tpu.memory_space<vmem>>, vector<1x4x4xf32>
    %51 = vector.shape_cast %50 : vector<1x4x4xf32> to vector<4x4xf32>
    %cst_32 = arith.constant dense<0.000000e+00> : vector<256x4xf32>
    %52 = tpu.matmul %13, %51, %cst_32 {dimension_numbers = #tpu.dot_dimension_numbers<[1], [0], [0], [1], [0, 0, 1, 1], [], []>} : vector<256x4xf32>, vector<4x4xf32>, vector<256x4xf32> -> vector<256x4xf32>
    %53 = arith.addf %49, %52 : vector<256x4xf32>
    %c6 = arith.constant 6 : index
    %c0_33 = arith.constant 0 : index
    %c0_34 = arith.constant 0 : index
    %54 = vector.load %arg5[%c6, %c0_33, %c0_34] : memref<16x4x4xf32, #tpu.memory_space<vmem>>, vector<1x4x4xf32>
    %55 = vector.shape_cast %54 : vector<1x4x4xf32> to vector<4x4xf32>
    %cst_35 = arith.constant dense<0.000000e+00> : vector<256x4xf32>
    %56 = tpu.matmul %17, %55, %cst_35 {dimension_numbers = #tpu.dot_dimension_numbers<[1], [0], [0], [1], [0, 0, 1, 1], [], []>} : vector<256x4xf32>, vector<4x4xf32>, vector<256x4xf32> -> vector<256x4xf32>
    %57 = arith.addf %53, %56 : vector<256x4xf32>
    %c7 = arith.constant 7 : index
    %c0_36 = arith.constant 0 : index
    %c0_37 = arith.constant 0 : index
    %58 = vector.load %arg5[%c7, %c0_36, %c0_37] : memref<16x4x4xf32, #tpu.memory_space<vmem>>, vector<1x4x4xf32>
    %59 = vector.shape_cast %58 : vector<1x4x4xf32> to vector<4x4xf32>
    %cst_38 = arith.constant dense<0.000000e+00> : vector<256x4xf32>
    %60 = tpu.matmul %19, %59, %cst_38 {dimension_numbers = #tpu.dot_dimension_numbers<[1], [0], [0], [1], [0, 0, 1, 1], [], []>} : vector<256x4xf32>, vector<4x4xf32>, vector<256x4xf32> -> vector<256x4xf32>
    %61 = arith.addf %57, %60 : vector<256x4xf32>
    %62 = vector.broadcast %7 : vector<1x4xf32> to vector<256x4xf32>
    %63 = arith.addf %61, %62 : vector<256x4xf32>
    %64 = tpu.concatenate %44, %63 in 1 : vector<256x4xf32>, vector<256x4xf32> -> vector<256x8xf32>
    %65 = vector.shape_cast %64 : vector<256x8xf32> to vector<16x16x8xf32>
    %c0_39 = arith.constant 0 : index
    %c0_40 = arith.constant 0 : index
    %c0_41 = arith.constant 0 : index
    %c0_42 = arith.constant 0 : index
    %c0_43 = arith.constant 0 : index
    %66 = vector.load %arg7[%c0_39, %c0_40, %c0_41, %c0_42, %c0_43] : memref<1x16x2x16x8xf32, #tpu.memory_space<vmem>>, vector<1x16x1x16x8xf32>
    %67 = vector.shape_cast %66 : vector<1x16x1x16x8xf32> to vector<16x16x8xf32>
    %68 = vector.shape_cast %65 : vector<16x16x8xf32> to vector<1x16x1x16x8xf32>
    tpu.vector_store %arg7[%c0_39, %c0_40, %c0_41, %c0_42, %c0_43], %68 {strides = array<i32>} : memref<1x16x2x16x8xf32, #tpu.memory_space<vmem>>, vector<1x16x1x16x8xf32>,
    %cst_44 = arith.constant 0.000000e+00 : f32
    %69 = vector.broadcast %cst_44 : f32 to vector<256x4xf32>
    %c8 = arith.constant 8 : index
    %c0_45 = arith.constant 0 : index
    %c0_46 = arith.constant 0 : index
    %70 = vector.load %arg5[%c8, %c0_45, %c0_46] : memref<16x4x4xf32, #tpu.memory_space<vmem>>, vector<1x4x4xf32>
    %71 = vector.shape_cast %70 : vector<1x4x4xf32> to vector<4x4xf32>
    %cst_47 = arith.constant dense<0.000000e+00> : vector<256x4xf32>
    %72 = tpu.matmul %15, %71, %cst_47 {dimension_numbers = #tpu.dot_dimension_numbers<[1], [0], [0], [1], [0, 0, 1, 1], [], []>} : vector<256x4xf32>, vector<4x4xf32>, vector<256x4xf32> -> vector<256x4xf32>
    %73 = arith.addf %69, %72 : vector<256x4xf32>
    %c9 = arith.constant 9 : index
    %c0_48 = arith.constant 0 : index
    %c0_49 = arith.constant 0 : index
    %74 = vector.load %arg5[%c9, %c0_48, %c0_49] : memref<16x4x4xf32, #tpu.memory_space<vmem>>, vector<1x4x4xf32>
    %75 = vector.shape_cast %74 : vector<1x4x4xf32> to vector<4x4xf32>
    %cst_50 = arith.constant dense<0.000000e+00> : vector<256x4xf32>
    %76 = tpu.matmul %17, %75, %cst_50 {dimension_numbers = #tpu.dot_dimension_numbers<[1], [0], [0], [1], [0, 0, 1, 1], [], []>} : vector<256x4xf32>, vector<4x4xf32>, vector<256x4xf32> -> vector<256x4xf32>
    %77 = arith.addf %73, %76 : vector<256x4xf32>
    %c10 = arith.constant 10 : index
    %c0_51 = arith.constant 0 : index
    %c0_52 = arith.constant 0 : index
    %78 = vector.load %arg5[%c10, %c0_51, %c0_52] : memref<16x4x4xf32, #tpu.memory_space<vmem>>, vector<1x4x4xf32>
    %79 = vector.shape_cast %78 : vector<1x4x4xf32> to vector<4x4xf32>
    %cst_53 = arith.constant dense<0.000000e+00> : vector<256x4xf32>
    %80 = tpu.matmul %21, %79, %cst_53 {dimension_numbers = #tpu.dot_dimension_numbers<[1], [0], [0], [1], [0, 0, 1, 1], [], []>} : vector<256x4xf32>, vector<4x4xf32>, vector<256x4xf32> -> vector<256x4xf32>
    %81 = arith.addf %77, %80 : vector<256x4xf32>
    %c11 = arith.constant 11 : index
    %c0_54 = arith.constant 0 : index
    %c0_55 = arith.constant 0 : index
    %82 = vector.load %arg5[%c11, %c0_54, %c0_55] : memref<16x4x4xf32, #tpu.memory_space<vmem>>, vector<1x4x4xf32>
    %83 = vector.shape_cast %82 : vector<1x4x4xf32> to vector<4x4xf32>
    %cst_56 = arith.constant dense<0.000000e+00> : vector<256x4xf32>
    %84 = tpu.matmul %23, %83, %cst_56 {dimension_numbers = #tpu.dot_dimension_numbers<[1], [0], [0], [1], [0, 0, 1, 1], [], []>} : vector<256x4xf32>, vector<4x4xf32>, vector<256x4xf32> -> vector<256x4xf32>
    %85 = arith.addf %81, %84 : vector<256x4xf32>
    %86 = vector.broadcast %7 : vector<1x4xf32> to vector<256x4xf32>
    %87 = arith.addf %85, %86 : vector<256x4xf32>
    %cst_57 = arith.constant 0.000000e+00 : f32
    %88 = vector.broadcast %cst_57 : f32 to vector<256x4xf32>
    %c12 = arith.constant 12 : index
    %c0_58 = arith.constant 0 : index
    %c0_59 = arith.constant 0 : index
    %89 = vector.load %arg5[%c12, %c0_58, %c0_59] : memref<16x4x4xf32, #tpu.memory_space<vmem>>, vector<1x4x4xf32>
    %90 = vector.shape_cast %89 : vector<1x4x4xf32> to vector<4x4xf32>
    %cst_60 = arith.constant dense<0.000000e+00> : vector<256x4xf32>
    %91 = tpu.matmul %17, %90, %cst_60 {dimension_numbers = #tpu.dot_dimension_numbers<[1], [0], [0], [1], [0, 0, 1, 1], [], []>} : vector<256x4xf32>, vector<4x4xf32>, vector<256x4xf32> -> vector<256x4xf32>
    %92 = arith.addf %88, %91 : vector<256x4xf32>
    %c13 = arith.constant 13 : index
    %c0_61 = arith.constant 0 : index
    %c0_62 = arith.constant 0 : index
    %93 = vector.load %arg5[%c13, %c0_61, %c0_62] : memref<16x4x4xf32, #tpu.memory_space<vmem>>, vector<1x4x4xf32>
    %94 = vector.shape_cast %93 : vector<1x4x4xf32> to vector<4x4xf32>
    %cst_63 = arith.constant dense<0.000000e+00> : vector<256x4xf32>
    %95 = tpu.matmul %19, %94, %cst_63 {dimension_numbers = #tpu.dot_dimension_numbers<[1], [0], [0], [1], [0, 0, 1, 1], [], []>} : vector<256x4xf32>, vector<4x4xf32>, vector<256x4xf32> -> vector<256x4xf32>
    %96 = arith.addf %92, %95 : vector<256x4xf32>
    %c14 = arith.constant 14 : index
    %c0_64 = arith.constant 0 : index
    %c0_65 = arith.constant 0 : index
    %97 = vector.load %arg5[%c14, %c0_64, %c0_65] : memref<16x4x4xf32, #tpu.memory_space<vmem>>, vector<1x4x4xf32>
    %98 = vector.shape_cast %97 : vector<1x4x4xf32> to vector<4x4xf32>
    %cst_66 = arith.constant dense<0.000000e+00> : vector<256x4xf32>
    %99 = tpu.matmul %23, %98, %cst_66 {dimension_numbers = #tpu.dot_dimension_numbers<[1], [0], [0], [1], [0, 0, 1, 1], [], []>} : vector<256x4xf32>, vector<4x4xf32>, vector<256x4xf32> -> vector<256x4xf32>
    %100 = arith.addf %96, %99 : vector<256x4xf32>
    %c15 = arith.constant 15 : index
    %c0_67 = arith.constant 0 : index
    %c0_68 = arith.constant 0 : index
    %101 = vector.load %arg5[%c15, %c0_67, %c0_68] : memref<16x4x4xf32, #tpu.memory_space<vmem>>, vector<1x4x4xf32>
    %102 = vector.shape_cast %101 : vector<1x4x4xf32> to vector<4x4xf32>
    %cst_69 = arith.constant dense<0.000000e+00> : vector<256x4xf32>
    %103 = tpu.matmul %25, %102, %cst_69 {dimension_numbers = #tpu.dot_dimension_numbers<[1], [0], [0], [1], [0, 0, 1, 1], [], []>} : vector<256x4xf32>, vector<4x4xf32>, vector<256x4xf32> -> vector<256x4xf32>
    %104 = arith.addf %100, %103 : vector<256x4xf32>
    %105 = vector.broadcast %7 : vector<1x4xf32> to vector<256x4xf32>
    %106 = arith.addf %104, %105 : vector<256x4xf32>
    %107 = tpu.concatenate %87, %106 in 1 : vector<256x4xf32>, vector<256x4xf32> -> vector<256x8xf32>
    %108 = vector.shape_cast %107 : vector<256x8xf32> to vector<16x16x8xf32>
    %c0_70 = arith.constant 0 : index
    %c0_71 = arith.constant 0 : index
    %c1_72 = arith.constant 1 : index
    %c0_73 = arith.constant 0 : index
    %c0_74 = arith.constant 0 : index
    %109 = vector.load %arg7[%c0_70, %c0_71, %c1_72, %c0_73, %c0_74] : memref<1x16x2x16x8xf32, #tpu.memory_space<vmem>>, vector<1x16x1x16x8xf32>
    %110 = vector.shape_cast %109 : vector<1x16x1x16x8xf32> to vector<16x16x8xf32>
    %111 = vector.shape_cast %108 : vector<16x16x8xf32> to vector<1x16x1x16x8xf32>
    tpu.vector_store %arg7[%c0_70, %c0_71, %c1_72, %c0_73, %c0_74], %111 {strides = array<i32>} : memref<1x16x2x16x8xf32, #tpu.memory_space<vmem>>, vector<1x16x1x16x8xf32>,
    return
  }
  func.func @transform_0(%arg0: i32, %arg1: i32) -> (i32, i32, i32, i32) {
    %c0_i32 = arith.constant 0 : i32
    %c0_i32_0 = arith.constant 0 : i32
    %c0_i32_1 = arith.constant 0 : i32
    return %arg0, %arg1, %c0_i32, %c0_i32_0 : i32, i32, i32, i32
  }
  func.func @transform_1(%arg0: i32, %arg1: i32) -> (i32, i32, i32, i32) {
    %c1_i32 = arith.constant 1 : i32
    %0 = arith.addi %arg1, %c1_i32 : i32
    %c16_i32 = arith.constant 16 : i32
    %1 = arith.muli %0, %c16_i32 : i32
    %c0_i32 = arith.constant 0 : i32
    %c0_i32_0 = arith.constant 0 : i32
    %c0_i32_1 = arith.constant 0 : i32
    return %arg0, %1, %c0_i32, %c0_i32_0 : i32, i32, i32, i32
  }
  func.func @transform_2(%arg0: i32, %arg1: i32) -> (i32, i32, i32, i32) {
    %c1_i32 = arith.constant 1 : i32
    %0 = arith.addi %arg1, %c1_i32 : i32
    %c16_i32 = arith.constant 16 : i32
    %1 = arith.muli %0, %c16_i32 : i32
    %c1_i32_0 = arith.constant 1 : i32
    %2 = arith.addi %1, %c1_i32_0 : i32
    %c0_i32 = arith.constant 0 : i32
    %c0_i32_1 = arith.constant 0 : i32
    %c0_i32_2 = arith.constant 0 : i32
    return %arg0, %2, %c0_i32, %c0_i32_1 : i32, i32, i32, i32
  }
  func.func @transform_3(%arg0: i32, %arg1: i32) -> (i32, i32, i32) {
    %c0_i32 = arith.constant 0 : i32
    %c0_i32_0 = arith.constant 0 : i32
    %c0_i32_1 = arith.constant 0 : i32
    %c0_i32_2 = arith.constant 0 : i32
    return %c0_i32, %c0_i32_0, %c0_i32_1 : i32, i32, i32
  }
  func.func @transform_4(%arg0: i32, %arg1: i32) -> (i32, i32) {
    %c0_i32 = arith.constant 0 : i32
    %c0_i32_0 = arith.constant 0 : i32
    %c0_i32_1 = arith.constant 0 : i32
    return %c0_i32, %c0_i32_0 : i32, i32
  }
  func.func @transform_5(%arg0: i32, %arg1: i32) -> (i32, i32, i32, i32, i32) {
    %c0_i32 = arith.constant 0 : i32
    %c0_i32_0 = arith.constant 0 : i32
    %c0_i32_1 = arith.constant 0 : i32
    %c0_i32_2 = arith.constant 0 : i32
    return %arg0, %arg1, %c0_i32, %c0_i32_0, %c0_i32_1 : i32, i32, i32, i32, i32
  }
}

</mosaic_0001>

<llo_original>
// kernel: tpu_custom_call.1
$region0: #{tpu_custom_call.1}
  #allocation0 [shape = 'u32[]', space=smem, size = 0x4, offset = 0x4, fixed_abs, tag = 'smem constant byte address 0x4 - core index']
  #allocation1 [shape = 'u32[72,128]{1,0:T(1,128)}', space=vmem, size = 0x9000, scoped, tag = 'internal scratch']
  %s0 = inlined_call_operand.vmem [shape: f32[2,18,18,4], index: 0, kind: input, shape index: {}]
  %s1 = inlined_call_operand.vmem [shape: f32[2,18,18,4], index: 1, kind: input, shape index: {}]
  %s2 = inlined_call_operand.vmem [shape: f32[2,18,18,4], index: 2, kind: input, shape index: {}]
  %s3 = inlined_call_operand.vmem [shape: f32[16,4,4], index: 3, kind: input, shape index: {}]
  %s4 = inlined_call_operand.vmem [shape: f32[1,4], index: 4, kind: input, shape index: {}]
  %s5 = inlined_call_operand.vmem [shape: f32[2,16,2,16,8], index: 5, kind: output, shape index: {}]
  %s6 = sld [smem:[#allocation0]]
  $region53: #{tpu_custom_call.1} parent=0
    _
  %s8 = ssub.s32 1, %s6
  %s9 = scalar_select 0, %s8, %s6
  loop: start=0, step=1, limit=4
  $region2: #{tpu_custom_call.1} parent=0 // loop_pre_header
    _
  $region3: #{tpu_custom_call.1} parent=0 // loop_header
    %s11 = sphi 0, %s15
    %p12 = scmp.ge.s32.totalorder %s11, 4
    %s18 = sphi 0, %s30
    %s19 = sphi 0, %s26
    %s20 = sphi 0, %s18
    %s21 = sphi 0, %s19
    %s22 = sphi 0, %s20
    %s23 = sphi 0, %s21
    %s35 = sphi 0, %s37
    %s38 = sphi 0, %s35
    %s39 = sphi 0, %s38
    %s55 = sphi 0, %s39
    %s67 = sphi 0, %s69
    %s70 = sphi 0, %s67
    %s71 = sphi 0, %s70
    %s87 = sphi 0, %s71
    %s101 = sphi 0, %s103
    %s104 = sphi 0, %s101
    %s105 = sphi 0, %s104
    %s121 = sphi 0, %s105
    %s125 = sphi 0, %s125
    %s127 = sphi 0, %s125
    %s128 = sphi 0, %s127
    %s142 = sphi 0, %s128
    %s146 = sphi 0, %s146
    %s148 = sphi 0, %s146
    %s149 = sphi 0, %s148
    %s163 = sphi 0, %s149
    %s171 = sphi 0, %s173
    %s174 = sphi 0, %s171
    %s175 = sphi 0, %s174
    %s191 = sphi 0, %s175
  $region4: #{tpu_custom_call.1} parent=0 // loop_header_branch
    %14 = sbr.rel (%p12) target = $region8
  $region5: #{tpu_custom_call.1} parent=0 // loop_body
    %s16 = ssub.s32 %s11, 1
    %s17 = ssub.s32 %s11, 2
    %s24 = sadd.s32 1, %s19
    %p25 = scmp.ge.s32.totalorder %s24, 1
    %s26 = scalar_select %p25, 0, %s24
    %s27 = sadd.s32 1, %s18
    %s28 = scalar_select %p25, %s27, %s18
    %p29 = scmp.ge.s32.totalorder %s28, 2
    %s30 = scalar_select %p29, 0, %s28
    %s31 = ssub.s32 %s18, %s30
    %s32 = ssub.s32 %s19, %s26
    %s33 = sor.u32 %s31, %s32
    %p34 = scmp.eq.s32.totalorder %s33, 0
    %s36 = sadd.s32 %s35, 1
    %s37 = scalar_select %p34, %s35, %s36
    %p40 = pneg %p34
    %p41 = scmp.eq.s32.totalorder %s11, 1
    %p42 = por %p40, %p41
    %p43 = scmp.ne.s32.totalorder %s35, %s38
    %p44 = scmp.eq.s32.totalorder %s11, 0
    %p45 = por %p43, %p44
    %p46 = scmp.ne.s32.totalorder %s35, %s38
    %p47 = scmp.eq.s32.totalorder %s16, 1
    %p48 = por %p46, %p47
    %p49 = scmp.ne.s32.totalorder %s38, %s39
    %p50 = scmp.eq.s32.totalorder %s16, 0
    %p51 = por %p49, %p50
    %p52 = scmp.ne.s32.totalorder %s38, %s39
    %p53 = scmp.eq.s32.totalorder %s17, 1
    %p54 = por %p52, %p53
    %p56 = scmp.ne.s32.totalorder %s39, %s55
    %p57 = scmp.eq.s32.totalorder %s17, 0
    %p58 = por %p56, %p57
    %s59 = sadd.s32 %s19, 1
    %s60 = smul.u32 %s59, 16
    %s61 = sadd.s32 %s26, 1
    %s62 = smul.u32 %s61, 16
    %s63 = ssub.s32 %s18, %s30
    %s64 = ssub.s32 %s60, %s62
    %s65 = sor.u32 %s63, %s64
    %p66 = scmp.eq.s32.totalorder %s65, 0
    %s68 = sadd.s32 %s67, 1
    %s69 = scalar_select %p66, %s67, %s68
    %p72 = pneg %p66
    %p73 = scmp.eq.s32.totalorder %s11, 1
    %p74 = por %p72, %p73
    %p75 = scmp.ne.s32.totalorder %s67, %s70
    %p76 = scmp.eq.s32.totalorder %s11, 0
    %p77 = por %p75, %p76
    %p78 = scmp.ne.s32.totalorder %s67, %s70
    %p79 = scmp.eq.s32.totalorder %s16, 1
    %p80 = por %p78, %p79
    %p81 = scmp.ne.s32.totalorder %s70, %s71
    %p82 = scmp.eq.s32.totalorder %s16, 0
    %p83 = por %p81, %p82
    %p84 = scmp.ne.s32.totalorder %s70, %s71
    %p85 = scmp.eq.s32.totalorder %s17, 1
    %p86 = por %p84, %p85
    %p88 = scmp.ne.s32.totalorder %s71, %s87
    %p89 = scmp.eq.s32.totalorder %s17, 0
    %p90 = por %p88, %p89
    %s91 = sadd.s32 %s19, 1
    %s92 = smul.u32 %s91, 16
    %s93 = sadd.s32 %s92, 1
    %s94 = sadd.s32 %s26, 1
    %s95 = smul.u32 %s94, 16
    %s96 = sadd.s32 %s95, 1
    %s97 = ssub.s32 %s18, %s30
    %s98 = ssub.s32 %s93, %s96
    %s99 = sor.u32 %s97, %s98
    %p100 = scmp.eq.s32.totalorder %s99, 0
    %s102 = sadd.s32 %s101, 1
    %s103 = scalar_select %p100, %s101, %s102
    %p106 = pneg %p100
    %p107 = scmp.eq.s32.totalorder %s11, 1
    %p108 = por %p106, %p107
    %p109 = scmp.ne.s32.totalorder %s101, %s104
    %p110 = scmp.eq.s32.totalorder %s11, 0
    %p111 = por %p109, %p110
    %p112 = scmp.ne.s32.totalorder %s101, %s104
    %p113 = scmp.eq.s32.totalorder %s16, 1
    %p114 = por %p112, %p113
    %p115 = scmp.ne.s32.totalorder %s104, %s105
    %p116 = scmp.eq.s32.totalorder %s16, 0
    %p117 = por %p115, %p116
    %p118 = scmp.ne.s32.totalorder %s104, %s105
    %p119 = scmp.eq.s32.totalorder %s17, 1
    %p120 = por %p118, %p119
    %p122 = scmp.ne.s32.totalorder %s105, %s121
    %p123 = scmp.eq.s32.totalorder %s17, 0
    %p124 = por %p122, %p123
    %s126 = sadd.s32 %s125, 1
    %p129 = scmp.eq.s32.totalorder %s11, 1
    %p130 = scmp.ne.s32.totalorder %s125, %s127
    %p131 = scmp.eq.s32.totalorder %s11, 0
    %p132 = por %p130, %p131
    %p133 = scmp.ne.s32.totalorder %s125, %s127
    %p134 = scmp.eq.s32.totalorder %s16, 1
    %p135 = por %p133, %p134
    %p136 = scmp.ne.s32.totalorder %s127, %s128
    %p137 = scmp.eq.s32.totalorder %s16, 0
    %p138 = por %p136, %p137
    %p139 = scmp.ne.s32.totalorder %s127, %s128
    %p140 = scmp.eq.s32.totalorder %s17, 1
    %p141 = por %p139, %p140
    %p143 = scmp.ne.s32.totalorder %s128, %s142
    %p144 = scmp.eq.s32.totalorder %s17, 0
    %p145 = por %p143, %p144
    %s147 = sadd.s32 %s146, 1
    %p150 = scmp.eq.s32.totalorder %s11, 1
    %p151 = scmp.ne.s32.totalorder %s146, %s148
    %p152 = scmp.eq.s32.totalorder %s11, 0
    %p153 = por %p151, %p152
    %p154 = scmp.ne.s32.totalorder %s146, %s148
    %p155 = scmp.eq.s32.totalorder %s16, 1
    %p156 = por %p154, %p155
    %p157 = scmp.ne.s32.totalorder %s148, %s149
    %p158 = scmp.eq.s32.totalorder %s16, 0
    %p159 = por %p157, %p158
    %p160 = scmp.ne.s32.totalorder %s148, %s149
    %p161 = scmp.eq.s32.totalorder %s17, 1
    %p162 = por %p160, %p161
    %p164 = scmp.ne.s32.totalorder %s149, %s163
    %p165 = scmp.eq.s32.totalorder %s17, 0
    %p166 = por %p164, %p165
    %s167 = ssub.s32 %s18, %s30
    %s168 = ssub.s32 %s19, %s26
    %s169 = sor.u32 %s167, %s168
    %p170 = scmp.eq.s32.totalorder %s169, 0
    %s172 = sadd.s32 %s171, 1
    %s173 = scalar_select %p170, %s171, %s172
    %p176 = pneg %p170
    %p177 = scmp.eq.s32.totalorder %s11, 1
    %p178 = por %p176, %p177
    %p179 = scmp.ne.s32.totalorder %s171, %s174
    %p180 = scmp.eq.s32.totalorder %s11, 0
    %p181 = por %p179, %p180
    %p182 = scmp.ne.s32.totalorder %s171, %s174
    %p183 = scmp.eq.s32.totalorder %s16, 1
    %p184 = por %p182, %p183
    %p185 = scmp.ne.s32.totalorder %s174, %s175
    %p186 = scmp.eq.s32.totalorder %s16, 0
    %p187 = por %p185, %p186
    %p188 = scmp.ne.s32.totalorder %s174, %s175
    %p189 = scmp.eq.s32.totalorder %s17, 1
    %p190 = por %p188, %p189
    %p192 = scmp.ne.s32.totalorder %s175, %s191
    %p193 = scmp.eq.s32.totalorder %s17, 0
    %p194 = por %p192, %p193
    %p195 = scmp.le.s32.totalorder 1, %s11
    %p196 = scmp.lt.s32.totalorder %s11, 3
    %p197 = pnand %p195, %p196
    %p198 = pneg %p197
    // Predicated region
    $region9: #{tpu_custom_call.1} parent=5 // pred_check
      _
    $region10: #{tpu_custom_call.1} parent=5 // pred_check_branch
      %200 = sbr.rel (%p197) target = $region12
    $region11: #{tpu_custom_call.1} parent=5 // pred_region
      %s201 = ssub.s32 %s11, 1
      // Predicated region
      $region13: #{tpu_custom_call.1} parent=11 // pred_check
        %p202 = pneg %p138
      $region14: #{tpu_custom_call.1} parent=11 // pred_check_branch
        %204 = sbr.rel (%p202) target = $region16
      $region15: #{tpu_custom_call.1} parent=11 // pred_region
        _
      $region16: #{tpu_custom_call.1} parent=11 // pred_fallthru
        _
      // Predicated region
      $region17: #{tpu_custom_call.1} parent=11 // pred_check
        %p205 = pneg %p159
      $region18: #{tpu_custom_call.1} parent=11 // pred_check_branch
        %207 = sbr.rel (%p205) target = $region20
      $region19: #{tpu_custom_call.1} parent=11 // pred_region
        _
      $region20: #{tpu_custom_call.1} parent=11 // pred_fallthru
        _
    $region12: #{tpu_custom_call.1} parent=5 // pred_fallthru
      _
    %p208 = scmp.lt.s32.totalorder %s11, 2
    // Predicated region
    $region21: #{tpu_custom_call.1} parent=5 // pred_check
      %p209 = pneg %p208
    $region22: #{tpu_custom_call.1} parent=5 // pred_check_branch
      %211 = sbr.rel (%p209) target = $region24
    $region23: #{tpu_custom_call.1} parent=5 // pred_region
      // Predicated region
      $region25: #{tpu_custom_call.1} parent=23 // pred_check
        %p212 = pneg %p45
      $region26: #{tpu_custom_call.1} parent=23 // pred_check_branch
        %214 = sbr.rel (%p212) target = $region28
      $region27: #{tpu_custom_call.1} parent=23 // pred_region
        %s215 = smul.u32 16, %s19
        %s216 = ssub.s32 18, %s215
        %p217 = scmp.lt.s32.totalorder %s216, 16
        %s218 = scalar_select %p217, %s216, 16
        %s219 = smul.u32 8, %s218
        %s220 = smul.u32 %s219, 3
        %p221 = scmp.lt.s32.totalorder %s18, 1
        %s222 = scalar_select %p221, %s18, 1
        %p223 = scmp.lt.s32.totalorder %s215, 17
        %s224 = scalar_select %p223, %s215, 17
        %s225 = smul.addr %s224, 3
        %s226 = smul.addr %s222, 54
        %s227 = sadd.s32 %s225, %s226
        %s228 = smul.addr %s227, 8
        %s229 = scalar_lea.vmem %s0, %s228
        %s230 = smul.u32 16, %s19
        %s231 = ssub.s32 18, %s230
        %p232 = scmp.lt.s32.totalorder %s231, 16
        %s233 = scalar_select %p232, %s231, 16
        %s234 = smul.u32 8, %s233
        %s235 = smul.u32 %s234, 3
      $region28: #{tpu_custom_call.1} parent=23 // pred_fallthru
        _
      // Predicated region
      $region29: #{tpu_custom_call.1} parent=23 // pred_check
        %p236 = pneg %p77
      $region30: #{tpu_custom_call.1} parent=23 // pred_check_branch
        %238 = sbr.rel (%p236) target = $region32
      $region31: #{tpu_custom_call.1} parent=23 // pred_region
        %s239 = sadd.s32 %s19, 1
        %s240 = smul.u32 %s239, 16
        %p241 = scmp.lt.s32.totalorder %s18, 1
        %s242 = scalar_select %p241, %s18, 1
        %p243 = scmp.lt.s32.totalorder %s240, 17
        %s244 = scalar_select %p243, %s240, 17
        %s245 = smul.addr %s244, 3
        %s246 = smul.addr %s242, 54
        %s247 = sadd.s32 %s245, %s246
        %s248 = smul.addr %s247, 8
        %s249 = scalar_lea.vmem %s1, %s248
        %s250 = sadd.s32 %s19, 1
        %s251 = smul.u32 %s250, 16
      $region32: #{tpu_custom_call.1} parent=23 // pred_fallthru
        _
      // Predicated region
      $region33: #{tpu_custom_call.1} parent=23 // pred_check
        %p252 = pneg %p111
      $region34: #{tpu_custom_call.1} parent=23 // pred_check_branch
        %254 = sbr.rel (%p252) target = $region36
      $region35: #{tpu_custom_call.1} parent=23 // pred_region
        %s255 = sadd.s32 %s19, 1
        %s256 = smul.u32 %s255, 16
        %s257 = sadd.s32 %s256, 1
        %p258 = scmp.lt.s32.totalorder %s18, 1
        %s259 = scalar_select %p258, %s18, 1
        %p260 = scmp.lt.s32.totalorder %s257, 17
        %s261 = scalar_select %p260, %s257, 17
        %s262 = smul.addr %s261, 3
        %s263 = smul.addr %s259, 54
        %s264 = sadd.s32 %s262, %s263
        %s265 = smul.addr %s264, 8
        %s266 = scalar_lea.vmem %s2, %s265
        %s267 = sadd.s32 %s19, 1
        %s268 = smul.u32 %s267, 16
        %s269 = sadd.s32 %s268, 1
      $region36: #{tpu_custom_call.1} parent=23 // pred_fallthru
        _
    $region24: #{tpu_custom_call.1} parent=5 // pred_fallthru
      _
    %p270 = scmp.le.s32.totalorder 1, %s11
    %p271 = scmp.lt.s32.totalorder %s11, 3
    %p272 = pnand %p270, %p271
    %p273 = pneg %p272
    // Predicated region
    $region37: #{tpu_custom_call.1} parent=5 // pred_check
      _
    $region38: #{tpu_custom_call.1} parent=5 // pred_check_branch
      %275 = sbr.rel (%p272) target = $region40
    $region39: #{tpu_custom_call.1} parent=5 // pred_region
      %s276 = ssub.s32 %s11, 1
      %s277 = smul.u32 16, %s21
      %s278 = ssub.s32 18, %s277
      %p279 = scmp.lt.s32.totalorder %s278, 16
      %s280 = scalar_select %p279, %s278, 16
      %s281 = smul.u32 8, %s280
      %s282 = smul.u32 %s281, 3
      %p283 = scmp.lt.s32.totalorder %s20, 1
      %s284 = scalar_select %p283, %s20, 1
      %p285 = scmp.lt.s32.totalorder %s277, 17
      %s286 = scalar_select %p285, %s277, 17
      %s287 = smul.addr %s286, 3
      %s288 = smul.addr %s284, 54
      %s289 = sadd.s32 %s287, %s288
      %s290 = smul.addr %s289, 8
      %s291 = scalar_lea.vmem %s0, %s290
      %p292 = pneg %p51
      %p293 = pneg %p48
      %s294 = sadd.s32 %s21, 1
      %s295 = smul.u32 %s294, 16
      %p296 = scmp.lt.s32.totalorder %s20, 1
      %s297 = scalar_select %p296, %s20, 1
      %p298 = scmp.lt.s32.totalorder %s295, 17
      %s299 = scalar_select %p298, %s295, 17
      %s300 = smul.addr %s299, 3
      %s301 = smul.addr %s297, 54
      %s302 = sadd.s32 %s300, %s301
      %s303 = smul.addr %s302, 8
      %s304 = scalar_lea.vmem %s1, %s303
      %p305 = pneg %p83
      %p306 = pneg %p80
      %s307 = sadd.s32 %s21, 1
      %s308 = smul.u32 %s307, 16
      %s309 = sadd.s32 %s308, 1
      %p310 = scmp.lt.s32.totalorder %s20, 1
      %s311 = scalar_select %p310, %s20, 1
      %p312 = scmp.lt.s32.totalorder %s309, 17
      %s313 = scalar_select %p312, %s309, 17
      %s314 = smul.addr %s313, 3
      %s315 = smul.addr %s311, 54
      %s316 = sadd.s32 %s314, %s315
      %s317 = smul.addr %s316, 8
      %s318 = scalar_lea.vmem %s2, %s317
      %p319 = pneg %p117
      %p320 = pneg %p114
      %p321 = pneg %p138
      %p322 = pneg %p135
      %p323 = pneg %p159
      %p324 = pneg %p156
      %p325 = pneg %p187
      %p326 = pneg %p184
      %s327 = smul.u32 16, %s21
      %p328 = scmp.lt.s32.totalorder %s20, 1
      %s329 = scalar_select %p328, %s20, 1
      %p330 = scmp.lt.s32.totalorder %s327, 15
      %s331 = scalar_select %p330, %s327, 15
      %s332 = smul.addr %s331, 4
      %s333 = smul.addr %s329, 64
      %s334 = sadd.s32 %s332, %s333
      %s335 = smul.addr %s334, 8
      %s336 = scalar_lea.vmem %s5, %s335
      %s337 = smul.u32 16, %s21
      %s338 = ssub.s32 18, %s337
      %p339 = scmp.lt.s32.totalorder %s338, 16
      %s340 = scalar_select %p339, %s338, 16
      %s341 = smul.u32 8, %s340
      %s342 = smul.u32 %s341, 3
      %p343 = scmp.lt.s32.totalorder %s20, 1
      %s344 = scalar_select %p343, %s20, 1
      %p345 = scmp.lt.s32.totalorder %s337, 17
      %s346 = scalar_select %p345, %s337, 17
      %s347 = smul.addr %s346, 3
      %s348 = smul.addr %s344, 54
      %s349 = sadd.s32 %s347, %s348
      %s350 = smul.addr %s349, 8
      %s351 = scalar_lea.vmem %s0, %s350
      %s352 = smul.u32 16, %s21
      %s353 = ssub.s32 18, %s352
      %p354 = scmp.lt.s32.totalorder %s353, 16
      %s355 = scalar_select %p354, %s353, 16
      %s356 = smul.u32 8, %s355
      %s357 = smul.u32 %s356, 3
      %s358 = sadd.s32 %s21, 1
      %s359 = smul.u32 %s358, 16
      %p360 = scmp.lt.s32.totalorder %s20, 1
      %s361 = scalar_select %p360, %s20, 1
      %p362 = scmp.lt.s32.totalorder %s359, 17
      %s363 = scalar_select %p362, %s359, 17
      %s364 = smul.addr %s363, 3
      %s365 = smul.addr %s361, 54
      %s366 = sadd.s32 %s364, %s365
      %s367 = smul.addr %s366, 8
      %s368 = scalar_lea.vmem %s1, %s367
      %s369 = sadd.s32 %s21, 1
      %s370 = smul.u32 %s369, 16
      %s371 = sadd.s32 %s21, 1
      %s372 = smul.u32 %s371, 16
      %s373 = sadd.s32 %s372, 1
      %p374 = scmp.lt.s32.totalorder %s20, 1
      %s375 = scalar_select %p374, %s20, 1
      %p376 = scmp.lt.s32.totalorder %s373, 17
      %s377 = scalar_select %p376, %s373, 17
      %s378 = smul.addr %s377, 3
      %s379 = smul.addr %s375, 54
      %s380 = sadd.s32 %s378, %s379
      %s381 = smul.addr %s380, 8
      %s382 = scalar_lea.vmem %s2, %s381
      %s383 = sadd.s32 %s21, 1
      %s384 = smul.u32 %s383, 16
      %s385 = sadd.s32 %s384, 1
      %s386 = smul.u32 16, %s21
      %p387 = scmp.lt.s32.totalorder %s20, 1
      %s388 = scalar_select %p387, %s20, 1
      %p389 = scmp.lt.s32.totalorder %s386, 15
      %s390 = scalar_select %p389, %s386, 15
      %s391 = smul.addr %s390, 4
      %s392 = smul.addr %s388, 64
      %s393 = sadd.s32 %s391, %s392
      %s394 = smul.addr %s393, 8
      %s395 = scalar_lea.vmem %s5, %s394
      %s396 = smul.u32 16, %s21
      %v397 = vld [vmem:[%s351] sm:$0xff]
      %v398 = vld [vmem:[%s351 + $0x8] sm:$0xff]
      %v399 = vld [vmem:[%s351 + $0x10] sm:$0x3]
      %v400 = vld [vmem:[%s351 + $0x18] sm:$0xff]
      %v401 = vld [vmem:[%s351 + $0x20] sm:$0xff]
      %v402 = vld [vmem:[%s351 + $0x28] sm:$0x3]
      %v403 = vld [vmem:[%s351 + $0x30] sm:$0xff]
      %v404 = vld [vmem:[%s351 + $0x38] sm:$0xff]
      %v405 = vld [vmem:[%s351 + $0x40] sm:$0x3]
      %v406 = vld [vmem:[%s351 + $0x48] sm:$0xff]
      %v407 = vld [vmem:[%s351 + $0x50] sm:$0xff]
      %v408 = vld [vmem:[%s351 + $0x58] sm:$0x3]
      %v409 = vld [vmem:[%s351 + $0x60] sm:$0xff]
      %v410 = vld [vmem:[%s351 + $0x68] sm:$0xff]
      %v411 = vld [vmem:[%s351 + $0x70] sm:$0x3]
      %v412 = vld [vmem:[%s351 + $0x78] sm:$0xff]
      %v413 = vld [vmem:[%s351 + $0x80] sm:$0xff]
      %v414 = vld [vmem:[%s351 + $0x88] sm:$0x3]
      %v415 = vld [vmem:[%s351 + $0x90] sm:$0xff]
      %v416 = vld [vmem:[%s351 + $0x98] sm:$0xff]
      %v417 = vld [vmem:[%s351 + $0xa0] sm:$0x3]
      %v418 = vld [vmem:[%s351 + $0xa8] sm:$0xff]
      %v419 = vld [vmem:[%s351 + $0xb0] sm:$0xff]
      %v420 = vld [vmem:[%s351 + $0xb8] sm:$0x3]
      %v421 = vld [vmem:[%s351 + $0xc0] sm:$0xff]
      %v422 = vld [vmem:[%s351 + $0xc8] sm:$0xff]
      %v423 = vld [vmem:[%s351 + $0xd0] sm:$0x3]
      %v424 = vld [vmem:[%s351 + $0xd8] sm:$0xff]
      %v425 = vld [vmem:[%s351 + $0xe0] sm:$0xff]
      %v426 = vld [vmem:[%s351 + $0xe8] sm:$0x3]
      %v427 = vld [vmem:[%s351 + $0xf0] sm:$0xff]
      %v428 = vld [vmem:[%s351 + $0xf8] sm:$0xff]
      %v429 = vld [vmem:[%s351 + $0x100] sm:$0x3]
      %v430 = vld [vmem:[%s351 + $0x108] sm:$0xff]
      %v431 = vld [vmem:[%s351 + $0x110] sm:$0xff]
      %v432 = vld [vmem:[%s351 + $0x118] sm:$0x3]
      %v433 = vld [vmem:[%s351 + $0x120] sm:$0xff]
      %v434 = vld [vmem:[%s351 + $0x128] sm:$0xff]
      %v435 = vld [vmem:[%s351 + $0x130] sm:$0x3]
      %v436 = vld [vmem:[%s351 + $0x138] sm:$0xff]
      %v437 = vld [vmem:[%s351 + $0x140] sm:$0xff]
      %v438 = vld [vmem:[%s351 + $0x148] sm:$0x3]
      %v439 = vld [vmem:[%s351 + $0x150] sm:$0xff]
      %v440 = vld [vmem:[%s351 + $0x158] sm:$0xff]
      %v441 = vld [vmem:[%s351 + $0x160] sm:$0x3]
      %v442 = vld [vmem:[%s351 + $0x168] sm:$0xff]
      %v443 = vld [vmem:[%s351 + $0x170] sm:$0xff]
      %v444 = vld [vmem:[%s351 + $0x178] sm:$0x3]
      %v445 = vld [vmem:[%s368] sm:$0xff]
      %v446 = vld [vmem:[%s368 + $0x8] sm:$0xff]
      %v447 = vld [vmem:[%s368 + $0x10] sm:$0x3]
      %v448 = vld [vmem:[%s382] sm:$0xff]
      %v449 = vld [vmem:[%s382 + $0x8] sm:$0xff]
      %v450 = vld [vmem:[%s382 + $0x10] sm:$0x3]
      %v451 = vld [vmem:[%s4] sm:$0x1]
      %vm500 = vcmask 1046528
      %v501 = vrot.slane %v397, 1
      %v502 = vrot.slane %v398, 1
      %v503 = vsel %vm500, %v501, %v502
      %v504 = vrot.slane %v399, 1
      %v505 = vsel %vm500, %v502, %v504
      %v506 = vrot.slane %v400, 1
      %v507 = vrot.slane %v401, 1
      %v508 = vsel %vm500, %v506, %v507
      %v509 = vrot.slane %v402, 1
      %v510 = vsel %vm500, %v507, %v509
      %v511 = vrot.slane %v403, 1
      %v512 = vrot.slane %v404, 1
      %v513 = vsel %vm500, %v511, %v512
      %v514 = vrot.slane %v405, 1
      %v515 = vsel %vm500, %v512, %v514
      %v516 = vrot.slane %v406, 1
      %v517 = vrot.slane %v407, 1
      %v518 = vsel %vm500, %v516, %v517
      %v519 = vrot.slane %v408, 1
      %v520 = vsel %vm500, %v517, %v519
      %v521 = vrot.slane %v409, 1
      %v522 = vrot.slane %v410, 1
      %v523 = vsel %vm500, %v521, %v522
      %v524 = vrot.slane %v411, 1
      %v525 = vsel %vm500, %v522, %v524
      %v526 = vrot.slane %v412, 1
      %v527 = vrot.slane %v413, 1
      %v528 = vsel %vm500, %v526, %v527
      %v529 = vrot.slane %v414, 1
      %v530 = vsel %vm500, %v527, %v529
      %v531 = vrot.slane %v415, 1
      %v532 = vrot.slane %v416, 1
      %v533 = vsel %vm500, %v531, %v532
      %v534 = vrot.slane %v417, 1
      %v535 = vsel %vm500, %v532, %v534
      %v536 = vrot.slane %v418, 1
      %v537 = vrot.slane %v419, 1
      %v538 = vsel %vm500, %v536, %v537
      %v539 = vrot.slane %v420, 1
      %v540 = vsel %vm500, %v537, %v539
      %v541 = vrot.slane %v421, 1
      %v542 = vrot.slane %v422, 1
      %v543 = vsel %vm500, %v541, %v542
      %v544 = vrot.slane %v423, 1
      %v545 = vsel %vm500, %v542, %v544
      %v546 = vrot.slane %v424, 1
      %v547 = vrot.slane %v425, 1
      %v548 = vsel %vm500, %v546, %v547
      %v549 = vrot.slane %v426, 1
      %v550 = vsel %vm500, %v547, %v549
      %v551 = vrot.slane %v427, 1
      %v552 = vrot.slane %v428, 1
      %v553 = vsel %vm500, %v551, %v552
      %v554 = vrot.slane %v429, 1
      %v555 = vsel %vm500, %v552, %v554
      %v556 = vrot.slane %v430, 1
      %v557 = vrot.slane %v431, 1
      %v558 = vsel %vm500, %v556, %v557
      %v559 = vrot.slane %v432, 1
      %v560 = vsel %vm500, %v557, %v559
      %v561 = vrot.slane %v433, 1
      %v562 = vrot.slane %v434, 1
      %v563 = vsel %vm500, %v561, %v562
      %v564 = vrot.slane %v435, 1
      %v565 = vsel %vm500, %v562, %v564
      %v566 = vrot.slane %v436, 1
      %v567 = vrot.slane %v437, 1
      %v568 = vsel %vm500, %v566, %v567
      %v569 = vrot.slane %v438, 1
      %v570 = vsel %vm500, %v567, %v569
      %v571 = vrot.slane %v439, 1
      %v572 = vrot.slane %v440, 1
      %v573 = vsel %vm500, %v571, %v572
      %v574 = vrot.slane %v441, 1
      %v575 = vsel %vm500, %v572, %v574
      %v576 = vrot.slane %v442, 1
      %v577 = vrot.slane %v443, 1
      %v578 = vsel %vm500, %v576, %v577
      %v579 = vrot.slane %v444, 1
      %v580 = vsel %vm500, %v577, %v579
      %vm581 = vcmask 1045504
      %v582 = vrot.slane %v397, 2
      %v583 = vrot.slane %v398, 2
      %v584 = vsel %vm581, %v582, %v583
      %v585 = vrot.slane %v399, 2
      %v586 = vsel %vm581, %v583, %v585
      %v587 = vrot.slane %v400, 2
      %v588 = vrot.slane %v401, 2
      %v589 = vsel %vm581, %v587, %v588
      %v590 = vrot.slane %v402, 2
      %v591 = vsel %vm581, %v588, %v590
      %v592 = vrot.slane %v403, 2
      %v593 = vrot.slane %v404, 2
      %v594 = vsel %vm581, %v592, %v593
      %v595 = vrot.slane %v405, 2
      %v596 = vsel %vm581, %v593, %v595
      %v597 = vrot.slane %v406, 2
      %v598 = vrot.slane %v407, 2
      %v599 = vsel %vm581, %v597, %v598
      %v600 = vrot.slane %v408, 2
      %v601 = vsel %vm581, %v598, %v600
      %v602 = vrot.slane %v409, 2
      %v603 = vrot.slane %v410, 2
      %v604 = vsel %vm581, %v602, %v603
      %v605 = vrot.slane %v411, 2
      %v606 = vsel %vm581, %v603, %v605
      %v607 = vrot.slane %v412, 2
      %v608 = vrot.slane %v413, 2
      %v609 = vsel %vm581, %v607, %v608
      %v610 = vrot.slane %v414, 2
      %v611 = vsel %vm581, %v608, %v610
      %v612 = vrot.slane %v415, 2
      %v613 = vrot.slane %v416, 2
      %v614 = vsel %vm581, %v612, %v613
      %v615 = vrot.slane %v417, 2
      %v616 = vsel %vm581, %v613, %v615
      %v617 = vrot.slane %v418, 2
      %v618 = vrot.slane %v419, 2
      %v619 = vsel %vm581, %v617, %v618
      %v620 = vrot.slane %v420, 2
      %v621 = vsel %vm581, %v618, %v620
      %v622 = vrot.slane %v421, 2
      %v623 = vrot.slane %v422, 2
      %v624 = vsel %vm581, %v622, %v623
      %v625 = vrot.slane %v423, 2
      %v626 = vsel %vm581, %v623, %v625
      %v627 = vrot.slane %v424, 2
      %v628 = vrot.slane %v425, 2
      %v629 = vsel %vm581, %v627, %v628
      %v630 = vrot.slane %v426, 2
      %v631 = vsel %vm581, %v628, %v630
      %v632 = vrot.slane %v427, 2
      %v633 = vrot.slane %v428, 2
      %v634 = vsel %vm581, %v632, %v633
      %v635 = vrot.slane %v429, 2
      %v636 = vsel %vm581, %v633, %v635
      %v637 = vrot.slane %v430, 2
      %v638 = vrot.slane %v431, 2
      %v639 = vsel %vm581, %v637, %v638
      %v640 = vrot.slane %v432, 2
      %v641 = vsel %vm581, %v638, %v640
      %v642 = vrot.slane %v433, 2
      %v643 = vrot.slane %v434, 2
      %v644 = vsel %vm581, %v642, %v643
      %v645 = vrot.slane %v435, 2
      %v646 = vsel %vm581, %v643, %v645
      %v647 = vrot.slane %v436, 2
      %v648 = vrot.slane %v437, 2
      %v649 = vsel %vm581, %v647, %v648
      %v650 = vrot.slane %v438, 2
      %v651 = vsel %vm581, %v648, %v650
      %v652 = vrot.slane %v439, 2
      %v653 = vrot.slane %v440, 2
      %v654 = vsel %vm581, %v652, %v653
      %v655 = vrot.slane %v441, 2
      %v656 = vsel %vm581, %v653, %v655
      %v657 = vrot.slane %v442, 2
      %v658 = vrot.slane %v443, 2
      %v659 = vsel %vm581, %v657, %v658
      %v660 = vrot.slane %v444, 2
      %v661 = vsel %vm581, %v658, %v660
      %v665 = vrot.slane %v445, 1
      %v666 = vrot.slane %v446, 1
      %v667 = vsel %vm500, %v665, %v666
      %v668 = vrot.slane %v447, 1
      %v669 = vsel %vm500, %v666, %v668
      %v670 = vrot.slane %v445, 2
      %v671 = vrot.slane %v446, 2
      %v672 = vsel %vm581, %v670, %v671
      %v673 = vrot.slane %v447, 2
      %v674 = vsel %vm581, %v671, %v673
      %v678 = vrot.slane %v448, 1
      %v679 = vrot.slane %v449, 1
      %v680 = vsel %vm500, %v678, %v679
      %v681 = vrot.slane %v450, 1
      %v682 = vsel %vm500, %v679, %v681
      %v683 = vrot.slane %v448, 2
      %v684 = vrot.slane %v449, 2
      %v685 = vsel %vm581, %v683, %v684
      %v686 = vrot.slane %v450, 2
      %v687 = vsel %vm581, %v684, %v686
      %v688 = vld [vmem:[%s3] sm:$0xf]
      %s689 = scalar_lea.vmem %s3, 4
      %v690 = vld [vmem:[%s689] sm:$0xf]
      %vm691 = vcmask 31744
      %v692 = vsel %vm691, %v503, 0
      %v694 = vsel %vm691, %v505, 0
      %v696 = vsel %vm691, %v508, 0
      %v698 = vsel %vm691, %v510, 0
      %v700 = vsel %vm691, %v513, 0
      %v702 = vsel %vm691, %v515, 0
      %v704 = vsel %vm691, %v518, 0
      %v706 = vsel %vm691, %v520, 0
      %v708 = vsel %vm691, %v523, 0
      %v710 = vsel %vm691, %v525, 0
      %v712 = vsel %vm691, %v528, 0
      %v714 = vsel %vm691, %v530, 0
      %v716 = vsel %vm691, %v533, 0
      %v718 = vsel %vm691, %v535, 0
      %v720 = vsel %vm691, %v538, 0
      %v722 = vsel %vm691, %v540, 0
      %v724 = vsel %vm691, %v543, 0
      %v726 = vsel %vm691, %v545, 0
      %v728 = vsel %vm691, %v548, 0
      %v730 = vsel %vm691, %v550, 0
      %v732 = vsel %vm691, %v553, 0
      %v734 = vsel %vm691, %v555, 0
      %v736 = vsel %vm691, %v558, 0
      %v738 = vsel %vm691, %v560, 0
      %v740 = vsel %vm691, %v563, 0
      %v742 = vsel %vm691, %v565, 0
      %v744 = vsel %vm691, %v568, 0
      %v746 = vsel %vm691, %v570, 0
      %v748 = vsel %vm691, %v573, 0
      %v750 = vsel %vm691, %v575, 0
      %v752 = vsel %vm691, %v578, 0
      %v754 = vsel %vm691, %v580, 0
      %vm756 = vcmask 1043456
      %v758 = vsel %vm756, %v690, 0
      %760 = vmatpush.msra.mxu0 0.0
      %761 = vmatpush.msra.mxu0 0.0
      %762 = vmatpush.msra.mxu0 0.0
      %763 = vmatpush.msra.mxu0 0.0
      %764 = vmatpush.msra.mxu0 0.0
      %765 = vmatpush.msra.mxu0 0.0
      %766 = vmatpush.msra.mxu0 0.0
      %767 = vmatpush.msra.mxu0 0.0
      %768 = vmatpush.msra.mxu0 0.0
      %769 = vmatpush.msra.mxu0 0.0
      %770 = vmatpush.msra.mxu0 0.0
      %771 = vmatpush.msra.mxu0 0.0
      %772 = vmatpush.msra.mxu0 0.0
      %773 = vmatpush.msra.mxu0 0.0
      %774 = vmatpush.msra.mxu0 0.0
      %775 = vmatpush.msra.mxu0 %v758
      %776 = vmatmul.f32.gmra.mxu0 %v692
      %v777 = vpop.f32.mrf.mxu0
      %v778 = vadd.f32 0.0, %v777
      %779 = vmatmul.f32.gmra.mxu0 %v694
      %v780 = vpop.f32.mrf.mxu0
      %v781 = vadd.f32 0.0, %v780
      %782 = vmatmul.f32.gmra.mxu0 %v696
      %v783 = vpop.f32.mrf.mxu0
      %v784 = vadd.f32 0.0, %v783
      %785 = vmatmul.f32.gmra.mxu0 %v698
      %v786 = vpop.f32.mrf.mxu0
      %v787 = vadd.f32 0.0, %v786
      %788 = vmatmul.f32.gmra.mxu0 %v700
      %v789 = vpop.f32.mrf.mxu0
      %v790 = vadd.f32 0.0, %v789
      %791 = vmatmul.f32.gmra.mxu0 %v702
      %v792 = vpop.f32.mrf.mxu0
      %v793 = vadd.f32 0.0, %v792
      %794 = vmatmul.f32.gmra.mxu0 %v704
      %v795 = vpop.f32.mrf.mxu0
      %v796 = vadd.f32 0.0, %v795
      %797 = vmatmul.f32.gmra.mxu0 %v706
      %v798 = vpop.f32.mrf.mxu0
      %v799 = vadd.f32 0.0, %v798
      %800 = vmatmul.f32.gmra.mxu0 %v708
      %v801 = vpop.f32.mrf.mxu0
      %v802 = vadd.f32 0.0, %v801
      %803 = vmatmul.f32.gmra.mxu0 %v710
      %v804 = vpop.f32.mrf.mxu0
      %v805 = vadd.f32 0.0, %v804
      %806 = vmatmul.f32.gmra.mxu0 %v712
      %v807 = vpop.f32.mrf.mxu0
      %v808 = vadd.f32 0.0, %v807
      %809 = vmatmul.f32.gmra.mxu0 %v714
      %v810 = vpop.f32.mrf.mxu0
      %v811 = vadd.f32 0.0, %v810
      %812 = vmatmul.f32.gmra.mxu0 %v716
      %v813 = vpop.f32.mrf.mxu0
      %v814 = vadd.f32 0.0, %v813
      %815 = vmatmul.f32.gmra.mxu0 %v718
      %v816 = vpop.f32.mrf.mxu0
      %v817 = vadd.f32 0.0, %v816
      %818 = vmatmul.f32.gmra.mxu0 %v720
      %v819 = vpop.f32.mrf.mxu0
      %v820 = vadd.f32 0.0, %v819
      %821 = vmatmul.f32.gmra.mxu0 %v722
      %v822 = vpop.f32.mrf.mxu0
      %v823 = vadd.f32 0.0, %v822
      %824 = vmatmul.f32.gmra.mxu0 %v724
      %v825 = vpop.f32.mrf.mxu0
      %v826 = vadd.f32 0.0, %v825
      %827 = vmatmul.f32.gmra.mxu0 %v726
      %v828 = vpop.f32.mrf.mxu0
      %v829 = vadd.f32 0.0, %v828
      %830 = vmatmul.f32.gmra.mxu0 %v728
      %v831 = vpop.f32.mrf.mxu0
      %v832 = vadd.f32 0.0, %v831
      %833 = vmatmul.f32.gmra.mxu0 %v730
      %v834 = vpop.f32.mrf.mxu0
      %v835 = vadd.f32 0.0, %v834
      %836 = vmatmul.f32.gmra.mxu0 %v732
      %v837 = vpop.f32.mrf.mxu0
      %v838 = vadd.f32 0.0, %v837
      %839 = vmatmul.f32.gmra.mxu0 %v734
      %v840 = vpop.f32.mrf.mxu0
      %v841 = vadd.f32 0.0, %v840
      %842 = vmatmul.f32.gmra.mxu0 %v736
      %v843 = vpop.f32.mrf.mxu0
      %v844 = vadd.f32 0.0, %v843
      %845 = vmatmul.f32.gmra.mxu0 %v738
      %v846 = vpop.f32.mrf.mxu0
      %v847 = vadd.f32 0.0, %v846
      %848 = vmatmul.f32.gmra.mxu0 %v740
      %v849 = vpop.f32.mrf.mxu0
      %v850 = vadd.f32 0.0, %v849
      %851 = vmatmul.f32.gmra.mxu0 %v742
      %v852 = vpop.f32.mrf.mxu0
      %v853 = vadd.f32 0.0, %v852
      %854 = vmatmul.f32.gmra.mxu0 %v744
      %v855 = vpop.f32.mrf.mxu0
      %v856 = vadd.f32 0.0, %v855
      %857 = vmatmul.f32.gmra.mxu0 %v746
      %v858 = vpop.f32.mrf.mxu0
      %v859 = vadd.f32 0.0, %v858
      %860 = vmatmul.f32.gmra.mxu0 %v748
      %v861 = vpop.f32.mrf.mxu0
      %v862 = vadd.f32 0.0, %v861
      %863 = vmatmul.f32.gmra.mxu0 %v750
      %v864 = vpop.f32.mrf.mxu0
      %v865 = vadd.f32 0.0, %v864
      %866 = vmatmul.f32.gmra.mxu0 %v752
      %v867 = vpop.f32.mrf.mxu0
      %v868 = vadd.f32 0.0, %v867
      %869 = vmatmul.f32.gmra.mxu0 %v754
      %v870 = vpop.f32.mrf.mxu0
      %v871 = vadd.f32 0.0, %v870
      %872 = vdwg.mxu0
      %v873 = vsel %vm691, %v397, 0
      %v875 = vsel %vm691, %v398, 0
      %v877 = vsel %vm691, %v400, 0
      %v879 = vsel %vm691, %v401, 0
      %v881 = vsel %vm691, %v403, 0
      %v883 = vsel %vm691, %v404, 0
      %v885 = vsel %vm691, %v406, 0
      %v887 = vsel %vm691, %v407, 0
      %v889 = vsel %vm691, %v409, 0
      %v891 = vsel %vm691, %v410, 0
      %v893 = vsel %vm691, %v412, 0
      %v895 = vsel %vm691, %v413, 0
      %v897 = vsel %vm691, %v415, 0
      %v899 = vsel %vm691, %v416, 0
      %v901 = vsel %vm691, %v418, 0
      %v903 = vsel %vm691, %v419, 0
      %v905 = vsel %vm691, %v421, 0
      %v907 = vsel %vm691, %v422, 0
      %v909 = vsel %vm691, %v424, 0
      %v911 = vsel %vm691, %v425, 0
      %v913 = vsel %vm691, %v427, 0
      %v915 = vsel %vm691, %v428, 0
      %v917 = vsel %vm691, %v430, 0
      %v919 = vsel %vm691, %v431, 0
      %v921 = vsel %vm691, %v433, 0
      %v923 = vsel %vm691, %v434, 0
      %v925 = vsel %vm691, %v436, 0
      %v927 = vsel %vm691, %v437, 0
      %v929 = vsel %vm691, %v439, 0
      %v931 = vsel %vm691, %v440, 0
      %v933 = vsel %vm691, %v442, 0
      %v935 = vsel %vm691, %v443, 0
      %v938 = vsel %vm756, %v688, 0
      %940 = vmatpush.msra.mxu0 0.0
      %941 = vmatpush.msra.mxu0 0.0
      %942 = vmatpush.msra.mxu0 0.0
      %943 = vmatpush.msra.mxu0 0.0
      %944 = vmatpush.msra.mxu0 0.0
      %945 = vmatpush.msra.mxu0 0.0
      %946 = vmatpush.msra.mxu0 0.0
      %947 = vmatpush.msra.mxu0 0.0
      %948 = vmatpush.msra.mxu0 0.0
      %949 = vmatpush.msra.mxu0 0.0
      %950 = vmatpush.msra.mxu0 0.0
      %951 = vmatpush.msra.mxu0 0.0
      %952 = vmatpush.msra.mxu0 0.0
      %953 = vmatpush.msra.mxu0 0.0
      %954 = vmatpush.msra.mxu0 0.0
      %955 = vmatpush.msra.mxu0 %v938
      %956 = vmatmul.f32.gmra.mxu0 %v873
      %v957 = vpop.f32.mrf.mxu0
      %v958 = vadd.f32 %v778, %v957
      %959 = vmatmul.f32.gmra.mxu0 %v875
      %v960 = vpop.f32.mrf.mxu0
      %v961 = vadd.f32 %v781, %v960
      %962 = vmatmul.f32.gmra.mxu0 %v877
      %v963 = vpop.f32.mrf.mxu0
      %v964 = vadd.f32 %v784, %v963
      %965 = vmatmul.f32.gmra.mxu0 %v879
      %v966 = vpop.f32.mrf.mxu0
      %v967 = vadd.f32 %v787, %v966
      %968 = vmatmul.f32.gmra.mxu0 %v881
      %v969 = vpop.f32.mrf.mxu0
      %v970 = vadd.f32 %v790, %v969
      %971 = vmatmul.f32.gmra.mxu0 %v883
      %v972 = vpop.f32.mrf.mxu0
      %v973 = vadd.f32 %v793, %v972
      %974 = vmatmul.f32.gmra.mxu0 %v885
      %v975 = vpop.f32.mrf.mxu0
      %v976 = vadd.f32 %v796, %v975
      %977 = vmatmul.f32.gmra.mxu0 %v887
      %v978 = vpop.f32.mrf.mxu0
      %v979 = vadd.f32 %v799, %v978
      %980 = vmatmul.f32.gmra.mxu0 %v889
      %v981 = vpop.f32.mrf.mxu0
      %v982 = vadd.f32 %v802, %v981
      %983 = vmatmul.f32.gmra.mxu0 %v891
      %v984 = vpop.f32.mrf.mxu0
      %v985 = vadd.f32 %v805, %v984
      %986 = vmatmul.f32.gmra.mxu0 %v893
      %v987 = vpop.f32.mrf.mxu0
      %v988 = vadd.f32 %v808, %v987
      %989 = vmatmul.f32.gmra.mxu0 %v895
      %v990 = vpop.f32.mrf.mxu0
      %v991 = vadd.f32 %v811, %v990
      %992 = vmatmul.f32.gmra.mxu0 %v897
      %v993 = vpop.f32.mrf.mxu0
      %v994 = vadd.f32 %v814, %v993
      %995 = vmatmul.f32.gmra.mxu0 %v899
      %v996 = vpop.f32.mrf.mxu0
      %v997 = vadd.f32 %v817, %v996
      %998 = vmatmul.f32.gmra.mxu0 %v901
      %v999 = vpop.f32.mrf.mxu0
      %v1000 = vadd.f32 %v820, %v999
      %1001 = vmatmul.f32.gmra.mxu0 %v903
      %v1002 = vpop.f32.mrf.mxu0
      %v1003 = vadd.f32 %v823, %v1002
      %1004 = vmatmul.f32.gmra.mxu0 %v905
      %v1005 = vpop.f32.mrf.mxu0
      %v1006 = vadd.f32 %v826, %v1005
      %1007 = vmatmul.f32.gmra.mxu0 %v907
      %v1008 = vpop.f32.mrf.mxu0
      %v1009 = vadd.f32 %v829, %v1008
      %1010 = vmatmul.f32.gmra.mxu0 %v909
      %v1011 = vpop.f32.mrf.mxu0
      %v1012 = vadd.f32 %v832, %v1011
      %1013 = vmatmul.f32.gmra.mxu0 %v911
      %v1014 = vpop.f32.mrf.mxu0
      %v1015 = vadd.f32 %v835, %v1014
      %1016 = vmatmul.f32.gmra.mxu0 %v913
      %v1017 = vpop.f32.mrf.mxu0
      %v1018 = vadd.f32 %v838, %v1017
      %1019 = vmatmul.f32.gmra.mxu0 %v915
      %v1020 = vpop.f32.mrf.mxu0
      %v1021 = vadd.f32 %v841, %v1020
      %1022 = vmatmul.f32.gmra.mxu0 %v917
      %v1023 = vpop.f32.mrf.mxu0
      %v1024 = vadd.f32 %v844, %v1023
      %1025 = vmatmul.f32.gmra.mxu0 %v919
      %v1026 = vpop.f32.mrf.mxu0
      %v1027 = vadd.f32 %v847, %v1026
      %1028 = vmatmul.f32.gmra.mxu0 %v921
      %v1029 = vpop.f32.mrf.mxu0
      %v1030 = vadd.f32 %v850, %v1029
      %1031 = vmatmul.f32.gmra.mxu0 %v923
      %v1032 = vpop.f32.mrf.mxu0
      %v1033 = vadd.f32 %v853, %v1032
      %1034 = vmatmul.f32.gmra.mxu0 %v925
      %v1035 = vpop.f32.mrf.mxu0
      %v1036 = vadd.f32 %v856, %v1035
      %1037 = vmatmul.f32.gmra.mxu0 %v927
      %v1038 = vpop.f32.mrf.mxu0
      %v1039 = vadd.f32 %v859, %v1038
      %1040 = vmatmul.f32.gmra.mxu0 %v929
      %v1041 = vpop.f32.mrf.mxu0
      %v1042 = vadd.f32 %v862, %v1041
      %1043 = vmatmul.f32.gmra.mxu0 %v931
      %v1044 = vpop.f32.mrf.mxu0
      %v1045 = vadd.f32 %v865, %v1044
      %1046 = vmatmul.f32.gmra.mxu0 %v933
      %v1047 = vpop.f32.mrf.mxu0
      %v1048 = vadd.f32 %v868, %v1047
      %1049 = vmatmul.f32.gmra.mxu0 %v935
      %v1050 = vpop.f32.mrf.mxu0
      %v1051 = vadd.f32 %v871, %v1050
      %1052 = vdwg.mxu0
      %s1053 = scalar_lea.vmem %s3, 8
      %v1054 = vld [vmem:[%s1053] sm:$0xf]
      %v1055 = vsel %vm691, %v445, 0
      %v1057 = vsel %vm691, %v446, 0
      %v1060 = vsel %vm756, %v1054, 0
      %1062 = vmatpush.msra.mxu0 0.0
      %1063 = vmatpush.msra.mxu0 0.0
      %1064 = vmatpush.msra.mxu0 0.0
      %1065 = vmatpush.msra.mxu0 0.0
      %1066 = vmatpush.msra.mxu0 0.0
      %1067 = vmatpush.msra.mxu0 0.0
      %1068 = vmatpush.msra.mxu0 0.0
      %1069 = vmatpush.msra.mxu0 0.0
      %1070 = vmatpush.msra.mxu0 0.0
      %1071 = vmatpush.msra.mxu0 0.0
      %1072 = vmatpush.msra.mxu0 0.0
      %1073 = vmatpush.msra.mxu0 0.0
      %1074 = vmatpush.msra.mxu0 0.0
      %1075 = vmatpush.msra.mxu0 0.0
      %1076 = vmatpush.msra.mxu0 0.0
      %1077 = vmatpush.msra.mxu0 %v1060
      %1078 = vmatmul.f32.gmra.mxu0 %v877
      %v1079 = vpop.f32.mrf.mxu0
      %v1080 = vadd.f32 0.0, %v1079
      %1081 = vmatmul.f32.gmra.mxu0 %v879
      %v1082 = vpop.f32.mrf.mxu0
      %v1083 = vadd.f32 0.0, %v1082
      %1084 = vmatmul.f32.gmra.mxu0 %v881
      %v1085 = vpop.f32.mrf.mxu0
      %v1086 = vadd.f32 0.0, %v1085
      %1087 = vmatmul.f32.gmra.mxu0 %v883
      %v1088 = vpop.f32.mrf.mxu0
      %v1089 = vadd.f32 0.0, %v1088
      %1090 = vmatmul.f32.gmra.mxu0 %v885
      %v1091 = vpop.f32.mrf.mxu0
      %v1092 = vadd.f32 0.0, %v1091
      %1093 = vmatmul.f32.gmra.mxu0 %v887
      %v1094 = vpop.f32.mrf.mxu0
      %v1095 = vadd.f32 0.0, %v1094
      %1096 = vmatmul.f32.gmra.mxu0 %v889
      %v1097 = vpop.f32.mrf.mxu0
      %v1098 = vadd.f32 0.0, %v1097
      %1099 = vmatmul.f32.gmra.mxu0 %v891
      %v1100 = vpop.f32.mrf.mxu0
      %v1101 = vadd.f32 0.0, %v1100
      %1102 = vmatmul.f32.gmra.mxu0 %v893
      %v1103 = vpop.f32.mrf.mxu0
      %v1104 = vadd.f32 0.0, %v1103
      %1105 = vmatmul.f32.gmra.mxu0 %v895
      %v1106 = vpop.f32.mrf.mxu0
      %v1107 = vadd.f32 0.0, %v1106
      %1108 = vmatmul.f32.gmra.mxu0 %v897
      %v1109 = vpop.f32.mrf.mxu0
      %v1110 = vadd.f32 0.0, %v1109
      %1111 = vmatmul.f32.gmra.mxu0 %v899
      %v1112 = vpop.f32.mrf.mxu0
      %v1113 = vadd.f32 0.0, %v1112
      %1114 = vmatmul.f32.gmra.mxu0 %v901
      %v1115 = vpop.f32.mrf.mxu0
      %v1116 = vadd.f32 0.0, %v1115
      %1117 = vmatmul.f32.gmra.mxu0 %v903
      %v1118 = vpop.f32.mrf.mxu0
      %v1119 = vadd.f32 0.0, %v1118
      %1120 = vmatmul.f32.gmra.mxu0 %v905
      %v1121 = vpop.f32.mrf.mxu0
      %v1122 = vadd.f32 0.0, %v1121
      %1123 = vmatmul.f32.gmra.mxu0 %v907
      %v1124 = vpop.f32.mrf.mxu0
      %v1125 = vadd.f32 0.0, %v1124
      %1126 = vmatmul.f32.gmra.mxu0 %v909
      %v1127 = vpop.f32.mrf.mxu0
      %v1128 = vadd.f32 0.0, %v1127
      %1129 = vmatmul.f32.gmra.mxu0 %v911
      %v1130 = vpop.f32.mrf.mxu0
      %v1131 = vadd.f32 0.0, %v1130
      %1132 = vmatmul.f32.gmra.mxu0 %v913
      %v1133 = vpop.f32.mrf.mxu0
      %v1134 = vadd.f32 0.0, %v1133
      %1135 = vmatmul.f32.gmra.mxu0 %v915
      %v1136 = vpop.f32.mrf.mxu0
      %v1137 = vadd.f32 0.0, %v1136
      %1138 = vmatmul.f32.gmra.mxu0 %v917
      %v1139 = vpop.f32.mrf.mxu0
      %v1140 = vadd.f32 0.0, %v1139
      %1141 = vmatmul.f32.gmra.mxu0 %v919
      %v1142 = vpop.f32.mrf.mxu0
      %v1143 = vadd.f32 0.0, %v1142
      %1144 = vmatmul.f32.gmra.mxu0 %v921
      %v1145 = vpop.f32.mrf.mxu0
      %v1146 = vadd.f32 0.0, %v1145
      %1147 = vmatmul.f32.gmra.mxu0 %v923
      %v1148 = vpop.f32.mrf.mxu0
      %v1149 = vadd.f32 0.0, %v1148
      %1150 = vmatmul.f32.gmra.mxu0 %v925
      %v1151 = vpop.f32.mrf.mxu0
      %v1152 = vadd.f32 0.0, %v1151
      %1153 = vmatmul.f32.gmra.mxu0 %v927
      %v1154 = vpop.f32.mrf.mxu0
      %v1155 = vadd.f32 0.0, %v1154
      %1156 = vmatmul.f32.gmra.mxu0 %v929
      %v1157 = vpop.f32.mrf.mxu0
      %v1158 = vadd.f32 0.0, %v1157
      %1159 = vmatmul.f32.gmra.mxu0 %v931
      %v1160 = vpop.f32.mrf.mxu0
      %v1161 = vadd.f32 0.0, %v1160
      %1162 = vmatmul.f32.gmra.mxu0 %v933
      %v1163 = vpop.f32.mrf.mxu0
      %v1164 = vadd.f32 0.0, %v1163
      %1165 = vmatmul.f32.gmra.mxu0 %v935
      %v1166 = vpop.f32.mrf.mxu0
      %v1167 = vadd.f32 0.0, %v1166
      %1168 = vmatmul.f32.gmra.mxu0 %v1055
      %v1169 = vpop.f32.mrf.mxu0
      %v1170 = vadd.f32 0.0, %v1169
      %1171 = vmatmul.f32.gmra.mxu0 %v1057
      %v1172 = vpop.f32.mrf.mxu0
      %v1173 = vadd.f32 0.0, %v1172
      %1174 = vdwg.mxu0
      %v1175 = vadd.f32 %v958, %v1080
      %v1176 = vadd.f32 %v961, %v1083
      %v1177 = vadd.f32 %v964, %v1086
      %v1178 = vadd.f32 %v967, %v1089
      %v1179 = vadd.f32 %v970, %v1092
      %v1180 = vadd.f32 %v973, %v1095
      %v1181 = vadd.f32 %v976, %v1098
      %v1182 = vadd.f32 %v979, %v1101
      %v1183 = vadd.f32 %v982, %v1104
      %v1184 = vadd.f32 %v985, %v1107
      %v1185 = vadd.f32 %v988, %v1110
      %v1186 = vadd.f32 %v991, %v1113
      %v1187 = vadd.f32 %v994, %v1116
      %v1188 = vadd.f32 %v997, %v1119
      %v1189 = vadd.f32 %v1000, %v1122
      %v1190 = vadd.f32 %v1003, %v1125
      %v1191 = vadd.f32 %v1006, %v1128
      %v1192 = vadd.f32 %v1009, %v1131
      %v1193 = vadd.f32 %v1012, %v1134
      %v1194 = vadd.f32 %v1015, %v1137
      %v1195 = vadd.f32 %v1018, %v1140
      %v1196 = vadd.f32 %v1021, %v1143
      %v1197 = vadd.f32 %v1024, %v1146
      %v1198 = vadd.f32 %v1027, %v1149
      %v1199 = vadd.f32 %v1030, %v1152
      %v1200 = vadd.f32 %v1033, %v1155
      %v1201 = vadd.f32 %v1036, %v1158
      %v1202 = vadd.f32 %v1039, %v1161
      %v1203 = vadd.f32 %v1042, %v1164
      %v1204 = vadd.f32 %v1045, %v1167
      %v1205 = vadd.f32 %v1048, %v1170
      %v1206 = vadd.f32 %v1051, %v1173
      %s1207 = scalar_lea.vmem %s3, 12
      %v1208 = vld [vmem:[%s1207] sm:$0xf]
      %v1209 = vsel %vm691, %v667, 0
      %v1211 = vsel %vm691, %v669, 0
      %v1214 = vsel %vm756, %v1208, 0
      %1216 = vmatpush.msra.mxu0 0.0
      %1217 = vmatpush.msra.mxu0 0.0
      %1218 = vmatpush.msra.mxu0 0.0
      %1219 = vmatpush.msra.mxu0 0.0
      %1220 = vmatpush.msra.mxu0 0.0
      %1221 = vmatpush.msra.mxu0 0.0
      %1222 = vmatpush.msra.mxu0 0.0
      %1223 = vmatpush.msra.mxu0 0.0
      %1224 = vmatpush.msra.mxu0 0.0
      %1225 = vmatpush.msra.mxu0 0.0
      %1226 = vmatpush.msra.mxu0 0.0
      %1227 = vmatpush.msra.mxu0 0.0
      %1228 = vmatpush.msra.mxu0 0.0
      %1229 = vmatpush.msra.mxu0 0.0
      %1230 = vmatpush.msra.mxu0 0.0
      %1231 = vmatpush.msra.mxu0 %v1214
      %1232 = vmatmul.f32.gmra.mxu0 %v696
      %v1233 = vpop.f32.mrf.mxu0
      %v1234 = vadd.f32 0.0, %v1233
      %1235 = vmatmul.f32.gmra.mxu0 %v698
      %v1236 = vpop.f32.mrf.mxu0
      %v1237 = vadd.f32 0.0, %v1236
      %1238 = vmatmul.f32.gmra.mxu0 %v700
      %v1239 = vpop.f32.mrf.mxu0
      %v1240 = vadd.f32 0.0, %v1239
      %1241 = vmatmul.f32.gmra.mxu0 %v702
      %v1242 = vpop.f32.mrf.mxu0
      %v1243 = vadd.f32 0.0, %v1242
      %1244 = vmatmul.f32.gmra.mxu0 %v704
      %v1245 = vpop.f32.mrf.mxu0
      %v1246 = vadd.f32 0.0, %v1245
      %1247 = vmatmul.f32.gmra.mxu0 %v706
      %v1248 = vpop.f32.mrf.mxu0
      %v1249 = vadd.f32 0.0, %v1248
      %1250 = vmatmul.f32.gmra.mxu0 %v708
      %v1251 = vpop.f32.mrf.mxu0
      %v1252 = vadd.f32 0.0, %v1251
      %1253 = vmatmul.f32.gmra.mxu0 %v710
      %v1254 = vpop.f32.mrf.mxu0
      %v1255 = vadd.f32 0.0, %v1254
      %1256 = vmatmul.f32.gmra.mxu0 %v712
      %v1257 = vpop.f32.mrf.mxu0
      %v1258 = vadd.f32 0.0, %v1257
      %1259 = vmatmul.f32.gmra.mxu0 %v714
      %v1260 = vpop.f32.mrf.mxu0
      %v1261 = vadd.f32 0.0, %v1260
      %1262 = vmatmul.f32.gmra.mxu0 %v716
      %v1263 = vpop.f32.mrf.mxu0
      %v1264 = vadd.f32 0.0, %v1263
      %1265 = vmatmul.f32.gmra.mxu0 %v718
      %v1266 = vpop.f32.mrf.mxu0
      %v1267 = vadd.f32 0.0, %v1266
      %1268 = vmatmul.f32.gmra.mxu0 %v720
      %v1269 = vpop.f32.mrf.mxu0
      %v1270 = vadd.f32 0.0, %v1269
      %1271 = vmatmul.f32.gmra.mxu0 %v722
      %v1272 = vpop.f32.mrf.mxu0
      %v1273 = vadd.f32 0.0, %v1272
      %1274 = vmatmul.f32.gmra.mxu0 %v724
      %v1275 = vpop.f32.mrf.mxu0
      %v1276 = vadd.f32 0.0, %v1275
      %1277 = vmatmul.f32.gmra.mxu0 %v726
      %v1278 = vpop.f32.mrf.mxu0
      %v1279 = vadd.f32 0.0, %v1278
      %1280 = vmatmul.f32.gmra.mxu0 %v728
      %v1281 = vpop.f32.mrf.mxu0
      %v1282 = vadd.f32 0.0, %v1281
      %1283 = vmatmul.f32.gmra.mxu0 %v730
      %v1284 = vpop.f32.mrf.mxu0
      %v1285 = vadd.f32 0.0, %v1284
      %1286 = vmatmul.f32.gmra.mxu0 %v732
      %v1287 = vpop.f32.mrf.mxu0
      %v1288 = vadd.f32 0.0, %v1287
      %1289 = vmatmul.f32.gmra.mxu0 %v734
      %v1290 = vpop.f32.mrf.mxu0
      %v1291 = vadd.f32 0.0, %v1290
      %1292 = vmatmul.f32.gmra.mxu0 %v736
      %v1293 = vpop.f32.mrf.mxu0
      %v1294 = vadd.f32 0.0, %v1293
      %1295 = vmatmul.f32.gmra.mxu0 %v738
      %v1296 = vpop.f32.mrf.mxu0
      %v1297 = vadd.f32 0.0, %v1296
      %1298 = vmatmul.f32.gmra.mxu0 %v740
      %v1299 = vpop.f32.mrf.mxu0
      %v1300 = vadd.f32 0.0, %v1299
      %1301 = vmatmul.f32.gmra.mxu0 %v742
      %v1302 = vpop.f32.mrf.mxu0
      %v1303 = vadd.f32 0.0, %v1302
      %1304 = vmatmul.f32.gmra.mxu0 %v744
      %v1305 = vpop.f32.mrf.mxu0
      %v1306 = vadd.f32 0.0, %v1305
      %1307 = vmatmul.f32.gmra.mxu0 %v746
      %v1308 = vpop.f32.mrf.mxu0
      %v1309 = vadd.f32 0.0, %v1308
      %1310 = vmatmul.f32.gmra.mxu0 %v748
      %v1311 = vpop.f32.mrf.mxu0
      %v1312 = vadd.f32 0.0, %v1311
      %1313 = vmatmul.f32.gmra.mxu0 %v750
      %v1314 = vpop.f32.mrf.mxu0
      %v1315 = vadd.f32 0.0, %v1314
      %1316 = vmatmul.f32.gmra.mxu0 %v752
      %v1317 = vpop.f32.mrf.mxu0
      %v1318 = vadd.f32 0.0, %v1317
      %1319 = vmatmul.f32.gmra.mxu0 %v754
      %v1320 = vpop.f32.mrf.mxu0
      %v1321 = vadd.f32 0.0, %v1320
      %1322 = vmatmul.f32.gmra.mxu0 %v1209
      %v1323 = vpop.f32.mrf.mxu0
      %v1324 = vadd.f32 0.0, %v1323
      %1325 = vmatmul.f32.gmra.mxu0 %v1211
      %v1326 = vpop.f32.mrf.mxu0
      %v1327 = vadd.f32 0.0, %v1326
      %1328 = vdwg.mxu0
      %v1329 = vadd.f32 %v1175, %v1234
      %v1330 = vadd.f32 %v1176, %v1237
      %v1331 = vadd.f32 %v1177, %v1240
      %v1332 = vadd.f32 %v1178, %v1243
      %v1333 = vadd.f32 %v1179, %v1246
      %v1334 = vadd.f32 %v1180, %v1249
      %v1335 = vadd.f32 %v1181, %v1252
      %v1336 = vadd.f32 %v1182, %v1255
      %v1337 = vadd.f32 %v1183, %v1258
      %v1338 = vadd.f32 %v1184, %v1261
      %v1339 = vadd.f32 %v1185, %v1264
      %v1340 = vadd.f32 %v1186, %v1267
      %v1341 = vadd.f32 %v1187, %v1270
      %v1342 = vadd.f32 %v1188, %v1273
      %v1343 = vadd.f32 %v1189, %v1276
      %v1344 = vadd.f32 %v1190, %v1279
      %v1345 = vadd.f32 %v1191, %v1282
      %v1346 = vadd.f32 %v1192, %v1285
      %v1347 = vadd.f32 %v1193, %v1288
      %v1348 = vadd.f32 %v1194, %v1291
      %v1349 = vadd.f32 %v1195, %v1294
      %v1350 = vadd.f32 %v1196, %v1297
      %v1351 = vadd.f32 %v1197, %v1300
      %v1352 = vadd.f32 %v1198, %v1303
      %v1353 = vadd.f32 %v1199, %v1306
      %v1354 = vadd.f32 %v1200, %v1309
      %v1355 = vadd.f32 %v1201, %v1312
      %v1356 = vadd.f32 %v1202, %v1315
      %v1357 = vadd.f32 %v1203, %v1318
      %v1358 = vadd.f32 %v1204, %v1321
      %v1359 = vadd.f32 %v1205, %v1324
      %v1360 = vadd.f32 %v1206, %v1327
      %v1362 = vperm.slane %v451, 0
      %v1364 = vadd.f32 %v1329, %v1362
      %v1365 = vadd.f32 %v1330, %v1362
      %v1366 = vadd.f32 %v1331, %v1362
      %v1367 = vadd.f32 %v1332, %v1362
      %v1368 = vadd.f32 %v1333, %v1362
      %v1369 = vadd.f32 %v1334, %v1362
      %v1370 = vadd.f32 %v1335, %v1362
      %v1371 = vadd.f32 %v1336, %v1362
      %v1372 = vadd.f32 %v1337, %v1362
      %v1373 = vadd.f32 %v1338, %v1362
      %v1374 = vadd.f32 %v1339, %v1362
      %v1375 = vadd.f32 %v1340, %v1362
      %v1376 = vadd.f32 %v1341, %v1362
      %v1377 = vadd.f32 %v1342, %v1362
      %v1378 = vadd.f32 %v1343, %v1362
      %v1379 = vadd.f32 %v1344, %v1362
      %v1380 = vadd.f32 %v1345, %v1362
      %v1381 = vadd.f32 %v1346, %v1362
      %v1382 = vadd.f32 %v1347, %v1362
      %v1383 = vadd.f32 %v1348, %v1362
      %v1384 = vadd.f32 %v1349, %v1362
      %v1385 = vadd.f32 %v1350, %v1362
      %v1386 = vadd.f32 %v1351, %v1362
      %v1387 = vadd.f32 %v1352, %v1362
      %v1388 = vadd.f32 %v1353, %v1362
      %v1389 = vadd.f32 %v1354, %v1362
      %v1390 = vadd.f32 %v1355, %v1362
      %v1391 = vadd.f32 %v1356, %v1362
      %v1392 = vadd.f32 %v1357, %v1362
      %v1393 = vadd.f32 %v1358, %v1362
      %v1394 = vadd.f32 %v1359, %v1362
      %v1395 = vadd.f32 %v1360, %v1362
      %s1396 = scalar_lea.vmem %s3, 16
      %v1397 = vld [vmem:[%s1396] sm:$0xf]
      %s1398 = scalar_lea.vmem %s3, 20
      %v1399 = vld [vmem:[%s1398] sm:$0xf]
      %v1400 = vsel %vm691, %v584, 0
      %v1402 = vsel %vm691, %v586, 0
      %v1404 = vsel %vm691, %v589, 0
      %v1406 = vsel %vm691, %v591, 0
      %v1408 = vsel %vm691, %v594, 0
      %v1410 = vsel %vm691, %v596, 0
      %v1412 = vsel %vm691, %v599, 0
      %v1414 = vsel %vm691, %v601, 0
      %v1416 = vsel %vm691, %v604, 0
      %v1418 = vsel %vm691, %v606, 0
      %v1420 = vsel %vm691, %v609, 0
      %v1422 = vsel %vm691, %v611, 0
      %v1424 = vsel %vm691, %v614, 0
      %v1426 = vsel %vm691, %v616, 0
      %v1428 = vsel %vm691, %v619, 0
      %v1430 = vsel %vm691, %v621, 0
      %v1432 = vsel %vm691, %v624, 0
      %v1434 = vsel %vm691, %v626, 0
      %v1436 = vsel %vm691, %v629, 0
      %v1438 = vsel %vm691, %v631, 0
      %v1440 = vsel %vm691, %v634, 0
      %v1442 = vsel %vm691, %v636, 0
      %v1444 = vsel %vm691, %v639, 0
      %v1446 = vsel %vm691, %v641, 0
      %v1448 = vsel %vm691, %v644, 0
      %v1450 = vsel %vm691, %v646, 0
      %v1452 = vsel %vm691, %v649, 0
      %v1454 = vsel %vm691, %v651, 0
      %v1456 = vsel %vm691, %v654, 0
      %v1458 = vsel %vm691, %v656, 0
      %v1460 = vsel %vm691, %v659, 0
      %v1462 = vsel %vm691, %v661, 0
      %v1465 = vsel %vm756, %v1399, 0
      %1467 = vmatpush.msra.mxu0 0.0
      %1468 = vmatpush.msra.mxu0 0.0
      %1469 = vmatpush.msra.mxu0 0.0
      %1470 = vmatpush.msra.mxu0 0.0
      %1471 = vmatpush.msra.mxu0 0.0
      %1472 = vmatpush.msra.mxu0 0.0
      %1473 = vmatpush.msra.mxu0 0.0
      %1474 = vmatpush.msra.mxu0 0.0
      %1475 = vmatpush.msra.mxu0 0.0
      %1476 = vmatpush.msra.mxu0 0.0
      %1477 = vmatpush.msra.mxu0 0.0
      %1478 = vmatpush.msra.mxu0 0.0
      %1479 = vmatpush.msra.mxu0 0.0
      %1480 = vmatpush.msra.mxu0 0.0
      %1481 = vmatpush.msra.mxu0 0.0
      %1482 = vmatpush.msra.mxu0 %v1465
      %1483 = vmatmul.f32.gmra.mxu0 %v1400
      %v1484 = vpop.f32.mrf.mxu0
      %v1485 = vadd.f32 0.0, %v1484
      %1486 = vmatmul.f32.gmra.mxu0 %v1402
      %v1487 = vpop.f32.mrf.mxu0
      %v1488 = vadd.f32 0.0, %v1487
      %1489 = vmatmul.f32.gmra.mxu0 %v1404
      %v1490 = vpop.f32.mrf.mxu0
      %v1491 = vadd.f32 0.0, %v1490
      %1492 = vmatmul.f32.gmra.mxu0 %v1406
      %v1493 = vpop.f32.mrf.mxu0
      %v1494 = vadd.f32 0.0, %v1493
      %1495 = vmatmul.f32.gmra.mxu0 %v1408
      %v1496 = vpop.f32.mrf.mxu0
      %v1497 = vadd.f32 0.0, %v1496
      %1498 = vmatmul.f32.gmra.mxu0 %v1410
      %v1499 = vpop.f32.mrf.mxu0
      %v1500 = vadd.f32 0.0, %v1499
      %1501 = vmatmul.f32.gmra.mxu0 %v1412
      %v1502 = vpop.f32.mrf.mxu0
      %v1503 = vadd.f32 0.0, %v1502
      %1504 = vmatmul.f32.gmra.mxu0 %v1414
      %v1505 = vpop.f32.mrf.mxu0
      %v1506 = vadd.f32 0.0, %v1505
      %1507 = vmatmul.f32.gmra.mxu0 %v1416
      %v1508 = vpop.f32.mrf.mxu0
      %v1509 = vadd.f32 0.0, %v1508
      %1510 = vmatmul.f32.gmra.mxu0 %v1418
      %v1511 = vpop.f32.mrf.mxu0
      %v1512 = vadd.f32 0.0, %v1511
      %1513 = vmatmul.f32.gmra.mxu0 %v1420
      %v1514 = vpop.f32.mrf.mxu0
      %v1515 = vadd.f32 0.0, %v1514
      %1516 = vmatmul.f32.gmra.mxu0 %v1422
      %v1517 = vpop.f32.mrf.mxu0
      %v1518 = vadd.f32 0.0, %v1517
      %1519 = vmatmul.f32.gmra.mxu0 %v1424
      %v1520 = vpop.f32.mrf.mxu0
      %v1521 = vadd.f32 0.0, %v1520
      %1522 = vmatmul.f32.gmra.mxu0 %v1426
      %v1523 = vpop.f32.mrf.mxu0
      %v1524 = vadd.f32 0.0, %v1523
      %1525 = vmatmul.f32.gmra.mxu0 %v1428
      %v1526 = vpop.f32.mrf.mxu0
      %v1527 = vadd.f32 0.0, %v1526
      %1528 = vmatmul.f32.gmra.mxu0 %v1430
      %v1529 = vpop.f32.mrf.mxu0
      %v1530 = vadd.f32 0.0, %v1529
      %1531 = vmatmul.f32.gmra.mxu0 %v1432
      %v1532 = vpop.f32.mrf.mxu0
      %v1533 = vadd.f32 0.0, %v1532
      %1534 = vmatmul.f32.gmra.mxu0 %v1434
      %v1535 = vpop.f32.mrf.mxu0
      %v1536 = vadd.f32 0.0, %v1535
      %1537 = vmatmul.f32.gmra.mxu0 %v1436
      %v1538 = vpop.f32.mrf.mxu0
      %v1539 = vadd.f32 0.0, %v1538
      %1540 = vmatmul.f32.gmra.mxu0 %v1438
      %v1541 = vpop.f32.mrf.mxu0
      %v1542 = vadd.f32 0.0, %v1541
      %1543 = vmatmul.f32.gmra.mxu0 %v1440
      %v1544 = vpop.f32.mrf.mxu0
      %v1545 = vadd.f32 0.0, %v1544
      %1546 = vmatmul.f32.gmra.mxu0 %v1442
      %v1547 = vpop.f32.mrf.mxu0
      %v1548 = vadd.f32 0.0, %v1547
      %1549 = vmatmul.f32.gmra.mxu0 %v1444
      %v1550 = vpop.f32.mrf.mxu0
      %v1551 = vadd.f32 0.0, %v1550
      %1552 = vmatmul.f32.gmra.mxu0 %v1446
      %v1553 = vpop.f32.mrf.mxu0
      %v1554 = vadd.f32 0.0, %v1553
      %1555 = vmatmul.f32.gmra.mxu0 %v1448
      %v1556 = vpop.f32.mrf.mxu0
      %v1557 = vadd.f32 0.0, %v1556
      %1558 = vmatmul.f32.gmra.mxu0 %v1450
      %v1559 = vpop.f32.mrf.mxu0
      %v1560 = vadd.f32 0.0, %v1559
      %1561 = vmatmul.f32.gmra.mxu0 %v1452
      %v1562 = vpop.f32.mrf.mxu0
      %v1563 = vadd.f32 0.0, %v1562
      %1564 = vmatmul.f32.gmra.mxu0 %v1454
      %v1565 = vpop.f32.mrf.mxu0
      %v1566 = vadd.f32 0.0, %v1565
      %1567 = vmatmul.f32.gmra.mxu0 %v1456
      %v1568 = vpop.f32.mrf.mxu0
      %v1569 = vadd.f32 0.0, %v1568
      %1570 = vmatmul.f32.gmra.mxu0 %v1458
      %v1571 = vpop.f32.mrf.mxu0
      %v1572 = vadd.f32 0.0, %v1571
      %1573 = vmatmul.f32.gmra.mxu0 %v1460
      %v1574 = vpop.f32.mrf.mxu0
      %v1575 = vadd.f32 0.0, %v1574
      %1576 = vmatmul.f32.gmra.mxu0 %v1462
      %v1577 = vpop.f32.mrf.mxu0
      %v1578 = vadd.f32 0.0, %v1577
      %1579 = vdwg.mxu0
      %v1581 = vsel %vm756, %v1397, 0
      %1583 = vmatpush.msra.mxu0 0.0
      %1584 = vmatpush.msra.mxu0 0.0
      %1585 = vmatpush.msra.mxu0 0.0
      %1586 = vmatpush.msra.mxu0 0.0
      %1587 = vmatpush.msra.mxu0 0.0
      %1588 = vmatpush.msra.mxu0 0.0
      %1589 = vmatpush.msra.mxu0 0.0
      %1590 = vmatpush.msra.mxu0 0.0
      %1591 = vmatpush.msra.mxu0 0.0
      %1592 = vmatpush.msra.mxu0 0.0
      %1593 = vmatpush.msra.mxu0 0.0
      %1594 = vmatpush.msra.mxu0 0.0
      %1595 = vmatpush.msra.mxu0 0.0
      %1596 = vmatpush.msra.mxu0 0.0
      %1597 = vmatpush.msra.mxu0 0.0
      %1598 = vmatpush.msra.mxu0 %v1581
      %1599 = vmatmul.f32.gmra.mxu0 %v692
      %v1600 = vpop.f32.mrf.mxu0
      %v1601 = vadd.f32 %v1485, %v1600
      %1602 = vmatmul.f32.gmra.mxu0 %v694
      %v1603 = vpop.f32.mrf.mxu0
      %v1604 = vadd.f32 %v1488, %v1603
      %1605 = vmatmul.f32.gmra.mxu0 %v696
      %v1606 = vpop.f32.mrf.mxu0
      %v1607 = vadd.f32 %v1491, %v1606
      %1608 = vmatmul.f32.gmra.mxu0 %v698
      %v1609 = vpop.f32.mrf.mxu0
      %v1610 = vadd.f32 %v1494, %v1609
      %1611 = vmatmul.f32.gmra.mxu0 %v700
      %v1612 = vpop.f32.mrf.mxu0
      %v1613 = vadd.f32 %v1497, %v1612
      %1614 = vmatmul.f32.gmra.mxu0 %v702
      %v1615 = vpop.f32.mrf.mxu0
      %v1616 = vadd.f32 %v1500, %v1615
      %1617 = vmatmul.f32.gmra.mxu0 %v704
      %v1618 = vpop.f32.mrf.mxu0
      %v1619 = vadd.f32 %v1503, %v1618
      %1620 = vmatmul.f32.gmra.mxu0 %v706
      %v1621 = vpop.f32.mrf.mxu0
      %v1622 = vadd.f32 %v1506, %v1621
      %1623 = vmatmul.f32.gmra.mxu0 %v708
      %v1624 = vpop.f32.mrf.mxu0
      %v1625 = vadd.f32 %v1509, %v1624
      %1626 = vmatmul.f32.gmra.mxu0 %v710
      %v1627 = vpop.f32.mrf.mxu0
      %v1628 = vadd.f32 %v1512, %v1627
      %1629 = vmatmul.f32.gmra.mxu0 %v712
      %v1630 = vpop.f32.mrf.mxu0
      %v1631 = vadd.f32 %v1515, %v1630
      %1632 = vmatmul.f32.gmra.mxu0 %v714
      %v1633 = vpop.f32.mrf.mxu0
      %v1634 = vadd.f32 %v1518, %v1633
      %1635 = vmatmul.f32.gmra.mxu0 %v716
      %v1636 = vpop.f32.mrf.mxu0
      %v1637 = vadd.f32 %v1521, %v1636
      %1638 = vmatmul.f32.gmra.mxu0 %v718
      %v1639 = vpop.f32.mrf.mxu0
      %v1640 = vadd.f32 %v1524, %v1639
      %1641 = vmatmul.f32.gmra.mxu0 %v720
      %v1642 = vpop.f32.mrf.mxu0
      %v1643 = vadd.f32 %v1527, %v1642
      %1644 = vmatmul.f32.gmra.mxu0 %v722
      %v1645 = vpop.f32.mrf.mxu0
      %v1646 = vadd.f32 %v1530, %v1645
      %1647 = vmatmul.f32.gmra.mxu0 %v724
      %v1648 = vpop.f32.mrf.mxu0
      %v1649 = vadd.f32 %v1533, %v1648
      %1650 = vmatmul.f32.gmra.mxu0 %v726
      %v1651 = vpop.f32.mrf.mxu0
      %v1652 = vadd.f32 %v1536, %v1651
      %1653 = vmatmul.f32.gmra.mxu0 %v728
      %v1654 = vpop.f32.mrf.mxu0
      %v1655 = vadd.f32 %v1539, %v1654
      %1656 = vmatmul.f32.gmra.mxu0 %v730
      %v1657 = vpop.f32.mrf.mxu0
      %v1658 = vadd.f32 %v1542, %v1657
      %1659 = vmatmul.f32.gmra.mxu0 %v732
      %v1660 = vpop.f32.mrf.mxu0
      %v1661 = vadd.f32 %v1545, %v1660
      %1662 = vmatmul.f32.gmra.mxu0 %v734
      %v1663 = vpop.f32.mrf.mxu0
      %v1664 = vadd.f32 %v1548, %v1663
      %1665 = vmatmul.f32.gmra.mxu0 %v736
      %v1666 = vpop.f32.mrf.mxu0
      %v1667 = vadd.f32 %v1551, %v1666
      %1668 = vmatmul.f32.gmra.mxu0 %v738
      %v1669 = vpop.f32.mrf.mxu0
      %v1670 = vadd.f32 %v1554, %v1669
      %1671 = vmatmul.f32.gmra.mxu0 %v740
      %v1672 = vpop.f32.mrf.mxu0
      %v1673 = vadd.f32 %v1557, %v1672
      %1674 = vmatmul.f32.gmra.mxu0 %v742
      %v1675 = vpop.f32.mrf.mxu0
      %v1676 = vadd.f32 %v1560, %v1675
      %1677 = vmatmul.f32.gmra.mxu0 %v744
      %v1678 = vpop.f32.mrf.mxu0
      %v1679 = vadd.f32 %v1563, %v1678
      %1680 = vmatmul.f32.gmra.mxu0 %v746
      %v1681 = vpop.f32.mrf.mxu0
      %v1682 = vadd.f32 %v1566, %v1681
      %1683 = vmatmul.f32.gmra.mxu0 %v748
      %v1684 = vpop.f32.mrf.mxu0
      %v1685 = vadd.f32 %v1569, %v1684
      %1686 = vmatmul.f32.gmra.mxu0 %v750
      %v1687 = vpop.f32.mrf.mxu0
      %v1688 = vadd.f32 %v1572, %v1687
      %1689 = vmatmul.f32.gmra.mxu0 %v752
      %v1690 = vpop.f32.mrf.mxu0
      %v1691 = vadd.f32 %v1575, %v1690
      %1692 = vmatmul.f32.gmra.mxu0 %v754
      %v1693 = vpop.f32.mrf.mxu0
      %v1694 = vadd.f32 %v1578, %v1693
      %1695 = vdwg.mxu0
      %s1696 = scalar_lea.vmem %s3, 24
      %v1697 = vld [vmem:[%s1696] sm:$0xf]
      %v1699 = vsel %vm756, %v1697, 0
      %1701 = vmatpush.msra.mxu0 0.0
      %1702 = vmatpush.msra.mxu0 0.0
      %1703 = vmatpush.msra.mxu0 0.0
      %1704 = vmatpush.msra.mxu0 0.0
      %1705 = vmatpush.msra.mxu0 0.0
      %1706 = vmatpush.msra.mxu0 0.0
      %1707 = vmatpush.msra.mxu0 0.0
      %1708 = vmatpush.msra.mxu0 0.0
      %1709 = vmatpush.msra.mxu0 0.0
      %1710 = vmatpush.msra.mxu0 0.0
      %1711 = vmatpush.msra.mxu0 0.0
      %1712 = vmatpush.msra.mxu0 0.0
      %1713 = vmatpush.msra.mxu0 0.0
      %1714 = vmatpush.msra.mxu0 0.0
      %1715 = vmatpush.msra.mxu0 0.0
      %1716 = vmatpush.msra.mxu0 %v1699
      %1717 = vmatmul.f32.gmra.mxu0 %v696
      %v1718 = vpop.f32.mrf.mxu0
      %v1719 = vadd.f32 0.0, %v1718
      %1720 = vmatmul.f32.gmra.mxu0 %v698
      %v1721 = vpop.f32.mrf.mxu0
      %v1722 = vadd.f32 0.0, %v1721
      %1723 = vmatmul.f32.gmra.mxu0 %v700
      %v1724 = vpop.f32.mrf.mxu0
      %v1725 = vadd.f32 0.0, %v1724
      %1726 = vmatmul.f32.gmra.mxu0 %v702
      %v1727 = vpop.f32.mrf.mxu0
      %v1728 = vadd.f32 0.0, %v1727
      %1729 = vmatmul.f32.gmra.mxu0 %v704
      %v1730 = vpop.f32.mrf.mxu0
      %v1731 = vadd.f32 0.0, %v1730
      %1732 = vmatmul.f32.gmra.mxu0 %v706
      %v1733 = vpop.f32.mrf.mxu0
      %v1734 = vadd.f32 0.0, %v1733
      %1735 = vmatmul.f32.gmra.mxu0 %v708
      %v1736 = vpop.f32.mrf.mxu0
      %v1737 = vadd.f32 0.0, %v1736
      %1738 = vmatmul.f32.gmra.mxu0 %v710
      %v1739 = vpop.f32.mrf.mxu0
      %v1740 = vadd.f32 0.0, %v1739
      %1741 = vmatmul.f32.gmra.mxu0 %v712
      %v1742 = vpop.f32.mrf.mxu0
      %v1743 = vadd.f32 0.0, %v1742
      %1744 = vmatmul.f32.gmra.mxu0 %v714
      %v1745 = vpop.f32.mrf.mxu0
      %v1746 = vadd.f32 0.0, %v1745
      %1747 = vmatmul.f32.gmra.mxu0 %v716
      %v1748 = vpop.f32.mrf.mxu0
      %v1749 = vadd.f32 0.0, %v1748
      %1750 = vmatmul.f32.gmra.mxu0 %v718
      %v1751 = vpop.f32.mrf.mxu0
      %v1752 = vadd.f32 0.0, %v1751
      %1753 = vmatmul.f32.gmra.mxu0 %v720
      %v1754 = vpop.f32.mrf.mxu0
      %v1755 = vadd.f32 0.0, %v1754
      %1756 = vmatmul.f32.gmra.mxu0 %v722
      %v1757 = vpop.f32.mrf.mxu0
      %v1758 = vadd.f32 0.0, %v1757
      %1759 = vmatmul.f32.gmra.mxu0 %v724
      %v1760 = vpop.f32.mrf.mxu0
      %v1761 = vadd.f32 0.0, %v1760
      %1762 = vmatmul.f32.gmra.mxu0 %v726
      %v1763 = vpop.f32.mrf.mxu0
      %v1764 = vadd.f32 0.0, %v1763
      %1765 = vmatmul.f32.gmra.mxu0 %v728
      %v1766 = vpop.f32.mrf.mxu0
      %v1767 = vadd.f32 0.0, %v1766
      %1768 = vmatmul.f32.gmra.mxu0 %v730
      %v1769 = vpop.f32.mrf.mxu0
      %v1770 = vadd.f32 0.0, %v1769
      %1771 = vmatmul.f32.gmra.mxu0 %v732
      %v1772 = vpop.f32.mrf.mxu0
      %v1773 = vadd.f32 0.0, %v1772
      %1774 = vmatmul.f32.gmra.mxu0 %v734
      %v1775 = vpop.f32.mrf.mxu0
      %v1776 = vadd.f32 0.0, %v1775
      %1777 = vmatmul.f32.gmra.mxu0 %v736
      %v1778 = vpop.f32.mrf.mxu0
      %v1779 = vadd.f32 0.0, %v1778
      %1780 = vmatmul.f32.gmra.mxu0 %v738
      %v1781 = vpop.f32.mrf.mxu0
      %v1782 = vadd.f32 0.0, %v1781
      %1783 = vmatmul.f32.gmra.mxu0 %v740
      %v1784 = vpop.f32.mrf.mxu0
      %v1785 = vadd.f32 0.0, %v1784
      %1786 = vmatmul.f32.gmra.mxu0 %v742
      %v1787 = vpop.f32.mrf.mxu0
      %v1788 = vadd.f32 0.0, %v1787
      %1789 = vmatmul.f32.gmra.mxu0 %v744
      %v1790 = vpop.f32.mrf.mxu0
      %v1791 = vadd.f32 0.0, %v1790
      %1792 = vmatmul.f32.gmra.mxu0 %v746
      %v1793 = vpop.f32.mrf.mxu0
      %v1794 = vadd.f32 0.0, %v1793
      %1795 = vmatmul.f32.gmra.mxu0 %v748
      %v1796 = vpop.f32.mrf.mxu0
      %v1797 = vadd.f32 0.0, %v1796
      %1798 = vmatmul.f32.gmra.mxu0 %v750
      %v1799 = vpop.f32.mrf.mxu0
      %v1800 = vadd.f32 0.0, %v1799
      %1801 = vmatmul.f32.gmra.mxu0 %v752
      %v1802 = vpop.f32.mrf.mxu0
      %v1803 = vadd.f32 0.0, %v1802
      %1804 = vmatmul.f32.gmra.mxu0 %v754
      %v1805 = vpop.f32.mrf.mxu0
      %v1806 = vadd.f32 0.0, %v1805
      %1807 = vmatmul.f32.gmra.mxu0 %v1209
      %v1808 = vpop.f32.mrf.mxu0
      %v1809 = vadd.f32 0.0, %v1808
      %1810 = vmatmul.f32.gmra.mxu0 %v1211
      %v1811 = vpop.f32.mrf.mxu0
      %v1812 = vadd.f32 0.0, %v1811
      %1813 = vdwg.mxu0
      %v1814 = vadd.f32 %v1601, %v1719
      %v1815 = vadd.f32 %v1604, %v1722
      %v1816 = vadd.f32 %v1607, %v1725
      %v1817 = vadd.f32 %v1610, %v1728
      %v1818 = vadd.f32 %v1613, %v1731
      %v1819 = vadd.f32 %v1616, %v1734
      %v1820 = vadd.f32 %v1619, %v1737
      %v1821 = vadd.f32 %v1622, %v1740
      %v1822 = vadd.f32 %v1625, %v1743
      %v1823 = vadd.f32 %v1628, %v1746
      %v1824 = vadd.f32 %v1631, %v1749
      %v1825 = vadd.f32 %v1634, %v1752
      %v1826 = vadd.f32 %v1637, %v1755
      %v1827 = vadd.f32 %v1640, %v1758
      %v1828 = vadd.f32 %v1643, %v1761
      %v1829 = vadd.f32 %v1646, %v1764
      %v1830 = vadd.f32 %v1649, %v1767
      %v1831 = vadd.f32 %v1652, %v1770
      %v1832 = vadd.f32 %v1655, %v1773
      %v1833 = vadd.f32 %v1658, %v1776
      %v1834 = vadd.f32 %v1661, %v1779
      %v1835 = vadd.f32 %v1664, %v1782
      %v1836 = vadd.f32 %v1667, %v1785
      %v1837 = vadd.f32 %v1670, %v1788
      %v1838 = vadd.f32 %v1673, %v1791
      %v1839 = vadd.f32 %v1676, %v1794
      %v1840 = vadd.f32 %v1679, %v1797
      %v1841 = vadd.f32 %v1682, %v1800
      %v1842 = vadd.f32 %v1685, %v1803
      %v1843 = vadd.f32 %v1688, %v1806
      %v1844 = vadd.f32 %v1691, %v1809
      %v1845 = vadd.f32 %v1694, %v1812
      %s1846 = scalar_lea.vmem %s3, 28
      %v1847 = vld [vmem:[%s1846] sm:$0xf]
      %v1848 = vsel %vm691, %v672, 0
      %v1850 = vsel %vm691, %v674, 0
      %v1853 = vsel %vm756, %v1847, 0
      %1855 = vmatpush.msra.mxu0 0.0
      %1856 = vmatpush.msra.mxu0 0.0
      %1857 = vmatpush.msra.mxu0 0.0
      %1858 = vmatpush.msra.mxu0 0.0
      %1859 = vmatpush.msra.mxu0 0.0
      %1860 = vmatpush.msra.mxu0 0.0
      %1861 = vmatpush.msra.mxu0 0.0
      %1862 = vmatpush.msra.mxu0 0.0
      %1863 = vmatpush.msra.mxu0 0.0
      %1864 = vmatpush.msra.mxu0 0.0
      %1865 = vmatpush.msra.mxu0 0.0
      %1866 = vmatpush.msra.mxu0 0.0
      %1867 = vmatpush.msra.mxu0 0.0
      %1868 = vmatpush.msra.mxu0 0.0
      %1869 = vmatpush.msra.mxu0 0.0
      %1870 = vmatpush.msra.mxu0 %v1853
      %1871 = vmatmul.f32.gmra.mxu0 %v1404
      %v1872 = vpop.f32.mrf.mxu0
      %v1873 = vadd.f32 0.0, %v1872
      %1874 = vmatmul.f32.gmra.mxu0 %v1406
      %v1875 = vpop.f32.mrf.mxu0
      %v1876 = vadd.f32 0.0, %v1875
      %1877 = vmatmul.f32.gmra.mxu0 %v1408
      %v1878 = vpop.f32.mrf.mxu0
      %v1879 = vadd.f32 0.0, %v1878
      %1880 = vmatmul.f32.gmra.mxu0 %v1410
      %v1881 = vpop.f32.mrf.mxu0
      %v1882 = vadd.f32 0.0, %v1881
      %1883 = vmatmul.f32.gmra.mxu0 %v1412
      %v1884 = vpop.f32.mrf.mxu0
      %v1885 = vadd.f32 0.0, %v1884
      %1886 = vmatmul.f32.gmra.mxu0 %v1414
      %v1887 = vpop.f32.mrf.mxu0
      %v1888 = vadd.f32 0.0, %v1887
      %1889 = vmatmul.f32.gmra.mxu0 %v1416
      %v1890 = vpop.f32.mrf.mxu0
      %v1891 = vadd.f32 0.0, %v1890
      %1892 = vmatmul.f32.gmra.mxu0 %v1418
      %v1893 = vpop.f32.mrf.mxu0
      %v1894 = vadd.f32 0.0, %v1893
      %1895 = vmatmul.f32.gmra.mxu0 %v1420
      %v1896 = vpop.f32.mrf.mxu0
      %v1897 = vadd.f32 0.0, %v1896
      %1898 = vmatmul.f32.gmra.mxu0 %v1422
      %v1899 = vpop.f32.mrf.mxu0
      %v1900 = vadd.f32 0.0, %v1899
      %1901 = vmatmul.f32.gmra.mxu0 %v1424
      %v1902 = vpop.f32.mrf.mxu0
      %v1903 = vadd.f32 0.0, %v1902
      %1904 = vmatmul.f32.gmra.mxu0 %v1426
      %v1905 = vpop.f32.mrf.mxu0
      %v1906 = vadd.f32 0.0, %v1905
      %1907 = vmatmul.f32.gmra.mxu0 %v1428
      %v1908 = vpop.f32.mrf.mxu0
      %v1909 = vadd.f32 0.0, %v1908
      %1910 = vmatmul.f32.gmra.mxu0 %v1430
      %v1911 = vpop.f32.mrf.mxu0
      %v1912 = vadd.f32 0.0, %v1911
      %1913 = vmatmul.f32.gmra.mxu0 %v1432
      %v1914 = vpop.f32.mrf.mxu0
      %v1915 = vadd.f32 0.0, %v1914
      %1916 = vmatmul.f32.gmra.mxu0 %v1434
      %v1917 = vpop.f32.mrf.mxu0
      %v1918 = vadd.f32 0.0, %v1917
      %1919 = vmatmul.f32.gmra.mxu0 %v1436
      %v1920 = vpop.f32.mrf.mxu0
      %v1921 = vadd.f32 0.0, %v1920
      %1922 = vmatmul.f32.gmra.mxu0 %v1438
      %v1923 = vpop.f32.mrf.mxu0
      %v1924 = vadd.f32 0.0, %v1923
      %1925 = vmatmul.f32.gmra.mxu0 %v1440
      %v1926 = vpop.f32.mrf.mxu0
      %v1927 = vadd.f32 0.0, %v1926
      %1928 = vmatmul.f32.gmra.mxu0 %v1442
      %v1929 = vpop.f32.mrf.mxu0
      %v1930 = vadd.f32 0.0, %v1929
      %1931 = vmatmul.f32.gmra.mxu0 %v1444
      %v1932 = vpop.f32.mrf.mxu0
      %v1933 = vadd.f32 0.0, %v1932
      %1934 = vmatmul.f32.gmra.mxu0 %v1446
      %v1935 = vpop.f32.mrf.mxu0
      %v1936 = vadd.f32 0.0, %v1935
      %1937 = vmatmul.f32.gmra.mxu0 %v1448
      %v1938 = vpop.f32.mrf.mxu0
      %v1939 = vadd.f32 0.0, %v1938
      %1940 = vmatmul.f32.gmra.mxu0 %v1450
      %v1941 = vpop.f32.mrf.mxu0
      %v1942 = vadd.f32 0.0, %v1941
      %1943 = vmatmul.f32.gmra.mxu0 %v1452
      %v1944 = vpop.f32.mrf.mxu0
      %v1945 = vadd.f32 0.0, %v1944
      %1946 = vmatmul.f32.gmra.mxu0 %v1454
      %v1947 = vpop.f32.mrf.mxu0
      %v1948 = vadd.f32 0.0, %v1947
      %1949 = vmatmul.f32.gmra.mxu0 %v1456
      %v1950 = vpop.f32.mrf.mxu0
      %v1951 = vadd.f32 0.0, %v1950
      %1952 = vmatmul.f32.gmra.mxu0 %v1458
      %v1953 = vpop.f32.mrf.mxu0
      %v1954 = vadd.f32 0.0, %v1953
      %1955 = vmatmul.f32.gmra.mxu0 %v1460
      %v1956 = vpop.f32.mrf.mxu0
      %v1957 = vadd.f32 0.0, %v1956
      %1958 = vmatmul.f32.gmra.mxu0 %v1462
      %v1959 = vpop.f32.mrf.mxu0
      %v1960 = vadd.f32 0.0, %v1959
      %1961 = vmatmul.f32.gmra.mxu0 %v1848
      %v1962 = vpop.f32.mrf.mxu0
      %v1963 = vadd.f32 0.0, %v1962
      %1964 = vmatmul.f32.gmra.mxu0 %v1850
      %v1965 = vpop.f32.mrf.mxu0
      %v1966 = vadd.f32 0.0, %v1965
      %1967 = vdwg.mxu0
      %v1968 = vadd.f32 %v1814, %v1873
      %v1969 = vadd.f32 %v1815, %v1876
      %v1970 = vadd.f32 %v1816, %v1879
      %v1971 = vadd.f32 %v1817, %v1882
      %v1972 = vadd.f32 %v1818, %v1885
      %v1973 = vadd.f32 %v1819, %v1888
      %v1974 = vadd.f32 %v1820, %v1891
      %v1975 = vadd.f32 %v1821, %v1894
      %v1976 = vadd.f32 %v1822, %v1897
      %v1977 = vadd.f32 %v1823, %v1900
      %v1978 = vadd.f32 %v1824, %v1903
      %v1979 = vadd.f32 %v1825, %v1906
      %v1980 = vadd.f32 %v1826, %v1909
      %v1981 = vadd.f32 %v1827, %v1912
      %v1982 = vadd.f32 %v1828, %v1915
      %v1983 = vadd.f32 %v1829, %v1918
      %v1984 = vadd.f32 %v1830, %v1921
      %v1985 = vadd.f32 %v1831, %v1924
      %v1986 = vadd.f32 %v1832, %v1927
      %v1987 = vadd.f32 %v1833, %v1930
      %v1988 = vadd.f32 %v1834, %v1933
      %v1989 = vadd.f32 %v1835, %v1936
      %v1990 = vadd.f32 %v1836, %v1939
      %v1991 = vadd.f32 %v1837, %v1942
      %v1992 = vadd.f32 %v1838, %v1945
      %v1993 = vadd.f32 %v1839, %v1948
      %v1994 = vadd.f32 %v1840, %v1951
      %v1995 = vadd.f32 %v1841, %v1954
      %v1996 = vadd.f32 %v1842, %v1957
      %v1997 = vadd.f32 %v1843, %v1960
      %v1998 = vadd.f32 %v1844, %v1963
      %v1999 = vadd.f32 %v1845, %v1966
      %v2000 = vadd.f32 %v1968, %v1362
      %v2001 = vadd.f32 %v1969, %v1362
      %v2002 = vadd.f32 %v1970, %v1362
      %v2003 = vadd.f32 %v1971, %v1362
      %v2004 = vadd.f32 %v1972, %v1362
      %v2005 = vadd.f32 %v1973, %v1362
      %v2006 = vadd.f32 %v1974, %v1362
      %v2007 = vadd.f32 %v1975, %v1362
      %v2008 = vadd.f32 %v1976, %v1362
      %v2009 = vadd.f32 %v1977, %v1362
      %v2010 = vadd.f32 %v1978, %v1362
      %v2011 = vadd.f32 %v1979, %v1362
      %v2012 = vadd.f32 %v1980, %v1362
      %v2013 = vadd.f32 %v1981, %v1362
      %v2014 = vadd.f32 %v1982, %v1362
      %v2015 = vadd.f32 %v1983, %v1362
      %v2016 = vadd.f32 %v1984, %v1362
      %v2017 = vadd.f32 %v1985, %v1362
      %v2018 = vadd.f32 %v1986, %v1362
      %v2019 = vadd.f32 %v1987, %v1362
      %v2020 = vadd.f32 %v1988, %v1362
      %v2021 = vadd.f32 %v1989, %v1362
      %v2022 = vadd.f32 %v1990, %v1362
      %v2023 = vadd.f32 %v1991, %v1362
      %v2024 = vadd.f32 %v1992, %v1362
      %v2025 = vadd.f32 %v1993, %v1362
      %v2026 = vadd.f32 %v1994, %v1362
      %v2027 = vadd.f32 %v1995, %v1362
      %v2028 = vadd.f32 %v1996, %v1362
      %v2029 = vadd.f32 %v1997, %v1362
      %v2030 = vadd.f32 %v1998, %v1362
      %v2031 = vadd.f32 %v1999, %v1362
      %2064 = vrot.lane.b32.xlu0 %v2000, 4
      %v2065 = vpop.permute.xlu0 %2064
      %2066 = vrot.lane.b32.xlu0 %v2001, 4
      %v2067 = vpop.permute.xlu0 %2066
      %2068 = vrot.lane.b32.xlu0 %v2002, 4
      %v2069 = vpop.permute.xlu0 %2068
      %2070 = vrot.lane.b32.xlu0 %v2003, 4
      %v2071 = vpop.permute.xlu0 %2070
      %2072 = vrot.lane.b32.xlu0 %v2004, 4
      %v2073 = vpop.permute.xlu0 %2072
      %2074 = vrot.lane.b32.xlu0 %v2005, 4
      %v2075 = vpop.permute.xlu0 %2074
      %2076 = vrot.lane.b32.xlu0 %v2006, 4
      %v2077 = vpop.permute.xlu0 %2076
      %2078 = vrot.lane.b32.xlu0 %v2007, 4
      %v2079 = vpop.permute.xlu0 %2078
      %2080 = vrot.lane.b32.xlu0 %v2008, 4
      %v2081 = vpop.permute.xlu0 %2080
      %2082 = vrot.lane.b32.xlu0 %v2009, 4
      %v2083 = vpop.permute.xlu0 %2082
      %2084 = vrot.lane.b32.xlu0 %v2010, 4
      %v2085 = vpop.permute.xlu0 %2084
      %2086 = vrot.lane.b32.xlu0 %v2011, 4
      %v2087 = vpop.permute.xlu0 %2086
      %2088 = vrot.lane.b32.xlu0 %v2012, 4
      %v2089 = vpop.permute.xlu0 %2088
      %2090 = vrot.lane.b32.xlu0 %v2013, 4
      %v2091 = vpop.permute.xlu0 %2090
      %2092 = vrot.lane.b32.xlu0 %v2014, 4
      %v2093 = vpop.permute.xlu0 %2092
      %2094 = vrot.lane.b32.xlu0 %v2015, 4
      %v2095 = vpop.permute.xlu0 %2094
      %2096 = vrot.lane.b32.xlu0 %v2016, 4
      %v2097 = vpop.permute.xlu0 %2096
      %2098 = vrot.lane.b32.xlu0 %v2017, 4
      %v2099 = vpop.permute.xlu0 %2098
      %2100 = vrot.lane.b32.xlu0 %v2018, 4
      %v2101 = vpop.permute.xlu0 %2100
      %2102 = vrot.lane.b32.xlu0 %v2019, 4
      %v2103 = vpop.permute.xlu0 %2102
      %2104 = vrot.lane.b32.xlu0 %v2020, 4
      %v2105 = vpop.permute.xlu0 %2104
      %2106 = vrot.lane.b32.xlu0 %v2021, 4
      %v2107 = vpop.permute.xlu0 %2106
      %2108 = vrot.lane.b32.xlu0 %v2022, 4
      %v2109 = vpop.permute.xlu0 %2108
      %2110 = vrot.lane.b32.xlu0 %v2023, 4
      %v2111 = vpop.permute.xlu0 %2110
      %2112 = vrot.lane.b32.xlu0 %v2024, 4
      %v2113 = vpop.permute.xlu0 %2112
      %2114 = vrot.lane.b32.xlu0 %v2025, 4
      %v2115 = vpop.permute.xlu0 %2114
      %2116 = vrot.lane.b32.xlu0 %v2026, 4
      %v2117 = vpop.permute.xlu0 %2116
      %2118 = vrot.lane.b32.xlu0 %v2027, 4
      %v2119 = vpop.permute.xlu0 %2118
      %2120 = vrot.lane.b32.xlu0 %v2028, 4
      %v2121 = vpop.permute.xlu0 %2120
      %2122 = vrot.lane.b32.xlu0 %v2029, 4
      %v2123 = vpop.permute.xlu0 %2122
      %2124 = vrot.lane.b32.xlu0 %v2030, 4
      %v2125 = vpop.permute.xlu0 %2124
      %2126 = vrot.lane.b32.xlu0 %v2031, 4
      %v2127 = vpop.permute.xlu0 %2126
      %v2160 = vsel %vm691, %v1364, %v2065
      %v2161 = vsel %vm691, %v1365, %v2067
      %v2162 = vsel %vm691, %v1366, %v2069
      %v2163 = vsel %vm691, %v1367, %v2071
      %v2164 = vsel %vm691, %v1368, %v2073
      %v2165 = vsel %vm691, %v1369, %v2075
      %v2166 = vsel %vm691, %v1370, %v2077
      %v2167 = vsel %vm691, %v1371, %v2079
      %v2168 = vsel %vm691, %v1372, %v2081
      %v2169 = vsel %vm691, %v1373, %v2083
      %v2170 = vsel %vm691, %v1374, %v2085
      %v2171 = vsel %vm691, %v1375, %v2087
      %v2172 = vsel %vm691, %v1376, %v2089
      %v2173 = vsel %vm691, %v1377, %v2091
      %v2174 = vsel %vm691, %v1378, %v2093
      %v2175 = vsel %vm691, %v1379, %v2095
      %v2176 = vsel %vm691, %v1380, %v2097
      %v2177 = vsel %vm691, %v1381, %v2099
      %v2178 = vsel %vm691, %v1382, %v2101
      %v2179 = vsel %vm691, %v1383, %v2103
      %v2180 = vsel %vm691, %v1384, %v2105
      %v2181 = vsel %vm691, %v1385, %v2107
      %v2182 = vsel %vm691, %v1386, %v2109
      %v2183 = vsel %vm691, %v1387, %v2111
      %v2184 = vsel %vm691, %v1388, %v2113
      %v2185 = vsel %vm691, %v1389, %v2115
      %v2186 = vsel %vm691, %v1390, %v2117
      %v2187 = vsel %vm691, %v1391, %v2119
      %v2188 = vsel %vm691, %v1392, %v2121
      %v2189 = vsel %vm691, %v1393, %v2123
      %v2190 = vsel %vm691, %v1394, %v2125
      %v2191 = vsel %vm691, %v1395, %v2127
      %vm2192 = vcmask 64512
      %2193 = vst.msk [vmem:[%s395] sm:$0xff] %vm2192, %v2160
      %2194 = vst.msk [vmem:[%s395 + $0x8] sm:$0xff] %vm2192, %v2161
      %2195 = vst.msk [vmem:[%s395 + $0x20] sm:$0xff] %vm2192, %v2162
      %2196 = vst.msk [vmem:[%s395 + $0x28] sm:$0xff] %vm2192, %v2163
      %2197 = vst.msk [vmem:[%s395 + $0x40] sm:$0xff] %vm2192, %v2164
      %2198 = vst.msk [vmem:[%s395 + $0x48] sm:$0xff] %vm2192, %v2165
      %2199 = vst.msk [vmem:[%s395 + $0x60] sm:$0xff] %vm2192, %v2166
      %2200 = vst.msk [vmem:[%s395 + $0x68] sm:$0xff] %vm2192, %v2167
      %2201 = vst.msk [vmem:[%s395 + $0x80] sm:$0xff] %vm2192, %v2168
      %2202 = vst.msk [vmem:[%s395 + $0x88] sm:$0xff] %vm2192, %v2169
      %2203 = vst.msk [vmem:[%s395 + $0xa0] sm:$0xff] %vm2192, %v2170
      %2204 = vst.msk [vmem:[%s395 + $0xa8] sm:$0xff] %vm2192, %v2171
      %2205 = vst.msk [vmem:[%s395 + $0xc0] sm:$0xff] %vm2192, %v2172
      %2206 = vst.msk [vmem:[%s395 + $0xc8] sm:$0xff] %vm2192, %v2173
      %2207 = vst.msk [vmem:[%s395 + $0xe0] sm:$0xff] %vm2192, %v2174
      %2208 = vst.msk [vmem:[%s395 + $0xe8] sm:$0xff] %vm2192, %v2175
      %2209 = vst.msk [vmem:[%s395 + $0x100] sm:$0xff] %vm2192, %v2176
      %2210 = vst.msk [vmem:[%s395 + $0x108] sm:$0xff] %vm2192, %v2177
      %2211 = vst.msk [vmem:[%s395 + $0x120] sm:$0xff] %vm2192, %v2178
      %2212 = vst.msk [vmem:[%s395 + $0x128] sm:$0xff] %vm2192, %v2179
      %2213 = vst.msk [vmem:[%s395 + $0x140] sm:$0xff] %vm2192, %v2180
      %2214 = vst.msk [vmem:[%s395 + $0x148] sm:$0xff] %vm2192, %v2181
      %2215 = vst.msk [vmem:[%s395 + $0x160] sm:$0xff] %vm2192, %v2182
      %2216 = vst.msk [vmem:[%s395 + $0x168] sm:$0xff] %vm2192, %v2183
      %2217 = vst.msk [vmem:[%s395 + $0x180] sm:$0xff] %vm2192, %v2184
      %2218 = vst.msk [vmem:[%s395 + $0x188] sm:$0xff] %vm2192, %v2185
      %2219 = vst.msk [vmem:[%s395 + $0x1a0] sm:$0xff] %vm2192, %v2186
      %2220 = vst.msk [vmem:[%s395 + $0x1a8] sm:$0xff] %vm2192, %v2187
      %2221 = vst.msk [vmem:[%s395 + $0x1c0] sm:$0xff] %vm2192, %v2188
      %2222 = vst.msk [vmem:[%s395 + $0x1c8] sm:$0xff] %vm2192, %v2189
      %2223 = vst.msk [vmem:[%s395 + $0x1e0] sm:$0xff] %vm2192, %v2190
      %2224 = vst.msk [vmem:[%s395 + $0x1e8] sm:$0xff] %vm2192, %v2191
      %s2225 = scalar_lea.vmem %s3, 32
      %v2226 = vld [vmem:[%s2225] sm:$0xf]
      %s2227 = scalar_lea.vmem %s3, 36
      %v2228 = vld [vmem:[%s2227] sm:$0xf]
      %v2230 = vsel %vm756, %v2228, 0
      %2232 = vmatpush.msra.mxu0 0.0
      %2233 = vmatpush.msra.mxu0 0.0
      %2234 = vmatpush.msra.mxu0 0.0
      %2235 = vmatpush.msra.mxu0 0.0
      %2236 = vmatpush.msra.mxu0 0.0
      %2237 = vmatpush.msra.mxu0 0.0
      %2238 = vmatpush.msra.mxu0 0.0
      %2239 = vmatpush.msra.mxu0 0.0
      %2240 = vmatpush.msra.mxu0 0.0
      %2241 = vmatpush.msra.mxu0 0.0
      %2242 = vmatpush.msra.mxu0 0.0
      %2243 = vmatpush.msra.mxu0 0.0
      %2244 = vmatpush.msra.mxu0 0.0
      %2245 = vmatpush.msra.mxu0 0.0
      %2246 = vmatpush.msra.mxu0 0.0
      %2247 = vmatpush.msra.mxu0 %v2230
      %2248 = vmatmul.f32.gmra.mxu0 %v696
      %v2249 = vpop.f32.mrf.mxu0
      %v2250 = vadd.f32 0.0, %v2249
      %2251 = vmatmul.f32.gmra.mxu0 %v698
      %v2252 = vpop.f32.mrf.mxu0
      %v2253 = vadd.f32 0.0, %v2252
      %2254 = vmatmul.f32.gmra.mxu0 %v700
      %v2255 = vpop.f32.mrf.mxu0
      %v2256 = vadd.f32 0.0, %v2255
      %2257 = vmatmul.f32.gmra.mxu0 %v702
      %v2258 = vpop.f32.mrf.mxu0
      %v2259 = vadd.f32 0.0, %v2258
      %2260 = vmatmul.f32.gmra.mxu0 %v704
      %v2261 = vpop.f32.mrf.mxu0
      %v2262 = vadd.f32 0.0, %v2261
      %2263 = vmatmul.f32.gmra.mxu0 %v706
      %v2264 = vpop.f32.mrf.mxu0
      %v2265 = vadd.f32 0.0, %v2264
      %2266 = vmatmul.f32.gmra.mxu0 %v708
      %v2267 = vpop.f32.mrf.mxu0
      %v2268 = vadd.f32 0.0, %v2267
      %2269 = vmatmul.f32.gmra.mxu0 %v710
      %v2270 = vpop.f32.mrf.mxu0
      %v2271 = vadd.f32 0.0, %v2270
      %2272 = vmatmul.f32.gmra.mxu0 %v712
      %v2273 = vpop.f32.mrf.mxu0
      %v2274 = vadd.f32 0.0, %v2273
      %2275 = vmatmul.f32.gmra.mxu0 %v714
      %v2276 = vpop.f32.mrf.mxu0
      %v2277 = vadd.f32 0.0, %v2276
      %2278 = vmatmul.f32.gmra.mxu0 %v716
      %v2279 = vpop.f32.mrf.mxu0
      %v2280 = vadd.f32 0.0, %v2279
      %2281 = vmatmul.f32.gmra.mxu0 %v718
      %v2282 = vpop.f32.mrf.mxu0
      %v2283 = vadd.f32 0.0, %v2282
      %2284 = vmatmul.f32.gmra.mxu0 %v720
      %v2285 = vpop.f32.mrf.mxu0
      %v2286 = vadd.f32 0.0, %v2285
      %2287 = vmatmul.f32.gmra.mxu0 %v722
      %v2288 = vpop.f32.mrf.mxu0
      %v2289 = vadd.f32 0.0, %v2288
      %2290 = vmatmul.f32.gmra.mxu0 %v724
      %v2291 = vpop.f32.mrf.mxu0
      %v2292 = vadd.f32 0.0, %v2291
      %2293 = vmatmul.f32.gmra.mxu0 %v726
      %v2294 = vpop.f32.mrf.mxu0
      %v2295 = vadd.f32 0.0, %v2294
      %2296 = vmatmul.f32.gmra.mxu0 %v728
      %v2297 = vpop.f32.mrf.mxu0
      %v2298 = vadd.f32 0.0, %v2297
      %2299 = vmatmul.f32.gmra.mxu0 %v730
      %v2300 = vpop.f32.mrf.mxu0
      %v2301 = vadd.f32 0.0, %v2300
      %2302 = vmatmul.f32.gmra.mxu0 %v732
      %v2303 = vpop.f32.mrf.mxu0
      %v2304 = vadd.f32 0.0, %v2303
      %2305 = vmatmul.f32.gmra.mxu0 %v734
      %v2306 = vpop.f32.mrf.mxu0
      %v2307 = vadd.f32 0.0, %v2306
      %2308 = vmatmul.f32.gmra.mxu0 %v736
      %v2309 = vpop.f32.mrf.mxu0
      %v2310 = vadd.f32 0.0, %v2309
      %2311 = vmatmul.f32.gmra.mxu0 %v738
      %v2312 = vpop.f32.mrf.mxu0
      %v2313 = vadd.f32 0.0, %v2312
      %2314 = vmatmul.f32.gmra.mxu0 %v740
      %v2315 = vpop.f32.mrf.mxu0
      %v2316 = vadd.f32 0.0, %v2315
      %2317 = vmatmul.f32.gmra.mxu0 %v742
      %v2318 = vpop.f32.mrf.mxu0
      %v2319 = vadd.f32 0.0, %v2318
      %2320 = vmatmul.f32.gmra.mxu0 %v744
      %v2321 = vpop.f32.mrf.mxu0
      %v2322 = vadd.f32 0.0, %v2321
      %2323 = vmatmul.f32.gmra.mxu0 %v746
      %v2324 = vpop.f32.mrf.mxu0
      %v2325 = vadd.f32 0.0, %v2324
      %2326 = vmatmul.f32.gmra.mxu0 %v748
      %v2327 = vpop.f32.mrf.mxu0
      %v2328 = vadd.f32 0.0, %v2327
      %2329 = vmatmul.f32.gmra.mxu0 %v750
      %v2330 = vpop.f32.mrf.mxu0
      %v2331 = vadd.f32 0.0, %v2330
      %2332 = vmatmul.f32.gmra.mxu0 %v752
      %v2333 = vpop.f32.mrf.mxu0
      %v2334 = vadd.f32 0.0, %v2333
      %2335 = vmatmul.f32.gmra.mxu0 %v754
      %v2336 = vpop.f32.mrf.mxu0
      %v2337 = vadd.f32 0.0, %v2336
      %2338 = vmatmul.f32.gmra.mxu0 %v1209
      %v2339 = vpop.f32.mrf.mxu0
      %v2340 = vadd.f32 0.0, %v2339
      %2341 = vmatmul.f32.gmra.mxu0 %v1211
      %v2342 = vpop.f32.mrf.mxu0
      %v2343 = vadd.f32 0.0, %v2342
      %2344 = vdwg.mxu0
      %v2346 = vsel %vm756, %v2226, 0
      %2348 = vmatpush.msra.mxu0 0.0
      %2349 = vmatpush.msra.mxu0 0.0
      %2350 = vmatpush.msra.mxu0 0.0
      %2351 = vmatpush.msra.mxu0 0.0
      %2352 = vmatpush.msra.mxu0 0.0
      %2353 = vmatpush.msra.mxu0 0.0
      %2354 = vmatpush.msra.mxu0 0.0
      %2355 = vmatpush.msra.mxu0 0.0
      %2356 = vmatpush.msra.mxu0 0.0
      %2357 = vmatpush.msra.mxu0 0.0
      %2358 = vmatpush.msra.mxu0 0.0
      %2359 = vmatpush.msra.mxu0 0.0
      %2360 = vmatpush.msra.mxu0 0.0
      %2361 = vmatpush.msra.mxu0 0.0
      %2362 = vmatpush.msra.mxu0 0.0
      %2363 = vmatpush.msra.mxu0 %v2346
      %2364 = vmatmul.f32.gmra.mxu0 %v877
      %v2365 = vpop.f32.mrf.mxu0
      %v2366 = vadd.f32 %v2250, %v2365
      %2367 = vmatmul.f32.gmra.mxu0 %v879
      %v2368 = vpop.f32.mrf.mxu0
      %v2369 = vadd.f32 %v2253, %v2368
      %2370 = vmatmul.f32.gmra.mxu0 %v881
      %v2371 = vpop.f32.mrf.mxu0
      %v2372 = vadd.f32 %v2256, %v2371
      %2373 = vmatmul.f32.gmra.mxu0 %v883
      %v2374 = vpop.f32.mrf.mxu0
      %v2375 = vadd.f32 %v2259, %v2374
      %2376 = vmatmul.f32.gmra.mxu0 %v885
      %v2377 = vpop.f32.mrf.mxu0
      %v2378 = vadd.f32 %v2262, %v2377
      %2379 = vmatmul.f32.gmra.mxu0 %v887
      %v2380 = vpop.f32.mrf.mxu0
      %v2381 = vadd.f32 %v2265, %v2380
      %2382 = vmatmul.f32.gmra.mxu0 %v889
      %v2383 = vpop.f32.mrf.mxu0
      %v2384 = vadd.f32 %v2268, %v2383
      %2385 = vmatmul.f32.gmra.mxu0 %v891
      %v2386 = vpop.f32.mrf.mxu0
      %v2387 = vadd.f32 %v2271, %v2386
      %2388 = vmatmul.f32.gmra.mxu0 %v893
      %v2389 = vpop.f32.mrf.mxu0
      %v2390 = vadd.f32 %v2274, %v2389
      %2391 = vmatmul.f32.gmra.mxu0 %v895
      %v2392 = vpop.f32.mrf.mxu0
      %v2393 = vadd.f32 %v2277, %v2392
      %2394 = vmatmul.f32.gmra.mxu0 %v897
      %v2395 = vpop.f32.mrf.mxu0
      %v2396 = vadd.f32 %v2280, %v2395
      %2397 = vmatmul.f32.gmra.mxu0 %v899
      %v2398 = vpop.f32.mrf.mxu0
      %v2399 = vadd.f32 %v2283, %v2398
      %2400 = vmatmul.f32.gmra.mxu0 %v901
      %v2401 = vpop.f32.mrf.mxu0
      %v2402 = vadd.f32 %v2286, %v2401
      %2403 = vmatmul.f32.gmra.mxu0 %v903
      %v2404 = vpop.f32.mrf.mxu0
      %v2405 = vadd.f32 %v2289, %v2404
      %2406 = vmatmul.f32.gmra.mxu0 %v905
      %v2407 = vpop.f32.mrf.mxu0
      %v2408 = vadd.f32 %v2292, %v2407
      %2409 = vmatmul.f32.gmra.mxu0 %v907
      %v2410 = vpop.f32.mrf.mxu0
      %v2411 = vadd.f32 %v2295, %v2410
      %2412 = vmatmul.f32.gmra.mxu0 %v909
      %v2413 = vpop.f32.mrf.mxu0
      %v2414 = vadd.f32 %v2298, %v2413
      %2415 = vmatmul.f32.gmra.mxu0 %v911
      %v2416 = vpop.f32.mrf.mxu0
      %v2417 = vadd.f32 %v2301, %v2416
      %2418 = vmatmul.f32.gmra.mxu0 %v913
      %v2419 = vpop.f32.mrf.mxu0
      %v2420 = vadd.f32 %v2304, %v2419
      %2421 = vmatmul.f32.gmra.mxu0 %v915
      %v2422 = vpop.f32.mrf.mxu0
      %v2423 = vadd.f32 %v2307, %v2422
      %2424 = vmatmul.f32.gmra.mxu0 %v917
      %v2425 = vpop.f32.mrf.mxu0
      %v2426 = vadd.f32 %v2310, %v2425
      %2427 = vmatmul.f32.gmra.mxu0 %v919
      %v2428 = vpop.f32.mrf.mxu0
      %v2429 = vadd.f32 %v2313, %v2428
      %2430 = vmatmul.f32.gmra.mxu0 %v921
      %v2431 = vpop.f32.mrf.mxu0
      %v2432 = vadd.f32 %v2316, %v2431
      %2433 = vmatmul.f32.gmra.mxu0 %v923
      %v2434 = vpop.f32.mrf.mxu0
      %v2435 = vadd.f32 %v2319, %v2434
      %2436 = vmatmul.f32.gmra.mxu0 %v925
      %v2437 = vpop.f32.mrf.mxu0
      %v2438 = vadd.f32 %v2322, %v2437
      %2439 = vmatmul.f32.gmra.mxu0 %v927
      %v2440 = vpop.f32.mrf.mxu0
      %v2441 = vadd.f32 %v2325, %v2440
      %2442 = vmatmul.f32.gmra.mxu0 %v929
      %v2443 = vpop.f32.mrf.mxu0
      %v2444 = vadd.f32 %v2328, %v2443
      %2445 = vmatmul.f32.gmra.mxu0 %v931
      %v2446 = vpop.f32.mrf.mxu0
      %v2447 = vadd.f32 %v2331, %v2446
      %2448 = vmatmul.f32.gmra.mxu0 %v933
      %v2449 = vpop.f32.mrf.mxu0
      %v2450 = vadd.f32 %v2334, %v2449
      %2451 = vmatmul.f32.gmra.mxu0 %v935
      %v2452 = vpop.f32.mrf.mxu0
      %v2453 = vadd.f32 %v2337, %v2452
      %2454 = vmatmul.f32.gmra.mxu0 %v1055
      %v2455 = vpop.f32.mrf.mxu0
      %v2456 = vadd.f32 %v2340, %v2455
      %2457 = vmatmul.f32.gmra.mxu0 %v1057
      %v2458 = vpop.f32.mrf.mxu0
      %v2459 = vadd.f32 %v2343, %v2458
      %2460 = vdwg.mxu0
      %s2461 = scalar_lea.vmem %s3, 40
      %v2462 = vld [vmem:[%s2461] sm:$0xf]
      %v2463 = vsel %vm691, %v448, 0
      %v2465 = vsel %vm691, %v449, 0
      %v2468 = vsel %vm756, %v2462, 0
      %2470 = vmatpush.msra.mxu0 0.0
      %2471 = vmatpush.msra.mxu0 0.0
      %2472 = vmatpush.msra.mxu0 0.0
      %2473 = vmatpush.msra.mxu0 0.0
      %2474 = vmatpush.msra.mxu0 0.0
      %2475 = vmatpush.msra.mxu0 0.0
      %2476 = vmatpush.msra.mxu0 0.0
      %2477 = vmatpush.msra.mxu0 0.0
      %2478 = vmatpush.msra.mxu0 0.0
      %2479 = vmatpush.msra.mxu0 0.0
      %2480 = vmatpush.msra.mxu0 0.0
      %2481 = vmatpush.msra.mxu0 0.0
      %2482 = vmatpush.msra.mxu0 0.0
      %2483 = vmatpush.msra.mxu0 0.0
      %2484 = vmatpush.msra.mxu0 0.0
      %2485 = vmatpush.msra.mxu0 %v2468
      %2486 = vmatmul.f32.gmra.mxu0 %v881
      %v2487 = vpop.f32.mrf.mxu0
      %v2488 = vadd.f32 0.0, %v2487
      %2489 = vmatmul.f32.gmra.mxu0 %v883
      %v2490 = vpop.f32.mrf.mxu0
      %v2491 = vadd.f32 0.0, %v2490
      %2492 = vmatmul.f32.gmra.mxu0 %v885
      %v2493 = vpop.f32.mrf.mxu0
      %v2494 = vadd.f32 0.0, %v2493
      %2495 = vmatmul.f32.gmra.mxu0 %v887
      %v2496 = vpop.f32.mrf.mxu0
      %v2497 = vadd.f32 0.0, %v2496
      %2498 = vmatmul.f32.gmra.mxu0 %v889
      %v2499 = vpop.f32.mrf.mxu0
      %v2500 = vadd.f32 0.0, %v2499
      %2501 = vmatmul.f32.gmra.mxu0 %v891
      %v2502 = vpop.f32.mrf.mxu0
      %v2503 = vadd.f32 0.0, %v2502
      %2504 = vmatmul.f32.gmra.mxu0 %v893
      %v2505 = vpop.f32.mrf.mxu0
      %v2506 = vadd.f32 0.0, %v2505
      %2507 = vmatmul.f32.gmra.mxu0 %v895
      %v2508 = vpop.f32.mrf.mxu0
      %v2509 = vadd.f32 0.0, %v2508
      %2510 = vmatmul.f32.gmra.mxu0 %v897
      %v2511 = vpop.f32.mrf.mxu0
      %v2512 = vadd.f32 0.0, %v2511
      %2513 = vmatmul.f32.gmra.mxu0 %v899
      %v2514 = vpop.f32.mrf.mxu0
      %v2515 = vadd.f32 0.0, %v2514
      %2516 = vmatmul.f32.gmra.mxu0 %v901
      %v2517 = vpop.f32.mrf.mxu0
      %v2518 = vadd.f32 0.0, %v2517
      %2519 = vmatmul.f32.gmra.mxu0 %v903
      %v2520 = vpop.f32.mrf.mxu0
      %v2521 = vadd.f32 0.0, %v2520
      %2522 = vmatmul.f32.gmra.mxu0 %v905
      %v2523 = vpop.f32.mrf.mxu0
      %v2524 = vadd.f32 0.0, %v2523
      %2525 = vmatmul.f32.gmra.mxu0 %v907
      %v2526 = vpop.f32.mrf.mxu0
      %v2527 = vadd.f32 0.0, %v2526
      %2528 = vmatmul.f32.gmra.mxu0 %v909
      %v2529 = vpop.f32.mrf.mxu0
      %v2530 = vadd.f32 0.0, %v2529
      %2531 = vmatmul.f32.gmra.mxu0 %v911
      %v2532 = vpop.f32.mrf.mxu0
      %v2533 = vadd.f32 0.0, %v2532
      %2534 = vmatmul.f32.gmra.mxu0 %v913
      %v2535 = vpop.f32.mrf.mxu0
      %v2536 = vadd.f32 0.0, %v2535
      %2537 = vmatmul.f32.gmra.mxu0 %v915
      %v2538 = vpop.f32.mrf.mxu0
      %v2539 = vadd.f32 0.0, %v2538
      %2540 = vmatmul.f32.gmra.mxu0 %v917
      %v2541 = vpop.f32.mrf.mxu0
      %v2542 = vadd.f32 0.0, %v2541
      %2543 = vmatmul.f32.gmra.mxu0 %v919
      %v2544 = vpop.f32.mrf.mxu0
      %v2545 = vadd.f32 0.0, %v2544
      %2546 = vmatmul.f32.gmra.mxu0 %v921
      %v2547 = vpop.f32.mrf.mxu0
      %v2548 = vadd.f32 0.0, %v2547
      %2549 = vmatmul.f32.gmra.mxu0 %v923
      %v2550 = vpop.f32.mrf.mxu0
      %v2551 = vadd.f32 0.0, %v2550
      %2552 = vmatmul.f32.gmra.mxu0 %v925
      %v2553 = vpop.f32.mrf.mxu0
      %v2554 = vadd.f32 0.0, %v2553
      %2555 = vmatmul.f32.gmra.mxu0 %v927
      %v2556 = vpop.f32.mrf.mxu0
      %v2557 = vadd.f32 0.0, %v2556
      %2558 = vmatmul.f32.gmra.mxu0 %v929
      %v2559 = vpop.f32.mrf.mxu0
      %v2560 = vadd.f32 0.0, %v2559
      %2561 = vmatmul.f32.gmra.mxu0 %v931
      %v2562 = vpop.f32.mrf.mxu0
      %v2563 = vadd.f32 0.0, %v2562
      %2564 = vmatmul.f32.gmra.mxu0 %v933
      %v2565 = vpop.f32.mrf.mxu0
      %v2566 = vadd.f32 0.0, %v2565
      %2567 = vmatmul.f32.gmra.mxu0 %v935
      %v2568 = vpop.f32.mrf.mxu0
      %v2569 = vadd.f32 0.0, %v2568
      %2570 = vmatmul.f32.gmra.mxu0 %v1055
      %v2571 = vpop.f32.mrf.mxu0
      %v2572 = vadd.f32 0.0, %v2571
      %2573 = vmatmul.f32.gmra.mxu0 %v1057
      %v2574 = vpop.f32.mrf.mxu0
      %v2575 = vadd.f32 0.0, %v2574
      %2576 = vmatmul.f32.gmra.mxu0 %v2463
      %v2577 = vpop.f32.mrf.mxu0
      %v2578 = vadd.f32 0.0, %v2577
      %2579 = vmatmul.f32.gmra.mxu0 %v2465
      %v2580 = vpop.f32.mrf.mxu0
      %v2581 = vadd.f32 0.0, %v2580
      %2582 = vdwg.mxu0
      %v2583 = vadd.f32 %v2366, %v2488
      %v2584 = vadd.f32 %v2369, %v2491
      %v2585 = vadd.f32 %v2372, %v2494
      %v2586 = vadd.f32 %v2375, %v2497
      %v2587 = vadd.f32 %v2378, %v2500
      %v2588 = vadd.f32 %v2381, %v2503
      %v2589 = vadd.f32 %v2384, %v2506
      %v2590 = vadd.f32 %v2387, %v2509
      %v2591 = vadd.f32 %v2390, %v2512
      %v2592 = vadd.f32 %v2393, %v2515
      %v2593 = vadd.f32 %v2396, %v2518
      %v2594 = vadd.f32 %v2399, %v2521
      %v2595 = vadd.f32 %v2402, %v2524
      %v2596 = vadd.f32 %v2405, %v2527
      %v2597 = vadd.f32 %v2408, %v2530
      %v2598 = vadd.f32 %v2411, %v2533
      %v2599 = vadd.f32 %v2414, %v2536
      %v2600 = vadd.f32 %v2417, %v2539
      %v2601 = vadd.f32 %v2420, %v2542
      %v2602 = vadd.f32 %v2423, %v2545
      %v2603 = vadd.f32 %v2426, %v2548
      %v2604 = vadd.f32 %v2429, %v2551
      %v2605 = vadd.f32 %v2432, %v2554
      %v2606 = vadd.f32 %v2435, %v2557
      %v2607 = vadd.f32 %v2438, %v2560
      %v2608 = vadd.f32 %v2441, %v2563
      %v2609 = vadd.f32 %v2444, %v2566
      %v2610 = vadd.f32 %v2447, %v2569
      %v2611 = vadd.f32 %v2450, %v2572
      %v2612 = vadd.f32 %v2453, %v2575
      %v2613 = vadd.f32 %v2456, %v2578
      %v2614 = vadd.f32 %v2459, %v2581
      %s2615 = scalar_lea.vmem %s3, 44
      %v2616 = vld [vmem:[%s2615] sm:$0xf]
      %v2617 = vsel %vm691, %v680, 0
      %v2619 = vsel %vm691, %v682, 0
      %v2622 = vsel %vm756, %v2616, 0
      %2624 = vmatpush.msra.mxu0 0.0
      %2625 = vmatpush.msra.mxu0 0.0
      %2626 = vmatpush.msra.mxu0 0.0
      %2627 = vmatpush.msra.mxu0 0.0
      %2628 = vmatpush.msra.mxu0 0.0
      %2629 = vmatpush.msra.mxu0 0.0
      %2630 = vmatpush.msra.mxu0 0.0
      %2631 = vmatpush.msra.mxu0 0.0
      %2632 = vmatpush.msra.mxu0 0.0
      %2633 = vmatpush.msra.mxu0 0.0
      %2634 = vmatpush.msra.mxu0 0.0
      %2635 = vmatpush.msra.mxu0 0.0
      %2636 = vmatpush.msra.mxu0 0.0
      %2637 = vmatpush.msra.mxu0 0.0
      %2638 = vmatpush.msra.mxu0 0.0
      %2639 = vmatpush.msra.mxu0 %v2622
      %2640 = vmatmul.f32.gmra.mxu0 %v700
      %v2641 = vpop.f32.mrf.mxu0
      %v2642 = vadd.f32 0.0, %v2641
      %2643 = vmatmul.f32.gmra.mxu0 %v702
      %v2644 = vpop.f32.mrf.mxu0
      %v2645 = vadd.f32 0.0, %v2644
      %2646 = vmatmul.f32.gmra.mxu0 %v704
      %v2647 = vpop.f32.mrf.mxu0
      %v2648 = vadd.f32 0.0, %v2647
      %2649 = vmatmul.f32.gmra.mxu0 %v706
      %v2650 = vpop.f32.mrf.mxu0
      %v2651 = vadd.f32 0.0, %v2650
      %2652 = vmatmul.f32.gmra.mxu0 %v708
      %v2653 = vpop.f32.mrf.mxu0
      %v2654 = vadd.f32 0.0, %v2653
      %2655 = vmatmul.f32.gmra.mxu0 %v710
      %v2656 = vpop.f32.mrf.mxu0
      %v2657 = vadd.f32 0.0, %v2656
      %2658 = vmatmul.f32.gmra.mxu0 %v712
      %v2659 = vpop.f32.mrf.mxu0
      %v2660 = vadd.f32 0.0, %v2659
      %2661 = vmatmul.f32.gmra.mxu0 %v714
      %v2662 = vpop.f32.mrf.mxu0
      %v2663 = vadd.f32 0.0, %v2662
      %2664 = vmatmul.f32.gmra.mxu0 %v716
      %v2665 = vpop.f32.mrf.mxu0
      %v2666 = vadd.f32 0.0, %v2665
      %2667 = vmatmul.f32.gmra.mxu0 %v718
      %v2668 = vpop.f32.mrf.mxu0
      %v2669 = vadd.f32 0.0, %v2668
      %2670 = vmatmul.f32.gmra.mxu0 %v720
      %v2671 = vpop.f32.mrf.mxu0
      %v2672 = vadd.f32 0.0, %v2671
      %2673 = vmatmul.f32.gmra.mxu0 %v722
      %v2674 = vpop.f32.mrf.mxu0
      %v2675 = vadd.f32 0.0, %v2674
      %2676 = vmatmul.f32.gmra.mxu0 %v724
      %v2677 = vpop.f32.mrf.mxu0
      %v2678 = vadd.f32 0.0, %v2677
      %2679 = vmatmul.f32.gmra.mxu0 %v726
      %v2680 = vpop.f32.mrf.mxu0
      %v2681 = vadd.f32 0.0, %v2680
      %2682 = vmatmul.f32.gmra.mxu0 %v728
      %v2683 = vpop.f32.mrf.mxu0
      %v2684 = vadd.f32 0.0, %v2683
      %2685 = vmatmul.f32.gmra.mxu0 %v730
      %v2686 = vpop.f32.mrf.mxu0
      %v2687 = vadd.f32 0.0, %v2686
      %2688 = vmatmul.f32.gmra.mxu0 %v732
      %v2689 = vpop.f32.mrf.mxu0
      %v2690 = vadd.f32 0.0, %v2689
      %2691 = vmatmul.f32.gmra.mxu0 %v734
      %v2692 = vpop.f32.mrf.mxu0
      %v2693 = vadd.f32 0.0, %v2692
      %2694 = vmatmul.f32.gmra.mxu0 %v736
      %v2695 = vpop.f32.mrf.mxu0
      %v2696 = vadd.f32 0.0, %v2695
      %2697 = vmatmul.f32.gmra.mxu0 %v738
      %v2698 = vpop.f32.mrf.mxu0
      %v2699 = vadd.f32 0.0, %v2698
      %2700 = vmatmul.f32.gmra.mxu0 %v740
      %v2701 = vpop.f32.mrf.mxu0
      %v2702 = vadd.f32 0.0, %v2701
      %2703 = vmatmul.f32.gmra.mxu0 %v742
      %v2704 = vpop.f32.mrf.mxu0
      %v2705 = vadd.f32 0.0, %v2704
      %2706 = vmatmul.f32.gmra.mxu0 %v744
      %v2707 = vpop.f32.mrf.mxu0
      %v2708 = vadd.f32 0.0, %v2707
      %2709 = vmatmul.f32.gmra.mxu0 %v746
      %v2710 = vpop.f32.mrf.mxu0
      %v2711 = vadd.f32 0.0, %v2710
      %2712 = vmatmul.f32.gmra.mxu0 %v748
      %v2713 = vpop.f32.mrf.mxu0
      %v2714 = vadd.f32 0.0, %v2713
      %2715 = vmatmul.f32.gmra.mxu0 %v750
      %v2716 = vpop.f32.mrf.mxu0
      %v2717 = vadd.f32 0.0, %v2716
      %2718 = vmatmul.f32.gmra.mxu0 %v752
      %v2719 = vpop.f32.mrf.mxu0
      %v2720 = vadd.f32 0.0, %v2719
      %2721 = vmatmul.f32.gmra.mxu0 %v754
      %v2722 = vpop.f32.mrf.mxu0
      %v2723 = vadd.f32 0.0, %v2722
      %2724 = vmatmul.f32.gmra.mxu0 %v1209
      %v2725 = vpop.f32.mrf.mxu0
      %v2726 = vadd.f32 0.0, %v2725
      %2727 = vmatmul.f32.gmra.mxu0 %v1211
      %v2728 = vpop.f32.mrf.mxu0
      %v2729 = vadd.f32 0.0, %v2728
      %2730 = vmatmul.f32.gmra.mxu0 %v2617
      %v2731 = vpop.f32.mrf.mxu0
      %v2732 = vadd.f32 0.0, %v2731
      %2733 = vmatmul.f32.gmra.mxu0 %v2619
      %v2734 = vpop.f32.mrf.mxu0
      %v2735 = vadd.f32 0.0, %v2734
      %2736 = vdwg.mxu0
      %v2737 = vadd.f32 %v2583, %v2642
      %v2738 = vadd.f32 %v2584, %v2645
      %v2739 = vadd.f32 %v2585, %v2648
      %v2740 = vadd.f32 %v2586, %v2651
      %v2741 = vadd.f32 %v2587, %v2654
      %v2742 = vadd.f32 %v2588, %v2657
      %v2743 = vadd.f32 %v2589, %v2660
      %v2744 = vadd.f32 %v2590, %v2663
      %v2745 = vadd.f32 %v2591, %v2666
      %v2746 = vadd.f32 %v2592, %v2669
      %v2747 = vadd.f32 %v2593, %v2672
      %v2748 = vadd.f32 %v2594, %v2675
      %v2749 = vadd.f32 %v2595, %v2678
      %v2750 = vadd.f32 %v2596, %v2681
      %v2751 = vadd.f32 %v2597, %v2684
      %v2752 = vadd.f32 %v2598, %v2687
      %v2753 = vadd.f32 %v2599, %v2690
      %v2754 = vadd.f32 %v2600, %v2693
      %v2755 = vadd.f32 %v2601, %v2696
      %v2756 = vadd.f32 %v2602, %v2699
      %v2757 = vadd.f32 %v2603, %v2702
      %v2758 = vadd.f32 %v2604, %v2705
      %v2759 = vadd.f32 %v2605, %v2708
      %v2760 = vadd.f32 %v2606, %v2711
      %v2761 = vadd.f32 %v2607, %v2714
      %v2762 = vadd.f32 %v2608, %v2717
      %v2763 = vadd.f32 %v2609, %v2720
      %v2764 = vadd.f32 %v2610, %v2723
      %v2765 = vadd.f32 %v2611, %v2726
      %v2766 = vadd.f32 %v2612, %v2729
      %v2767 = vadd.f32 %v2613, %v2732
      %v2768 = vadd.f32 %v2614, %v2735
      %v2769 = vadd.f32 %v2737, %v1362
      %v2770 = vadd.f32 %v2738, %v1362
      %v2771 = vadd.f32 %v2739, %v1362
      %v2772 = vadd.f32 %v2740, %v1362
      %v2773 = vadd.f32 %v2741, %v1362
      %v2774 = vadd.f32 %v2742, %v1362
      %v2775 = vadd.f32 %v2743, %v1362
      %v2776 = vadd.f32 %v2744, %v1362
      %v2777 = vadd.f32 %v2745, %v1362
      %v2778 = vadd.f32 %v2746, %v1362
      %v2779 = vadd.f32 %v2747, %v1362
      %v2780 = vadd.f32 %v2748, %v1362
      %v2781 = vadd.f32 %v2749, %v1362
      %v2782 = vadd.f32 %v2750, %v1362
      %v2783 = vadd.f32 %v2751, %v1362
      %v2784 = vadd.f32 %v2752, %v1362
      %v2785 = vadd.f32 %v2753, %v1362
      %v2786 = vadd.f32 %v2754, %v1362
      %v2787 = vadd.f32 %v2755, %v1362
      %v2788 = vadd.f32 %v2756, %v1362
      %v2789 = vadd.f32 %v2757, %v1362
      %v2790 = vadd.f32 %v2758, %v1362
      %v2791 = vadd.f32 %v2759, %v1362
      %v2792 = vadd.f32 %v2760, %v1362
      %v2793 = vadd.f32 %v2761, %v1362
      %v2794 = vadd.f32 %v2762, %v1362
      %v2795 = vadd.f32 %v2763, %v1362
      %v2796 = vadd.f32 %v2764, %v1362
      %v2797 = vadd.f32 %v2765, %v1362
      %v2798 = vadd.f32 %v2766, %v1362
      %v2799 = vadd.f32 %v2767, %v1362
      %v2800 = vadd.f32 %v2768, %v1362
      %s2801 = scalar_lea.vmem %s3, 48
      %v2802 = vld [vmem:[%s2801] sm:$0xf]
      %s2803 = scalar_lea.vmem %s3, 52
      %v2804 = vld [vmem:[%s2803] sm:$0xf]
      %v2806 = vsel %vm756, %v2804, 0
      %2808 = vmatpush.msra.mxu0 0.0
      %2809 = vmatpush.msra.mxu0 0.0
      %2810 = vmatpush.msra.mxu0 0.0
      %2811 = vmatpush.msra.mxu0 0.0
      %2812 = vmatpush.msra.mxu0 0.0
      %2813 = vmatpush.msra.mxu0 0.0
      %2814 = vmatpush.msra.mxu0 0.0
      %2815 = vmatpush.msra.mxu0 0.0
      %2816 = vmatpush.msra.mxu0 0.0
      %2817 = vmatpush.msra.mxu0 0.0
      %2818 = vmatpush.msra.mxu0 0.0
      %2819 = vmatpush.msra.mxu0 0.0
      %2820 = vmatpush.msra.mxu0 0.0
      %2821 = vmatpush.msra.mxu0 0.0
      %2822 = vmatpush.msra.mxu0 0.0
      %2823 = vmatpush.msra.mxu0 %v2806
      %2824 = vmatmul.f32.gmra.mxu0 %v1404
      %v2825 = vpop.f32.mrf.mxu0
      %v2826 = vadd.f32 0.0, %v2825
      %2827 = vmatmul.f32.gmra.mxu0 %v1406
      %v2828 = vpop.f32.mrf.mxu0
      %v2829 = vadd.f32 0.0, %v2828
      %2830 = vmatmul.f32.gmra.mxu0 %v1408
      %v2831 = vpop.f32.mrf.mxu0
      %v2832 = vadd.f32 0.0, %v2831
      %2833 = vmatmul.f32.gmra.mxu0 %v1410
      %v2834 = vpop.f32.mrf.mxu0
      %v2835 = vadd.f32 0.0, %v2834
      %2836 = vmatmul.f32.gmra.mxu0 %v1412
      %v2837 = vpop.f32.mrf.mxu0
      %v2838 = vadd.f32 0.0, %v2837
      %2839 = vmatmul.f32.gmra.mxu0 %v1414
      %v2840 = vpop.f32.mrf.mxu0
      %v2841 = vadd.f32 0.0, %v2840
      %2842 = vmatmul.f32.gmra.mxu0 %v1416
      %v2843 = vpop.f32.mrf.mxu0
      %v2844 = vadd.f32 0.0, %v2843
      %2845 = vmatmul.f32.gmra.mxu0 %v1418
      %v2846 = vpop.f32.mrf.mxu0
      %v2847 = vadd.f32 0.0, %v2846
      %2848 = vmatmul.f32.gmra.mxu0 %v1420
      %v2849 = vpop.f32.mrf.mxu0
      %v2850 = vadd.f32 0.0, %v2849
      %2851 = vmatmul.f32.gmra.mxu0 %v1422
      %v2852 = vpop.f32.mrf.mxu0
      %v2853 = vadd.f32 0.0, %v2852
      %2854 = vmatmul.f32.gmra.mxu0 %v1424
      %v2855 = vpop.f32.mrf.mxu0
      %v2856 = vadd.f32 0.0, %v2855
      %2857 = vmatmul.f32.gmra.mxu0 %v1426
      %v2858 = vpop.f32.mrf.mxu0
      %v2859 = vadd.f32 0.0, %v2858
      %2860 = vmatmul.f32.gmra.mxu0 %v1428
      %v2861 = vpop.f32.mrf.mxu0
      %v2862 = vadd.f32 0.0, %v2861
      %2863 = vmatmul.f32.gmra.mxu0 %v1430
      %v2864 = vpop.f32.mrf.mxu0
      %v2865 = vadd.f32 0.0, %v2864
      %2866 = vmatmul.f32.gmra.mxu0 %v1432
      %v2867 = vpop.f32.mrf.mxu0
      %v2868 = vadd.f32 0.0, %v2867
      %2869 = vmatmul.f32.gmra.mxu0 %v1434
      %v2870 = vpop.f32.mrf.mxu0
      %v2871 = vadd.f32 0.0, %v2870
      %2872 = vmatmul.f32.gmra.mxu0 %v1436
      %v2873 = vpop.f32.mrf.mxu0
      %v2874 = vadd.f32 0.0, %v2873
      %2875 = vmatmul.f32.gmra.mxu0 %v1438
      %v2876 = vpop.f32.mrf.mxu0
      %v2877 = vadd.f32 0.0, %v2876
      %2878 = vmatmul.f32.gmra.mxu0 %v1440
      %v2879 = vpop.f32.mrf.mxu0
      %v2880 = vadd.f32 0.0, %v2879
      %2881 = vmatmul.f32.gmra.mxu0 %v1442
      %v2882 = vpop.f32.mrf.mxu0
      %v2883 = vadd.f32 0.0, %v2882
      %2884 = vmatmul.f32.gmra.mxu0 %v1444
      %v2885 = vpop.f32.mrf.mxu0
      %v2886 = vadd.f32 0.0, %v2885
      %2887 = vmatmul.f32.gmra.mxu0 %v1446
      %v2888 = vpop.f32.mrf.mxu0
      %v2889 = vadd.f32 0.0, %v2888
      %2890 = vmatmul.f32.gmra.mxu0 %v1448
      %v2891 = vpop.f32.mrf.mxu0
      %v2892 = vadd.f32 0.0, %v2891
      %2893 = vmatmul.f32.gmra.mxu0 %v1450
      %v2894 = vpop.f32.mrf.mxu0
      %v2895 = vadd.f32 0.0, %v2894
      %2896 = vmatmul.f32.gmra.mxu0 %v1452
      %v2897 = vpop.f32.mrf.mxu0
      %v2898 = vadd.f32 0.0, %v2897
      %2899 = vmatmul.f32.gmra.mxu0 %v1454
      %v2900 = vpop.f32.mrf.mxu0
      %v2901 = vadd.f32 0.0, %v2900
      %2902 = vmatmul.f32.gmra.mxu0 %v1456
      %v2903 = vpop.f32.mrf.mxu0
      %v2904 = vadd.f32 0.0, %v2903
      %2905 = vmatmul.f32.gmra.mxu0 %v1458
      %v2906 = vpop.f32.mrf.mxu0
      %v2907 = vadd.f32 0.0, %v2906
      %2908 = vmatmul.f32.gmra.mxu0 %v1460
      %v2909 = vpop.f32.mrf.mxu0
      %v2910 = vadd.f32 0.0, %v2909
      %2911 = vmatmul.f32.gmra.mxu0 %v1462
      %v2912 = vpop.f32.mrf.mxu0
      %v2913 = vadd.f32 0.0, %v2912
      %2914 = vmatmul.f32.gmra.mxu0 %v1848
      %v2915 = vpop.f32.mrf.mxu0
      %v2916 = vadd.f32 0.0, %v2915
      %2917 = vmatmul.f32.gmra.mxu0 %v1850
      %v2918 = vpop.f32.mrf.mxu0
      %v2919 = vadd.f32 0.0, %v2918
      %2920 = vdwg.mxu0
      %v2922 = vsel %vm756, %v2802, 0
      %2924 = vmatpush.msra.mxu0 0.0
      %2925 = vmatpush.msra.mxu0 0.0
      %2926 = vmatpush.msra.mxu0 0.0
      %2927 = vmatpush.msra.mxu0 0.0
      %2928 = vmatpush.msra.mxu0 0.0
      %2929 = vmatpush.msra.mxu0 0.0
      %2930 = vmatpush.msra.mxu0 0.0
      %2931 = vmatpush.msra.mxu0 0.0
      %2932 = vmatpush.msra.mxu0 0.0
      %2933 = vmatpush.msra.mxu0 0.0
      %2934 = vmatpush.msra.mxu0 0.0
      %2935 = vmatpush.msra.mxu0 0.0
      %2936 = vmatpush.msra.mxu0 0.0
      %2937 = vmatpush.msra.mxu0 0.0
      %2938 = vmatpush.msra.mxu0 0.0
      %2939 = vmatpush.msra.mxu0 %v2922
      %2940 = vmatmul.f32.gmra.mxu0 %v696
      %v2941 = vpop.f32.mrf.mxu0
      %v2942 = vadd.f32 %v2826, %v2941
      %2943 = vmatmul.f32.gmra.mxu0 %v698
      %v2944 = vpop.f32.mrf.mxu0
      %v2945 = vadd.f32 %v2829, %v2944
      %2946 = vmatmul.f32.gmra.mxu0 %v700
      %v2947 = vpop.f32.mrf.mxu0
      %v2948 = vadd.f32 %v2832, %v2947
      %2949 = vmatmul.f32.gmra.mxu0 %v702
      %v2950 = vpop.f32.mrf.mxu0
      %v2951 = vadd.f32 %v2835, %v2950
      %2952 = vmatmul.f32.gmra.mxu0 %v704
      %v2953 = vpop.f32.mrf.mxu0
      %v2954 = vadd.f32 %v2838, %v2953
      %2955 = vmatmul.f32.gmra.mxu0 %v706
      %v2956 = vpop.f32.mrf.mxu0
      %v2957 = vadd.f32 %v2841, %v2956
      %2958 = vmatmul.f32.gmra.mxu0 %v708
      %v2959 = vpop.f32.mrf.mxu0
      %v2960 = vadd.f32 %v2844, %v2959
      %2961 = vmatmul.f32.gmra.mxu0 %v710
      %v2962 = vpop.f32.mrf.mxu0
      %v2963 = vadd.f32 %v2847, %v2962
      %2964 = vmatmul.f32.gmra.mxu0 %v712
      %v2965 = vpop.f32.mrf.mxu0
      %v2966 = vadd.f32 %v2850, %v2965
      %2967 = vmatmul.f32.gmra.mxu0 %v714
      %v2968 = vpop.f32.mrf.mxu0
      %v2969 = vadd.f32 %v2853, %v2968
      %2970 = vmatmul.f32.gmra.mxu0 %v716
      %v2971 = vpop.f32.mrf.mxu0
      %v2972 = vadd.f32 %v2856, %v2971
      %2973 = vmatmul.f32.gmra.mxu0 %v718
      %v2974 = vpop.f32.mrf.mxu0
      %v2975 = vadd.f32 %v2859, %v2974
      %2976 = vmatmul.f32.gmra.mxu0 %v720
      %v2977 = vpop.f32.mrf.mxu0
      %v2978 = vadd.f32 %v2862, %v2977
      %2979 = vmatmul.f32.gmra.mxu0 %v722
      %v2980 = vpop.f32.mrf.mxu0
      %v2981 = vadd.f32 %v2865, %v2980
      %2982 = vmatmul.f32.gmra.mxu0 %v724
      %v2983 = vpop.f32.mrf.mxu0
      %v2984 = vadd.f32 %v2868, %v2983
      %2985 = vmatmul.f32.gmra.mxu0 %v726
      %v2986 = vpop.f32.mrf.mxu0
      %v2987 = vadd.f32 %v2871, %v2986
      %2988 = vmatmul.f32.gmra.mxu0 %v728
      %v2989 = vpop.f32.mrf.mxu0
      %v2990 = vadd.f32 %v2874, %v2989
      %2991 = vmatmul.f32.gmra.mxu0 %v730
      %v2992 = vpop.f32.mrf.mxu0
      %v2993 = vadd.f32 %v2877, %v2992
      %2994 = vmatmul.f32.gmra.mxu0 %v732
      %v2995 = vpop.f32.mrf.mxu0
      %v2996 = vadd.f32 %v2880, %v2995
      %2997 = vmatmul.f32.gmra.mxu0 %v734
      %v2998 = vpop.f32.mrf.mxu0
      %v2999 = vadd.f32 %v2883, %v2998
      %3000 = vmatmul.f32.gmra.mxu0 %v736
      %v3001 = vpop.f32.mrf.mxu0
      %v3002 = vadd.f32 %v2886, %v3001
      %3003 = vmatmul.f32.gmra.mxu0 %v738
      %v3004 = vpop.f32.mrf.mxu0
      %v3005 = vadd.f32 %v2889, %v3004
      %3006 = vmatmul.f32.gmra.mxu0 %v740
      %v3007 = vpop.f32.mrf.mxu0
      %v3008 = vadd.f32 %v2892, %v3007
      %3009 = vmatmul.f32.gmra.mxu0 %v742
      %v3010 = vpop.f32.mrf.mxu0
      %v3011 = vadd.f32 %v2895, %v3010
      %3012 = vmatmul.f32.gmra.mxu0 %v744
      %v3013 = vpop.f32.mrf.mxu0
      %v3014 = vadd.f32 %v2898, %v3013
      %3015 = vmatmul.f32.gmra.mxu0 %v746
      %v3016 = vpop.f32.mrf.mxu0
      %v3017 = vadd.f32 %v2901, %v3016
      %3018 = vmatmul.f32.gmra.mxu0 %v748
      %v3019 = vpop.f32.mrf.mxu0
      %v3020 = vadd.f32 %v2904, %v3019
      %3021 = vmatmul.f32.gmra.mxu0 %v750
      %v3022 = vpop.f32.mrf.mxu0
      %v3023 = vadd.f32 %v2907, %v3022
      %3024 = vmatmul.f32.gmra.mxu0 %v752
      %v3025 = vpop.f32.mrf.mxu0
      %v3026 = vadd.f32 %v2910, %v3025
      %3027 = vmatmul.f32.gmra.mxu0 %v754
      %v3028 = vpop.f32.mrf.mxu0
      %v3029 = vadd.f32 %v2913, %v3028
      %3030 = vmatmul.f32.gmra.mxu0 %v1209
      %v3031 = vpop.f32.mrf.mxu0
      %v3032 = vadd.f32 %v2916, %v3031
      %3033 = vmatmul.f32.gmra.mxu0 %v1211
      %v3034 = vpop.f32.mrf.mxu0
      %v3035 = vadd.f32 %v2919, %v3034
      %3036 = vdwg.mxu0
      %s3037 = scalar_lea.vmem %s3, 56
      %v3038 = vld [vmem:[%s3037] sm:$0xf]
      %v3040 = vsel %vm756, %v3038, 0
      %3042 = vmatpush.msra.mxu0 0.0
      %3043 = vmatpush.msra.mxu0 0.0
      %3044 = vmatpush.msra.mxu0 0.0
      %3045 = vmatpush.msra.mxu0 0.0
      %3046 = vmatpush.msra.mxu0 0.0
      %3047 = vmatpush.msra.mxu0 0.0
      %3048 = vmatpush.msra.mxu0 0.0
      %3049 = vmatpush.msra.mxu0 0.0
      %3050 = vmatpush.msra.mxu0 0.0
      %3051 = vmatpush.msra.mxu0 0.0
      %3052 = vmatpush.msra.mxu0 0.0
      %3053 = vmatpush.msra.mxu0 0.0
      %3054 = vmatpush.msra.mxu0 0.0
      %3055 = vmatpush.msra.mxu0 0.0
      %3056 = vmatpush.msra.mxu0 0.0
      %3057 = vmatpush.msra.mxu0 %v3040
      %3058 = vmatmul.f32.gmra.mxu0 %v700
      %v3059 = vpop.f32.mrf.mxu0
      %v3060 = vadd.f32 0.0, %v3059
      %3061 = vmatmul.f32.gmra.mxu0 %v702
      %v3062 = vpop.f32.mrf.mxu0
      %v3063 = vadd.f32 0.0, %v3062
      %3064 = vmatmul.f32.gmra.mxu0 %v704
      %v3065 = vpop.f32.mrf.mxu0
      %v3066 = vadd.f32 0.0, %v3065
      %3067 = vmatmul.f32.gmra.mxu0 %v706
      %v3068 = vpop.f32.mrf.mxu0
      %v3069 = vadd.f32 0.0, %v3068
      %3070 = vmatmul.f32.gmra.mxu0 %v708
      %v3071 = vpop.f32.mrf.mxu0
      %v3072 = vadd.f32 0.0, %v3071
      %3073 = vmatmul.f32.gmra.mxu0 %v710
      %v3074 = vpop.f32.mrf.mxu0
      %v3075 = vadd.f32 0.0, %v3074
      %3076 = vmatmul.f32.gmra.mxu0 %v712
      %v3077 = vpop.f32.mrf.mxu0
      %v3078 = vadd.f32 0.0, %v3077
      %3079 = vmatmul.f32.gmra.mxu0 %v714
      %v3080 = vpop.f32.mrf.mxu0
      %v3081 = vadd.f32 0.0, %v3080
      %3082 = vmatmul.f32.gmra.mxu0 %v716
      %v3083 = vpop.f32.mrf.mxu0
      %v3084 = vadd.f32 0.0, %v3083
      %3085 = vmatmul.f32.gmra.mxu0 %v718
      %v3086 = vpop.f32.mrf.mxu0
      %v3087 = vadd.f32 0.0, %v3086
      %3088 = vmatmul.f32.gmra.mxu0 %v720
      %v3089 = vpop.f32.mrf.mxu0
      %v3090 = vadd.f32 0.0, %v3089
      %3091 = vmatmul.f32.gmra.mxu0 %v722
      %v3092 = vpop.f32.mrf.mxu0
      %v3093 = vadd.f32 0.0, %v3092
      %3094 = vmatmul.f32.gmra.mxu0 %v724
      %v3095 = vpop.f32.mrf.mxu0
      %v3096 = vadd.f32 0.0, %v3095
      %3097 = vmatmul.f32.gmra.mxu0 %v726
      %v3098 = vpop.f32.mrf.mxu0
      %v3099 = vadd.f32 0.0, %v3098
      %3100 = vmatmul.f32.gmra.mxu0 %v728
      %v3101 = vpop.f32.mrf.mxu0
      %v3102 = vadd.f32 0.0, %v3101
      %3103 = vmatmul.f32.gmra.mxu0 %v730
      %v3104 = vpop.f32.mrf.mxu0
      %v3105 = vadd.f32 0.0, %v3104
      %3106 = vmatmul.f32.gmra.mxu0 %v732
      %v3107 = vpop.f32.mrf.mxu0
      %v3108 = vadd.f32 0.0, %v3107
      %3109 = vmatmul.f32.gmra.mxu0 %v734
      %v3110 = vpop.f32.mrf.mxu0
      %v3111 = vadd.f32 0.0, %v3110
      %3112 = vmatmul.f32.gmra.mxu0 %v736
      %v3113 = vpop.f32.mrf.mxu0
      %v3114 = vadd.f32 0.0, %v3113
      %3115 = vmatmul.f32.gmra.mxu0 %v738
      %v3116 = vpop.f32.mrf.mxu0
      %v3117 = vadd.f32 0.0, %v3116
      %3118 = vmatmul.f32.gmra.mxu0 %v740
      %v3119 = vpop.f32.mrf.mxu0
      %v3120 = vadd.f32 0.0, %v3119
      %3121 = vmatmul.f32.gmra.mxu0 %v742
      %v3122 = vpop.f32.mrf.mxu0
      %v3123 = vadd.f32 0.0, %v3122
      %3124 = vmatmul.f32.gmra.mxu0 %v744
      %v3125 = vpop.f32.mrf.mxu0
      %v3126 = vadd.f32 0.0, %v3125
      %3127 = vmatmul.f32.gmra.mxu0 %v746
      %v3128 = vpop.f32.mrf.mxu0
      %v3129 = vadd.f32 0.0, %v3128
      %3130 = vmatmul.f32.gmra.mxu0 %v748
      %v3131 = vpop.f32.mrf.mxu0
      %v3132 = vadd.f32 0.0, %v3131
      %3133 = vmatmul.f32.gmra.mxu0 %v750
      %v3134 = vpop.f32.mrf.mxu0
      %v3135 = vadd.f32 0.0, %v3134
      %3136 = vmatmul.f32.gmra.mxu0 %v752
      %v3137 = vpop.f32.mrf.mxu0
      %v3138 = vadd.f32 0.0, %v3137
      %3139 = vmatmul.f32.gmra.mxu0 %v754
      %v3140 = vpop.f32.mrf.mxu0
      %v3141 = vadd.f32 0.0, %v3140
      %3142 = vmatmul.f32.gmra.mxu0 %v1209
      %v3143 = vpop.f32.mrf.mxu0
      %v3144 = vadd.f32 0.0, %v3143
      %3145 = vmatmul.f32.gmra.mxu0 %v1211
      %v3146 = vpop.f32.mrf.mxu0
      %v3147 = vadd.f32 0.0, %v3146
      %3148 = vmatmul.f32.gmra.mxu0 %v2617
      %v3149 = vpop.f32.mrf.mxu0
      %v3150 = vadd.f32 0.0, %v3149
      %3151 = vmatmul.f32.gmra.mxu0 %v2619
      %v3152 = vpop.f32.mrf.mxu0
      %v3153 = vadd.f32 0.0, %v3152
      %3154 = vdwg.mxu0
      %v3155 = vadd.f32 %v2942, %v3060
      %v3156 = vadd.f32 %v2945, %v3063
      %v3157 = vadd.f32 %v2948, %v3066
      %v3158 = vadd.f32 %v2951, %v3069
      %v3159 = vadd.f32 %v2954, %v3072
      %v3160 = vadd.f32 %v2957, %v3075
      %v3161 = vadd.f32 %v2960, %v3078
      %v3162 = vadd.f32 %v2963, %v3081
      %v3163 = vadd.f32 %v2966, %v3084
      %v3164 = vadd.f32 %v2969, %v3087
      %v3165 = vadd.f32 %v2972, %v3090
      %v3166 = vadd.f32 %v2975, %v3093
      %v3167 = vadd.f32 %v2978, %v3096
      %v3168 = vadd.f32 %v2981, %v3099
      %v3169 = vadd.f32 %v2984, %v3102
      %v3170 = vadd.f32 %v2987, %v3105
      %v3171 = vadd.f32 %v2990, %v3108
      %v3172 = vadd.f32 %v2993, %v3111
      %v3173 = vadd.f32 %v2996, %v3114
      %v3174 = vadd.f32 %v2999, %v3117
      %v3175 = vadd.f32 %v3002, %v3120
      %v3176 = vadd.f32 %v3005, %v3123
      %v3177 = vadd.f32 %v3008, %v3126
      %v3178 = vadd.f32 %v3011, %v3129
      %v3179 = vadd.f32 %v3014, %v3132
      %v3180 = vadd.f32 %v3017, %v3135
      %v3181 = vadd.f32 %v3020, %v3138
      %v3182 = vadd.f32 %v3023, %v3141
      %v3183 = vadd.f32 %v3026, %v3144
      %v3184 = vadd.f32 %v3029, %v3147
      %v3185 = vadd.f32 %v3032, %v3150
      %v3186 = vadd.f32 %v3035, %v3153
      %s3187 = scalar_lea.vmem %s3, 60
      %v3188 = vld [vmem:[%s3187] sm:$0xf]
      %v3189 = vsel %vm691, %v685, 0
      %v3191 = vsel %vm691, %v687, 0
      %v3194 = vsel %vm756, %v3188, 0
      %3196 = vmatpush.msra.mxu0 0.0
      %3197 = vmatpush.msra.mxu0 0.0
      %3198 = vmatpush.msra.mxu0 0.0
      %3199 = vmatpush.msra.mxu0 0.0
      %3200 = vmatpush.msra.mxu0 0.0
      %3201 = vmatpush.msra.mxu0 0.0
      %3202 = vmatpush.msra.mxu0 0.0
      %3203 = vmatpush.msra.mxu0 0.0
      %3204 = vmatpush.msra.mxu0 0.0
      %3205 = vmatpush.msra.mxu0 0.0
      %3206 = vmatpush.msra.mxu0 0.0
      %3207 = vmatpush.msra.mxu0 0.0
      %3208 = vmatpush.msra.mxu0 0.0
      %3209 = vmatpush.msra.mxu0 0.0
      %3210 = vmatpush.msra.mxu0 0.0
      %3211 = vmatpush.msra.mxu0 %v3194
      %3212 = vmatmul.f32.gmra.mxu0 %v1408
      %v3213 = vpop.f32.mrf.mxu0
      %v3214 = vadd.f32 0.0, %v3213
      %3215 = vmatmul.f32.gmra.mxu0 %v1410
      %v3216 = vpop.f32.mrf.mxu0
      %v3217 = vadd.f32 0.0, %v3216
      %3218 = vmatmul.f32.gmra.mxu0 %v1412
      %v3219 = vpop.f32.mrf.mxu0
      %v3220 = vadd.f32 0.0, %v3219
      %3221 = vmatmul.f32.gmra.mxu0 %v1414
      %v3222 = vpop.f32.mrf.mxu0
      %v3223 = vadd.f32 0.0, %v3222
      %3224 = vmatmul.f32.gmra.mxu0 %v1416
      %v3225 = vpop.f32.mrf.mxu0
      %v3226 = vadd.f32 0.0, %v3225
      %3227 = vmatmul.f32.gmra.mxu0 %v1418
      %v3228 = vpop.f32.mrf.mxu0
      %v3229 = vadd.f32 0.0, %v3228
      %3230 = vmatmul.f32.gmra.mxu0 %v1420
      %v3231 = vpop.f32.mrf.mxu0
      %v3232 = vadd.f32 0.0, %v3231
      %3233 = vmatmul.f32.gmra.mxu0 %v1422
      %v3234 = vpop.f32.mrf.mxu0
      %v3235 = vadd.f32 0.0, %v3234
      %3236 = vmatmul.f32.gmra.mxu0 %v1424
      %v3237 = vpop.f32.mrf.mxu0
      %v3238 = vadd.f32 0.0, %v3237
      %3239 = vmatmul.f32.gmra.mxu0 %v1426
      %v3240 = vpop.f32.mrf.mxu0
      %v3241 = vadd.f32 0.0, %v3240
      %3242 = vmatmul.f32.gmra.mxu0 %v1428
      %v3243 = vpop.f32.mrf.mxu0
      %v3244 = vadd.f32 0.0, %v3243
      %3245 = vmatmul.f32.gmra.mxu0 %v1430
      %v3246 = vpop.f32.mrf.mxu0
      %v3247 = vadd.f32 0.0, %v3246
      %3248 = vmatmul.f32.gmra.mxu0 %v1432
      %v3249 = vpop.f32.mrf.mxu0
      %v3250 = vadd.f32 0.0, %v3249
      %3251 = vmatmul.f32.gmra.mxu0 %v1434
      %v3252 = vpop.f32.mrf.mxu0
      %v3253 = vadd.f32 0.0, %v3252
      %3254 = vmatmul.f32.gmra.mxu0 %v1436
      %v3255 = vpop.f32.mrf.mxu0
      %v3256 = vadd.f32 0.0, %v3255
      %3257 = vmatmul.f32.gmra.mxu0 %v1438
      %v3258 = vpop.f32.mrf.mxu0
      %v3259 = vadd.f32 0.0, %v3258
      %3260 = vmatmul.f32.gmra.mxu0 %v1440
      %v3261 = vpop.f32.mrf.mxu0
      %v3262 = vadd.f32 0.0, %v3261
      %3263 = vmatmul.f32.gmra.mxu0 %v1442
      %v3264 = vpop.f32.mrf.mxu0
      %v3265 = vadd.f32 0.0, %v3264
      %3266 = vmatmul.f32.gmra.mxu0 %v1444
      %v3267 = vpop.f32.mrf.mxu0
      %v3268 = vadd.f32 0.0, %v3267
      %3269 = vmatmul.f32.gmra.mxu0 %v1446
      %v3270 = vpop.f32.mrf.mxu0
      %v3271 = vadd.f32 0.0, %v3270
      %3272 = vmatmul.f32.gmra.mxu0 %v1448
      %v3273 = vpop.f32.mrf.mxu0
      %v3274 = vadd.f32 0.0, %v3273
      %3275 = vmatmul.f32.gmra.mxu0 %v1450
      %v3276 = vpop.f32.mrf.mxu0
      %v3277 = vadd.f32 0.0, %v3276
      %3278 = vmatmul.f32.gmra.mxu0 %v1452
      %v3279 = vpop.f32.mrf.mxu0
      %v3280 = vadd.f32 0.0, %v3279
      %3281 = vmatmul.f32.gmra.mxu0 %v1454
      %v3282 = vpop.f32.mrf.mxu0
      %v3283 = vadd.f32 0.0, %v3282
      %3284 = vmatmul.f32.gmra.mxu0 %v1456
      %v3285 = vpop.f32.mrf.mxu0
      %v3286 = vadd.f32 0.0, %v3285
      %3287 = vmatmul.f32.gmra.mxu0 %v1458
      %v3288 = vpop.f32.mrf.mxu0
      %v3289 = vadd.f32 0.0, %v3288
      %3290 = vmatmul.f32.gmra.mxu0 %v1460
      %v3291 = vpop.f32.mrf.mxu0
      %v3292 = vadd.f32 0.0, %v3291
      %3293 = vmatmul.f32.gmra.mxu0 %v1462
      %v3294 = vpop.f32.mrf.mxu0
      %v3295 = vadd.f32 0.0, %v3294
      %3296 = vmatmul.f32.gmra.mxu0 %v1848
      %v3297 = vpop.f32.mrf.mxu0
      %v3298 = vadd.f32 0.0, %v3297
      %3299 = vmatmul.f32.gmra.mxu0 %v1850
      %v3300 = vpop.f32.mrf.mxu0
      %v3301 = vadd.f32 0.0, %v3300
      %3302 = vmatmul.f32.gmra.mxu0 %v3189
      %v3303 = vpop.f32.mrf.mxu0
      %v3304 = vadd.f32 0.0, %v3303
      %3305 = vmatmul.f32.gmra.mxu0 %v3191
      %v3306 = vpop.f32.mrf.mxu0
      %v3307 = vadd.f32 0.0, %v3306
      %3308 = vdwg.mxu0
      %v3309 = vadd.f32 %v3155, %v3214
      %v3310 = vadd.f32 %v3156, %v3217
      %v3311 = vadd.f32 %v3157, %v3220
      %v3312 = vadd.f32 %v3158, %v3223
      %v3313 = vadd.f32 %v3159, %v3226
      %v3314 = vadd.f32 %v3160, %v3229
      %v3315 = vadd.f32 %v3161, %v3232
      %v3316 = vadd.f32 %v3162, %v3235
      %v3317 = vadd.f32 %v3163, %v3238
      %v3318 = vadd.f32 %v3164, %v3241
      %v3319 = vadd.f32 %v3165, %v3244
      %v3320 = vadd.f32 %v3166, %v3247
      %v3321 = vadd.f32 %v3167, %v3250
      %v3322 = vadd.f32 %v3168, %v3253
      %v3323 = vadd.f32 %v3169, %v3256
      %v3324 = vadd.f32 %v3170, %v3259
      %v3325 = vadd.f32 %v3171, %v3262
      %v3326 = vadd.f32 %v3172, %v3265
      %v3327 = vadd.f32 %v3173, %v3268
      %v3328 = vadd.f32 %v3174, %v3271
      %v3329 = vadd.f32 %v3175, %v3274
      %v3330 = vadd.f32 %v3176, %v3277
      %v3331 = vadd.f32 %v3177, %v3280
      %v3332 = vadd.f32 %v3178, %v3283
      %v3333 = vadd.f32 %v3179, %v3286
      %v3334 = vadd.f32 %v3180, %v3289
      %v3335 = vadd.f32 %v3181, %v3292
      %v3336 = vadd.f32 %v3182, %v3295
      %v3337 = vadd.f32 %v3183, %v3298
      %v3338 = vadd.f32 %v3184, %v3301
      %v3339 = vadd.f32 %v3185, %v3304
      %v3340 = vadd.f32 %v3186, %v3307
      %v3341 = vadd.f32 %v3309, %v1362
      %v3342 = vadd.f32 %v3310, %v1362
      %v3343 = vadd.f32 %v3311, %v1362
      %v3344 = vadd.f32 %v3312, %v1362
      %v3345 = vadd.f32 %v3313, %v1362
      %v3346 = vadd.f32 %v3314, %v1362
      %v3347 = vadd.f32 %v3315, %v1362
      %v3348 = vadd.f32 %v3316, %v1362
      %v3349 = vadd.f32 %v3317, %v1362
      %v3350 = vadd.f32 %v3318, %v1362
      %v3351 = vadd.f32 %v3319, %v1362
      %v3352 = vadd.f32 %v3320, %v1362
      %v3353 = vadd.f32 %v3321, %v1362
      %v3354 = vadd.f32 %v3322, %v1362
      %v3355 = vadd.f32 %v3323, %v1362
      %v3356 = vadd.f32 %v3324, %v1362
      %v3357 = vadd.f32 %v3325, %v1362
      %v3358 = vadd.f32 %v3326, %v1362
      %v3359 = vadd.f32 %v3327, %v1362
      %v3360 = vadd.f32 %v3328, %v1362
      %v3361 = vadd.f32 %v3329, %v1362
      %v3362 = vadd.f32 %v3330, %v1362
      %v3363 = vadd.f32 %v3331, %v1362
      %v3364 = vadd.f32 %v3332, %v1362
      %v3365 = vadd.f32 %v3333, %v1362
      %v3366 = vadd.f32 %v3334, %v1362
      %v3367 = vadd.f32 %v3335, %v1362
      %v3368 = vadd.f32 %v3336, %v1362
      %v3369 = vadd.f32 %v3337, %v1362
      %v3370 = vadd.f32 %v3338, %v1362
      %v3371 = vadd.f32 %v3339, %v1362
      %v3372 = vadd.f32 %v3340, %v1362
      %3405 = vrot.lane.b32.xlu0 %v3341, 4
      %v3406 = vpop.permute.xlu0 %3405
      %3407 = vrot.lane.b32.xlu0 %v3342, 4
      %v3408 = vpop.permute.xlu0 %3407
      %3409 = vrot.lane.b32.xlu0 %v3343, 4
      %v3410 = vpop.permute.xlu0 %3409
      %3411 = vrot.lane.b32.xlu0 %v3344, 4
      %v3412 = vpop.permute.xlu0 %3411
      %3413 = vrot.lane.b32.xlu0 %v3345, 4
      %v3414 = vpop.permute.xlu0 %3413
      %3415 = vrot.lane.b32.xlu0 %v3346, 4
      %v3416 = vpop.permute.xlu0 %3415
      %3417 = vrot.lane.b32.xlu0 %v3347, 4
      %v3418 = vpop.permute.xlu0 %3417
      %3419 = vrot.lane.b32.xlu0 %v3348, 4
      %v3420 = vpop.permute.xlu0 %3419
      %3421 = vrot.lane.b32.xlu0 %v3349, 4
      %v3422 = vpop.permute.xlu0 %3421
      %3423 = vrot.lane.b32.xlu0 %v3350, 4
      %v3424 = vpop.permute.xlu0 %3423
      %3425 = vrot.lane.b32.xlu0 %v3351, 4
      %v3426 = vpop.permute.xlu0 %3425
      %3427 = vrot.lane.b32.xlu0 %v3352, 4
      %v3428 = vpop.permute.xlu0 %3427
      %3429 = vrot.lane.b32.xlu0 %v3353, 4
      %v3430 = vpop.permute.xlu0 %3429
      %3431 = vrot.lane.b32.xlu0 %v3354, 4
      %v3432 = vpop.permute.xlu0 %3431
      %3433 = vrot.lane.b32.xlu0 %v3355, 4
      %v3434 = vpop.permute.xlu0 %3433
      %3435 = vrot.lane.b32.xlu0 %v3356, 4
      %v3436 = vpop.permute.xlu0 %3435
      %3437 = vrot.lane.b32.xlu0 %v3357, 4
      %v3438 = vpop.permute.xlu0 %3437
      %3439 = vrot.lane.b32.xlu0 %v3358, 4
      %v3440 = vpop.permute.xlu0 %3439
      %3441 = vrot.lane.b32.xlu0 %v3359, 4
      %v3442 = vpop.permute.xlu0 %3441
      %3443 = vrot.lane.b32.xlu0 %v3360, 4
      %v3444 = vpop.permute.xlu0 %3443
      %3445 = vrot.lane.b32.xlu0 %v3361, 4
      %v3446 = vpop.permute.xlu0 %3445
      %3447 = vrot.lane.b32.xlu0 %v3362, 4
      %v3448 = vpop.permute.xlu0 %3447
      %3449 = vrot.lane.b32.xlu0 %v3363, 4
      %v3450 = vpop.permute.xlu0 %3449
      %3451 = vrot.lane.b32.xlu0 %v3364, 4
      %v3452 = vpop.permute.xlu0 %3451
      %3453 = vrot.lane.b32.xlu0 %v3365, 4
      %v3454 = vpop.permute.xlu0 %3453
      %3455 = vrot.lane.b32.xlu0 %v3366, 4
      %v3456 = vpop.permute.xlu0 %3455
      %3457 = vrot.lane.b32.xlu0 %v3367, 4
      %v3458 = vpop.permute.xlu0 %3457
      %3459 = vrot.lane.b32.xlu0 %v3368, 4
      %v3460 = vpop.permute.xlu0 %3459
      %3461 = vrot.lane.b32.xlu0 %v3369, 4
      %v3462 = vpop.permute.xlu0 %3461
      %3463 = vrot.lane.b32.xlu0 %v3370, 4
      %v3464 = vpop.permute.xlu0 %3463
      %3465 = vrot.lane.b32.xlu0 %v3371, 4
      %v3466 = vpop.permute.xlu0 %3465
      %3467 = vrot.lane.b32.xlu0 %v3372, 4
      %v3468 = vpop.permute.xlu0 %3467
      %v3501 = vsel %vm691, %v2769, %v3406
      %v3502 = vsel %vm691, %v2770, %v3408
      %v3503 = vsel %vm691, %v2771, %v3410
      %v3504 = vsel %vm691, %v2772, %v3412
      %v3505 = vsel %vm691, %v2773, %v3414
      %v3506 = vsel %vm691, %v2774, %v3416
      %v3507 = vsel %vm691, %v2775, %v3418
      %v3508 = vsel %vm691, %v2776, %v3420
      %v3509 = vsel %vm691, %v2777, %v3422
      %v3510 = vsel %vm691, %v2778, %v3424
      %v3511 = vsel %vm691, %v2779, %v3426
      %v3512 = vsel %vm691, %v2780, %v3428
      %v3513 = vsel %vm691, %v2781, %v3430
      %v3514 = vsel %vm691, %v2782, %v3432
      %v3515 = vsel %vm691, %v2783, %v3434
      %v3516 = vsel %vm691, %v2784, %v3436
      %v3517 = vsel %vm691, %v2785, %v3438
      %v3518 = vsel %vm691, %v2786, %v3440
      %v3519 = vsel %vm691, %v2787, %v3442
      %v3520 = vsel %vm691, %v2788, %v3444
      %v3521 = vsel %vm691, %v2789, %v3446
      %v3522 = vsel %vm691, %v2790, %v3448
      %v3523 = vsel %vm691, %v2791, %v3450
      %v3524 = vsel %vm691, %v2792, %v3452
      %v3525 = vsel %vm691, %v2793, %v3454
      %v3526 = vsel %vm691, %v2794, %v3456
      %v3527 = vsel %vm691, %v2795, %v3458
      %v3528 = vsel %vm691, %v2796, %v3460
      %v3529 = vsel %vm691, %v2797, %v3462
      %v3530 = vsel %vm691, %v2798, %v3464
      %v3531 = vsel %vm691, %v2799, %v3466
      %v3532 = vsel %vm691, %v2800, %v3468
      %s3533 = scalar_lea.vmem %s395, 16
      %3534 = vst.msk [vmem:[%s3533] sm:$0xff] %vm2192, %v3501
      %3535 = vst.msk [vmem:[%s3533 + $0x8] sm:$0xff] %vm2192, %v3502
      %3536 = vst.msk [vmem:[%s3533 + $0x20] sm:$0xff] %vm2192, %v3503
      %3537 = vst.msk [vmem:[%s3533 + $0x28] sm:$0xff] %vm2192, %v3504
      %3538 = vst.msk [vmem:[%s3533 + $0x40] sm:$0xff] %vm2192, %v3505
      %3539 = vst.msk [vmem:[%s3533 + $0x48] sm:$0xff] %vm2192, %v3506
      %3540 = vst.msk [vmem:[%s3533 + $0x60] sm:$0xff] %vm2192, %v3507
      %3541 = vst.msk [vmem:[%s3533 + $0x68] sm:$0xff] %vm2192, %v3508
      %3542 = vst.msk [vmem:[%s3533 + $0x80] sm:$0xff] %vm2192, %v3509
      %3543 = vst.msk [vmem:[%s3533 + $0x88] sm:$0xff] %vm2192, %v3510
      %3544 = vst.msk [vmem:[%s3533 + $0xa0] sm:$0xff] %vm2192, %v3511
      %3545 = vst.msk [vmem:[%s3533 + $0xa8] sm:$0xff] %vm2192, %v3512
      %3546 = vst.msk [vmem:[%s3533 + $0xc0] sm:$0xff] %vm2192, %v3513
      %3547 = vst.msk [vmem:[%s3533 + $0xc8] sm:$0xff] %vm2192, %v3514
      %3548 = vst.msk [vmem:[%s3533 + $0xe0] sm:$0xff] %vm2192, %v3515
      %3549 = vst.msk [vmem:[%s3533 + $0xe8] sm:$0xff] %vm2192, %v3516
      %3550 = vst.msk [vmem:[%s3533 + $0x100] sm:$0xff] %vm2192, %v3517
      %3551 = vst.msk [vmem:[%s3533 + $0x108] sm:$0xff] %vm2192, %v3518
      %3552 = vst.msk [vmem:[%s3533 + $0x120] sm:$0xff] %vm2192, %v3519
      %3553 = vst.msk [vmem:[%s3533 + $0x128] sm:$0xff] %vm2192, %v3520
      %3554 = vst.msk [vmem:[%s3533 + $0x140] sm:$0xff] %vm2192, %v3521
      %3555 = vst.msk [vmem:[%s3533 + $0x148] sm:$0xff] %vm2192, %v3522
      %3556 = vst.msk [vmem:[%s3533 + $0x160] sm:$0xff] %vm2192, %v3523
      %3557 = vst.msk [vmem:[%s3533 + $0x168] sm:$0xff] %vm2192, %v3524
      %3558 = vst.msk [vmem:[%s3533 + $0x180] sm:$0xff] %vm2192, %v3525
      %3559 = vst.msk [vmem:[%s3533 + $0x188] sm:$0xff] %vm2192, %v3526
      %3560 = vst.msk [vmem:[%s3533 + $0x1a0] sm:$0xff] %vm2192, %v3527
      %3561 = vst.msk [vmem:[%s3533 + $0x1a8] sm:$0xff] %vm2192, %v3528
      %3562 = vst.msk [vmem:[%s3533 + $0x1c0] sm:$0xff] %vm2192, %v3529
      %3563 = vst.msk [vmem:[%s3533 + $0x1c8] sm:$0xff] %vm2192, %v3530
      %3564 = vst.msk [vmem:[%s3533 + $0x1e0] sm:$0xff] %vm2192, %v3531
      %3565 = vst.msk [vmem:[%s3533 + $0x1e8] sm:$0xff] %vm2192, %v3532
      %s3566 = smul.u32 16, %s21
      %p3567 = scmp.lt.s32.totalorder %s20, 1
      %s3568 = scalar_select %p3567, %s20, 1
      %p3569 = scmp.lt.s32.totalorder %s3566, 15
      %s3570 = scalar_select %p3569, %s3566, 15
      %s3571 = smul.addr %s3570, 4
      %s3572 = smul.addr %s3568, 64
      %s3573 = sadd.s32 %s3571, %s3572
      %s3574 = smul.addr %s3573, 8
      %s3575 = scalar_lea.vmem %s5, %s3574
      // Predicated region
      $region41: #{tpu_custom_call.1} parent=39 // pred_check
        %p3576 = pneg %p184
      $region42: #{tpu_custom_call.1} parent=39 // pred_check_branch
        %3578 = sbr.rel (%p3576) target = $region44
      $region43: #{tpu_custom_call.1} parent=39 // pred_region
        %s3579 = smul.u32 16, %s21
      $region44: #{tpu_custom_call.1} parent=39 // pred_fallthru
        _
    $region40: #{tpu_custom_call.1} parent=5 // pred_fallthru
      _
    %p3580 = scmp.le.s32.totalorder 2, %s11
    // Predicated region
    $region45: #{tpu_custom_call.1} parent=5 // pred_check
      %p3581 = pneg %p3580
    $region46: #{tpu_custom_call.1} parent=5 // pred_check_branch
      %3583 = sbr.rel (%p3581) target = $region48
    $region47: #{tpu_custom_call.1} parent=5 // pred_region
      %s3584 = ssub.s32 %s11, 2
      // Predicated region
      $region49: #{tpu_custom_call.1} parent=47 // pred_check
        %p3585 = pneg %p190
      $region50: #{tpu_custom_call.1} parent=47 // pred_check_branch
        %3587 = sbr.rel (%p3585) target = $region52
      $region51: #{tpu_custom_call.1} parent=47 // pred_region
        %s3588 = smul.u32 16, %s23
        %p3589 = scmp.lt.s32.totalorder %s22, 1
        %s3590 = scalar_select %p3589, %s22, 1
        %p3591 = scmp.lt.s32.totalorder %s3588, 15
        %s3592 = scalar_select %p3591, %s3588, 15
        %s3593 = smul.addr %s3592, 4
        %s3594 = smul.addr %s3590, 64
        %s3595 = sadd.s32 %s3593, %s3594
        %s3596 = smul.addr %s3595, 8
        %s3597 = scalar_lea.vmem %s5, %s3596
      $region52: #{tpu_custom_call.1} parent=47 // pred_fallthru
        _
    $region48: #{tpu_custom_call.1} parent=5 // pred_fallthru
      _
  $region6: #{tpu_custom_call.1} parent=0 // loop_footer
    %s15 = sadd.s32 1, %s11
  $region7: #{tpu_custom_call.1} parent=0 // loop_footer_branch
    %10 = sbr.rel target = $region3
  $region8: #{tpu_custom_call.1} parent=0 // loop_exit
    _

</llo_original>
